<compile_context>
chip_gen: v6e
topology: v6e:2x2x1
jax: 0.10.0
libtpu: 0.0.40
codegen_flags: <defaults>
</compile_context>

<pallas_src>
import jax
import jax.numpy as jnp
from jax.experimental import pallas as pl
from jax.experimental.pallas import tpu as pltpu

# ---------------- model hyperparameters (small, consistent with the module) ----
B = 2          # batch
N = 8          # sequence length
DIM = 32       # embedding dim
DEPTH = 2      # number of transformer layers
HEADS = 4
DIM_HEAD = 8
INNER = HEADS * DIM_HEAD        # 32
MLP_DIM = 64
SCALE = DIM_HEAD ** -0.5
LN_EPS = 1e-5
DTYPE = jnp.float32


def _layer_norm(x, w, b):
    # Single-pass LayerNorm (biased variance, eps=1e-5, matches torch.nn.LayerNorm).
    # var = E[x^2] - mean^2 -> one pass over the lanes instead of two dependent ones.
    inv_d = jnp.float32(1.0 / DIM)
    s1 = jnp.sum(x, axis=-1, keepdims=True)
    s2 = jnp.sum(x * x, axis=-1, keepdims=True)
    mean = s1 * inv_d
    var = s2 * inv_d - mean * mean
    inv = jax.lax.rsqrt(var + LN_EPS)
    return (x - mean) * inv * w + b


def _gelu_exact(x):
    # torch.nn.GELU() default: exact erf formulation.
    return x * 0.5 * (1.0 + jax.lax.erf(x / jnp.sqrt(jnp.float32(2.0))))


def _softmax_lastdim(x):
    m = jnp.max(x, axis=-1, keepdims=True)
    e = jnp.exp(x - m)
    # EUP reciprocal (approx) instead of a VALU divide; error is far below 1e-4 tol.
    return e * pl.reciprocal(jnp.sum(e, axis=-1, keepdims=True), approx=True)


def transformer_kernel(x_ref,
                       ln1w_ref, ln1b_ref,
                       wqkv_ref,
                       wout_ref, bout_ref,
                       ln2w_ref, ln2b_ref,
                       wff1_ref, bff1_ref,
                       wff2_ref, bff2_ref,
                       o_ref):
    # x_ref: (B*N, DIM) -- whole batch, all rows fused for dense GEMMs.
    x = x_ref[...].astype(jnp.float32)                          # (B*N, D)

    for l in range(DEPTH):                                      # static unroll over depth
        # ---- PreNorm + Attention + residual -------------------------------
        h = _layer_norm(x, ln1w_ref[l], ln1b_ref[l])            # (B*N, D)
        # Q third of wqkv is pre-scaled by SCALE at parameter-prep time (host).
        qkv = jnp.dot(h, wqkv_ref[l],
                      preferred_element_type=jnp.float32)       # (B*N, 3*INNER)
        q = qkv[:, 0 * INNER:1 * INNER].reshape(B, N, INNER)    # (B, N, INNER)
        k = qkv[:, 1 * INNER:2 * INNER].reshape(B, N, INNER)
        v = qkv[:, 2 * INNER:3 * INNER].reshape(B, N, INNER)

        # Residual + out-projection bias folded into the accumulator start;
        # each head contributes via a matmul against its sublane slice of wout.
        w_out = wout_ref[l]                                     # (INNER, D)
        acc = x + bout_ref[l]                                   # (B*N, D)
        for hd in range(HEADS):                                 # static unroll over heads
            sl = slice(hd * DIM_HEAD, (hd + 1) * DIM_HEAD)
            qh, kh, vh = q[:, :, sl], k[:, :, sl], v[:, :, sl]  # (B, N, dh)
            dots = jnp.einsum('bnd,bmd->bnm', qh, kh,
                              preferred_element_type=jnp.float32)   # (B, N, N)
            attn = _softmax_lastdim(dots)
            oh = jnp.einsum('bnm,bmd->bnd', attn, vh,
                            preferred_element_type=jnp.float32)     # (B, N, dh)
            acc = acc + jnp.dot(oh.reshape(B * N, DIM_HEAD), w_out[sl, :],
                                preferred_element_type=jnp.float32)
        x = acc                                                 # attention out + residual

        # ---- PreNorm + FeedForward + residual -----------------------------
        h = _layer_norm(x, ln2w_ref[l], ln2b_ref[l])
        h1 = jnp.dot(h, wff1_ref[l],
                     preferred_element_type=jnp.float32) + bff1_ref[l]   # (B*N, MLP)
        h1 = _gelu_exact(h1)
        h2 = jnp.dot(h1, wff2_ref[l],
                     preferred_element_type=jnp.float32) + bff2_ref[l]   # (B*N, D)
        x = h2 + x                                              # residual

    o_ref[...] = x.astype(o_ref.dtype)


# Rough advisory cost for the XLA scheduler (per call, all layers).
_COST = pl.CostEstimate(flops=600_000, transcendentals=3_400, bytes_accessed=72_000)
_VMEM_SPEC = pl.BlockSpec(memory_space=pltpu.MemorySpace.VMEM)


@jax.jit
def transformer_forward(x, kparams):
    # kparams: kernel-ready parameters from prepare_params (scale already folded).
    x2 = x.reshape(B * N, DIM)                                  # fuse batch rows (XLA-side)

    out = pl.pallas_call(
        transformer_kernel,
        out_shape=jax.ShapeDtypeStruct((B * N, DIM), x.dtype),
        # No grid: single invocation, all operands fully VMEM-resident (~70 KB).
        in_specs=[_VMEM_SPEC] * 12,
        out_specs=_VMEM_SPEC,
        cost_estimate=_COST,
    )(x2, *kparams)

    return out.reshape(B, N, DIM)


# --------------------- deterministic parameter init -----------------------
def init_params(key):
    ks = jax.random.split(key, 8)
    s = 0.02
    ln1w = jnp.ones((DEPTH, DIM), DTYPE)
    ln1b = jnp.zeros((DEPTH, DIM), DTYPE)
    wqkv = (jax.random.normal(ks[0], (DEPTH, DIM, 3 * INNER)) * s).astype(DTYPE)
    wout = (jax.random.normal(ks[1], (DEPTH, INNER, DIM)) * s).astype(DTYPE)
    bout = (jax.random.normal(ks[2], (DEPTH, DIM)) * s).astype(DTYPE)
    ln2w = jnp.ones((DEPTH, DIM), DTYPE)
    ln2b = jnp.zeros((DEPTH, DIM), DTYPE)
    wff1 = (jax.random.normal(ks[3], (DEPTH, DIM, MLP_DIM)) * s).astype(DTYPE)
    bff1 = (jax.random.normal(ks[4], (DEPTH, MLP_DIM)) * s).astype(DTYPE)
    wff2 = (jax.random.normal(ks[5], (DEPTH, MLP_DIM, DIM)) * s).astype(DTYPE)
    bff2 = (jax.random.normal(ks[6], (DEPTH, DIM)) * s).astype(DTYPE)
    return (ln1w, ln1b, wqkv, wout, bout, ln2w, ln2b, wff1, bff1, wff2, bff2)


def prepare_params(params):
    """One-time (outside jit) kernel-side packing: fold SCALE into the Q columns."""
    (ln1w, ln1b, wqkv, wout, bout, ln2w, ln2b, wff1, bff1, wff2, bff2) = params
    scale_vec = jnp.concatenate([
        jnp.full((INNER,), SCALE, dtype=wqkv.dtype),
        jnp.ones((2 * INNER,), dtype=wqkv.dtype),
    ])
    wqkv_s = wqkv * scale_vec                                   # (DEPTH, DIM, 3*INNER)
    return (ln1w, ln1b, wqkv_s, wout, bout, ln2w, ln2b, wff1, bff1, wff2, bff2)


# ------------------------- pure-JAX reference ------------------------------
def transformer_ref(x, params):
    (ln1w, ln1b, wqkv, wout, bout, ln2w, ln2b, wff1, bff1, wff2, bff2) = params

    def ln(x, w, b):
        mean = jnp.mean(x, axis=-1, keepdims=True)
        var = jnp.mean((x - mean) ** 2, axis=-1, keepdims=True)
        return (x - mean) * jax.lax.rsqrt(var + LN_EPS) * w + b

    x = x.astype(jnp.float32)
    for l in range(DEPTH):
        h = ln(x, ln1w[l], ln1b[l])
        qkv = h @ wqkv[l]
        q, k, v = jnp.split(qkv, 3, axis=-1)
        q = q.reshape(B, N, HEADS, DIM_HEAD).transpose(0, 2, 1, 3)
        k = k.reshape(B, N, HEADS, DIM_HEAD).transpose(0, 2, 1, 3)
        v = v.reshape(B, N, HEADS, DIM_HEAD).transpose(0, 2, 1, 3)
        dots = jnp.einsum("bhnd,bhmd->bhnm", q, k) * SCALE
        attn = jax.nn.softmax(dots, axis=-1)
        out = jnp.einsum("bhnm,bhmd->bhnd", attn, v)
        out = out.transpose(0, 2, 1, 3).reshape(B, N, INNER)
        x = out @ wout[l] + bout[l] + x
        h = ln(x, ln2w[l], ln2b[l])
        x = _gelu_exact(h @ wff1[l] + bff1[l]) @ wff2[l] + bff2[l] + x
    return x


if __name__ == "__main__":
    key = jax.random.PRNGKey(0)
    kx, kp = jax.random.split(key)
    x = jax.random.normal(kx, (B, N, DIM), dtype=DTYPE)
    params = init_params(kp)

    # One-time, un-jitted parameter packing (scale folding) — not re-run per call.
    kparams = jax.block_until_ready(prepare_params(params))

    out = transformer_forward(x, kparams)
    out = jax.block_until_ready(out)

    ref = transformer_ref(x, params)
    assert out.shape == (B, N, DIM)
    assert jnp.allclose(out, ref, atol=1e-4, rtol=1e-4), "mismatch vs reference"

    print("KERNEL_OK")
</pallas_src>

<mosaic_0001>
module attributes {stable_mosaic.version = 11 : i64} {
  func.func @transformer_kernel(%arg0: memref<16x32xf32, #tpu.memory_space<vmem>>, %arg1: memref<2x32xf32, #tpu.memory_space<vmem>>, %arg2: memref<2x32xf32, #tpu.memory_space<vmem>>, %arg3: memref<2x32x96xf32, #tpu.memory_space<vmem>>, %arg4: memref<2x32x32xf32, #tpu.memory_space<vmem>>, %arg5: memref<2x32xf32, #tpu.memory_space<vmem>>, %arg6: memref<2x32xf32, #tpu.memory_space<vmem>>, %arg7: memref<2x32xf32, #tpu.memory_space<vmem>>, %arg8: memref<2x32x64xf32, #tpu.memory_space<vmem>>, %arg9: memref<2x64xf32, #tpu.memory_space<vmem>>, %arg10: memref<2x64x32xf32, #tpu.memory_space<vmem>>, %arg11: memref<2x32xf32, #tpu.memory_space<vmem>>, %arg12: memref<16x32xf32, #tpu.memory_space<vmem>>) attributes {dimension_semantics = [], scalar_prefetch = 0 : i64, scratch_operands = 0 : i64, tpu.core_type = #tpu.core_type<tc>} {
    %c0 = arith.constant 0 : index
    %c0_0 = arith.constant 0 : index
    %0 = vector.load %arg0[%c0, %c0_0] : memref<16x32xf32, #tpu.memory_space<vmem>>, vector<16x32xf32>
    %c0_1 = arith.constant 0 : index
    %c0_2 = arith.constant 0 : index
    %1 = vector.load %arg1[%c0_1, %c0_2] : memref<2x32xf32, #tpu.memory_space<vmem>>, vector<1x32xf32>
    %2 = vector.shape_cast %1 : vector<1x32xf32> to vector<32xf32>
    %c0_3 = arith.constant 0 : index
    %c0_4 = arith.constant 0 : index
    %3 = vector.load %arg2[%c0_3, %c0_4] : memref<2x32xf32, #tpu.memory_space<vmem>>, vector<1x32xf32>
    %4 = vector.shape_cast %3 : vector<1x32xf32> to vector<32xf32>
    %cst = arith.constant dense<0.000000e+00> : vector<16xf32>
    %5 = vector.multi_reduction <add>, %0, %cst [1] : vector<16x32xf32> to vector<16xf32>
    %6 = vector.shape_cast %5 : vector<16xf32> to vector<16x1xf32>
    %7 = arith.mulf %0, %0 : vector<16x32xf32>
    %cst_5 = arith.constant dense<0.000000e+00> : vector<16xf32>
    %8 = vector.multi_reduction <add>, %7, %cst_5 [1] : vector<16x32xf32> to vector<16xf32>
    %9 = vector.shape_cast %8 : vector<16xf32> to vector<16x1xf32>
    %cst_6 = arith.constant 3.125000e-02 : f32
    %10 = vector.broadcast %cst_6 : f32 to vector<16x1xf32>
    %11 = arith.mulf %6, %10 : vector<16x1xf32>
    %cst_7 = arith.constant 3.125000e-02 : f32
    %12 = vector.broadcast %cst_7 : f32 to vector<16x1xf32>
    %13 = arith.mulf %9, %12 : vector<16x1xf32>
    %14 = arith.mulf %11, %11 : vector<16x1xf32>
    %15 = arith.subf %13, %14 : vector<16x1xf32>
    %cst_8 = arith.constant 9.99999974E-6 : f32
    %16 = vector.broadcast %cst_8 : f32 to vector<16x1xf32>
    %17 = arith.addf %15, %16 : vector<16x1xf32>
    %18 = math.rsqrt %17 : vector<16x1xf32>
    %19 = vector.broadcast %11 : vector<16x1xf32> to vector<16x32xf32>
    %20 = arith.subf %0, %19 : vector<16x32xf32>
    %21 = vector.broadcast %18 : vector<16x1xf32> to vector<16x32xf32>
    %22 = arith.mulf %20, %21 : vector<16x32xf32>
    %23 = vector.shape_cast %2 : vector<32xf32> to vector<1x32xf32>
    %24 = vector.broadcast %23 : vector<1x32xf32> to vector<16x32xf32>
    %25 = arith.mulf %22, %24 : vector<16x32xf32>
    %26 = vector.shape_cast %4 : vector<32xf32> to vector<1x32xf32>
    %27 = vector.broadcast %26 : vector<1x32xf32> to vector<16x32xf32>
    %28 = arith.addf %25, %27 : vector<16x32xf32>
    %c0_9 = arith.constant 0 : index
    %c0_10 = arith.constant 0 : index
    %c0_11 = arith.constant 0 : index
    %29 = vector.load %arg3[%c0_9, %c0_10, %c0_11] : memref<2x32x96xf32, #tpu.memory_space<vmem>>, vector<1x32x96xf32>
    %30 = vector.shape_cast %29 : vector<1x32x96xf32> to vector<32x96xf32>
    %cst_12 = arith.constant dense<0.000000e+00> : vector<16x96xf32>
    %31 = tpu.matmul %28, %30, %cst_12 {dimension_numbers = #tpu.dot_dimension_numbers<[1], [0], [0], [1], [0, 0, 1, 1], [], []>} : vector<16x32xf32>, vector<32x96xf32>, vector<16x96xf32> -> vector<16x96xf32>
    %32 = vector.extract_strided_slice %31 {offsets = [0, 0], sizes = [16, 32], strides = [1, 1]} : vector<16x96xf32> to vector<16x32xf32>
    %33 = vector.shape_cast %32 : vector<16x32xf32> to vector<2x8x32xf32>
    %34 = vector.extract_strided_slice %31 {offsets = [0, 32], sizes = [16, 32], strides = [1, 1]} : vector<16x96xf32> to vector<16x32xf32>
    %35 = vector.shape_cast %34 : vector<16x32xf32> to vector<2x8x32xf32>
    %36 = vector.extract_strided_slice %31 {offsets = [0, 64], sizes = [16, 32], strides = [1, 1]} : vector<16x96xf32> to vector<16x32xf32>
    %37 = vector.shape_cast %36 : vector<16x32xf32> to vector<2x8x32xf32>
    %c0_13 = arith.constant 0 : index
    %c0_14 = arith.constant 0 : index
    %c0_15 = arith.constant 0 : index
    %38 = vector.load %arg4[%c0_13, %c0_14, %c0_15] : memref<2x32x32xf32, #tpu.memory_space<vmem>>, vector<1x32x32xf32>
    %39 = vector.shape_cast %38 : vector<1x32x32xf32> to vector<32x32xf32>
    %c0_16 = arith.constant 0 : index
    %c0_17 = arith.constant 0 : index
    %40 = vector.load %arg5[%c0_16, %c0_17] : memref<2x32xf32, #tpu.memory_space<vmem>>, vector<1x32xf32>
    %41 = vector.shape_cast %40 : vector<1x32xf32> to vector<32xf32>
    %42 = vector.shape_cast %41 : vector<32xf32> to vector<1x32xf32>
    %43 = vector.broadcast %42 : vector<1x32xf32> to vector<16x32xf32>
    %44 = arith.addf %0, %43 : vector<16x32xf32>
    %45 = vector.extract_strided_slice %33 {offsets = [0, 0, 0], sizes = [2, 8, 8], strides = [1, 1, 1]} : vector<2x8x32xf32> to vector<2x8x8xf32>
    %46 = vector.extract_strided_slice %35 {offsets = [0, 0, 0], sizes = [2, 8, 8], strides = [1, 1, 1]} : vector<2x8x32xf32> to vector<2x8x8xf32>
    %47 = vector.extract_strided_slice %37 {offsets = [0, 0, 0], sizes = [2, 8, 8], strides = [1, 1, 1]} : vector<2x8x32xf32> to vector<2x8x8xf32>
    "tpu.trace_start"() <{level = 10 : i32, message = "bnd,bmd->bnm"}> : () -> ()
    %cst_18 = arith.constant dense<0.000000e+00> : vector<2x8x8xf32>
    %48 = tpu.matmul %45, %46, %cst_18 {dimension_numbers = #tpu.dot_dimension_numbers<[2], [2], [1], [1], [0, 0, 0, 1, 1, 1], [0], [0]>} : vector<2x8x8xf32>, vector<2x8x8xf32>, vector<2x8x8xf32> -> vector<2x8x8xf32>
    "tpu.trace_stop"() : () -> ()
    %cst_19 = arith.constant dense<0xFF800000> : vector<2x8xf32>
    %49 = vector.multi_reduction <maximumf>, %48, %cst_19 [2] : vector<2x8x8xf32> to vector<2x8xf32>
    %50 = vector.shape_cast %49 : vector<2x8xf32> to vector<2x8x1xf32>
    %51 = vector.broadcast %50 : vector<2x8x1xf32> to vector<2x8x8xf32>
    %52 = arith.subf %48, %51 : vector<2x8x8xf32>
    %53 = math.exp %52 : vector<2x8x8xf32>
    %cst_20 = arith.constant dense<0.000000e+00> : vector<2x8xf32>
    %54 = vector.multi_reduction <add>, %53, %cst_20 [2] : vector<2x8x8xf32> to vector<2x8xf32>
    %55 = vector.shape_cast %54 : vector<2x8xf32> to vector<2x8x1xf32>
    %56 = tpu.reciprocal %55 {approx = true} : vector<2x8x1xf32> -> vector<2x8x1xf32>
    %57 = vector.broadcast %56 : vector<2x8x1xf32> to vector<2x8x8xf32>
    %58 = arith.mulf %53, %57 : vector<2x8x8xf32>
    "tpu.trace_start"() <{level = 10 : i32, message = "bnm,bmd->bnd"}> : () -> ()
    %cst_21 = arith.constant dense<0.000000e+00> : vector<2x8x8xf32>
    %59 = tpu.matmul %58, %47, %cst_21 {dimension_numbers = #tpu.dot_dimension_numbers<[2], [1], [1], [2], [0, 0, 0, 1, 1, 2], [0], [0]>} : vector<2x8x8xf32>, vector<2x8x8xf32>, vector<2x8x8xf32> -> vector<2x8x8xf32>
    "tpu.trace_stop"() : () -> ()
    %60 = vector.shape_cast %59 : vector<2x8x8xf32> to vector<16x8xf32>
    %61 = vector.extract_strided_slice %39 {offsets = [0, 0], sizes = [8, 32], strides = [1, 1]} : vector<32x32xf32> to vector<8x32xf32>
    %cst_22 = arith.constant dense<0.000000e+00> : vector<16x32xf32>
    %62 = tpu.matmul %60, %61, %cst_22 {dimension_numbers = #tpu.dot_dimension_numbers<[1], [0], [0], [1], [0, 0, 1, 1], [], []>} : vector<16x8xf32>, vector<8x32xf32>, vector<16x32xf32> -> vector<16x32xf32>
    %63 = arith.addf %44, %62 : vector<16x32xf32>
    %64 = vector.extract_strided_slice %33 {offsets = [0, 0, 8], sizes = [2, 8, 8], strides = [1, 1, 1]} : vector<2x8x32xf32> to vector<2x8x8xf32>
    %65 = vector.extract_strided_slice %35 {offsets = [0, 0, 8], sizes = [2, 8, 8], strides = [1, 1, 1]} : vector<2x8x32xf32> to vector<2x8x8xf32>
    %66 = vector.extract_strided_slice %37 {offsets = [0, 0, 8], sizes = [2, 8, 8], strides = [1, 1, 1]} : vector<2x8x32xf32> to vector<2x8x8xf32>
    "tpu.trace_start"() <{level = 10 : i32, message = "bnd,bmd->bnm"}> : () -> ()
    %cst_23 = arith.constant dense<0.000000e+00> : vector<2x8x8xf32>
    %67 = tpu.matmul %64, %65, %cst_23 {dimension_numbers = #tpu.dot_dimension_numbers<[2], [2], [1], [1], [0, 0, 0, 1, 1, 1], [0], [0]>} : vector<2x8x8xf32>, vector<2x8x8xf32>, vector<2x8x8xf32> -> vector<2x8x8xf32>
    "tpu.trace_stop"() : () -> ()
    %cst_24 = arith.constant dense<0xFF800000> : vector<2x8xf32>
    %68 = vector.multi_reduction <maximumf>, %67, %cst_24 [2] : vector<2x8x8xf32> to vector<2x8xf32>
    %69 = vector.shape_cast %68 : vector<2x8xf32> to vector<2x8x1xf32>
    %70 = vector.broadcast %69 : vector<2x8x1xf32> to vector<2x8x8xf32>
    %71 = arith.subf %67, %70 : vector<2x8x8xf32>
    %72 = math.exp %71 : vector<2x8x8xf32>
    %cst_25 = arith.constant dense<0.000000e+00> : vector<2x8xf32>
    %73 = vector.multi_reduction <add>, %72, %cst_25 [2] : vector<2x8x8xf32> to vector<2x8xf32>
    %74 = vector.shape_cast %73 : vector<2x8xf32> to vector<2x8x1xf32>
    %75 = tpu.reciprocal %74 {approx = true} : vector<2x8x1xf32> -> vector<2x8x1xf32>
    %76 = vector.broadcast %75 : vector<2x8x1xf32> to vector<2x8x8xf32>
    %77 = arith.mulf %72, %76 : vector<2x8x8xf32>
    "tpu.trace_start"() <{level = 10 : i32, message = "bnm,bmd->bnd"}> : () -> ()
    %cst_26 = arith.constant dense<0.000000e+00> : vector<2x8x8xf32>
    %78 = tpu.matmul %77, %66, %cst_26 {dimension_numbers = #tpu.dot_dimension_numbers<[2], [1], [1], [2], [0, 0, 0, 1, 1, 2], [0], [0]>} : vector<2x8x8xf32>, vector<2x8x8xf32>, vector<2x8x8xf32> -> vector<2x8x8xf32>
    "tpu.trace_stop"() : () -> ()
    %79 = vector.shape_cast %78 : vector<2x8x8xf32> to vector<16x8xf32>
    %80 = vector.extract_strided_slice %39 {offsets = [8, 0], sizes = [8, 32], strides = [1, 1]} : vector<32x32xf32> to vector<8x32xf32>
    %cst_27 = arith.constant dense<0.000000e+00> : vector<16x32xf32>
    %81 = tpu.matmul %79, %80, %cst_27 {dimension_numbers = #tpu.dot_dimension_numbers<[1], [0], [0], [1], [0, 0, 1, 1], [], []>} : vector<16x8xf32>, vector<8x32xf32>, vector<16x32xf32> -> vector<16x32xf32>
    %82 = arith.addf %63, %81 : vector<16x32xf32>
    %83 = vector.extract_strided_slice %33 {offsets = [0, 0, 16], sizes = [2, 8, 8], strides = [1, 1, 1]} : vector<2x8x32xf32> to vector<2x8x8xf32>
    %84 = vector.extract_strided_slice %35 {offsets = [0, 0, 16], sizes = [2, 8, 8], strides = [1, 1, 1]} : vector<2x8x32xf32> to vector<2x8x8xf32>
    %85 = vector.extract_strided_slice %37 {offsets = [0, 0, 16], sizes = [2, 8, 8], strides = [1, 1, 1]} : vector<2x8x32xf32> to vector<2x8x8xf32>
    "tpu.trace_start"() <{level = 10 : i32, message = "bnd,bmd->bnm"}> : () -> ()
    %cst_28 = arith.constant dense<0.000000e+00> : vector<2x8x8xf32>
    %86 = tpu.matmul %83, %84, %cst_28 {dimension_numbers = #tpu.dot_dimension_numbers<[2], [2], [1], [1], [0, 0, 0, 1, 1, 1], [0], [0]>} : vector<2x8x8xf32>, vector<2x8x8xf32>, vector<2x8x8xf32> -> vector<2x8x8xf32>
    "tpu.trace_stop"() : () -> ()
    %cst_29 = arith.constant dense<0xFF800000> : vector<2x8xf32>
    %87 = vector.multi_reduction <maximumf>, %86, %cst_29 [2] : vector<2x8x8xf32> to vector<2x8xf32>
    %88 = vector.shape_cast %87 : vector<2x8xf32> to vector<2x8x1xf32>
    %89 = vector.broadcast %88 : vector<2x8x1xf32> to vector<2x8x8xf32>
    %90 = arith.subf %86, %89 : vector<2x8x8xf32>
    %91 = math.exp %90 : vector<2x8x8xf32>
    %cst_30 = arith.constant dense<0.000000e+00> : vector<2x8xf32>
    %92 = vector.multi_reduction <add>, %91, %cst_30 [2] : vector<2x8x8xf32> to vector<2x8xf32>
    %93 = vector.shape_cast %92 : vector<2x8xf32> to vector<2x8x1xf32>
    %94 = tpu.reciprocal %93 {approx = true} : vector<2x8x1xf32> -> vector<2x8x1xf32>
    %95 = vector.broadcast %94 : vector<2x8x1xf32> to vector<2x8x8xf32>
    %96 = arith.mulf %91, %95 : vector<2x8x8xf32>
    "tpu.trace_start"() <{level = 10 : i32, message = "bnm,bmd->bnd"}> : () -> ()
    %cst_31 = arith.constant dense<0.000000e+00> : vector<2x8x8xf32>
    %97 = tpu.matmul %96, %85, %cst_31 {dimension_numbers = #tpu.dot_dimension_numbers<[2], [1], [1], [2], [0, 0, 0, 1, 1, 2], [0], [0]>} : vector<2x8x8xf32>, vector<2x8x8xf32>, vector<2x8x8xf32> -> vector<2x8x8xf32>
    "tpu.trace_stop"() : () -> ()
    %98 = vector.shape_cast %97 : vector<2x8x8xf32> to vector<16x8xf32>
    %99 = vector.extract_strided_slice %39 {offsets = [16, 0], sizes = [8, 32], strides = [1, 1]} : vector<32x32xf32> to vector<8x32xf32>
    %cst_32 = arith.constant dense<0.000000e+00> : vector<16x32xf32>
    %100 = tpu.matmul %98, %99, %cst_32 {dimension_numbers = #tpu.dot_dimension_numbers<[1], [0], [0], [1], [0, 0, 1, 1], [], []>} : vector<16x8xf32>, vector<8x32xf32>, vector<16x32xf32> -> vector<16x32xf32>
    %101 = arith.addf %82, %100 : vector<16x32xf32>
    %102 = vector.extract_strided_slice %33 {offsets = [0, 0, 24], sizes = [2, 8, 8], strides = [1, 1, 1]} : vector<2x8x32xf32> to vector<2x8x8xf32>
    %103 = vector.extract_strided_slice %35 {offsets = [0, 0, 24], sizes = [2, 8, 8], strides = [1, 1, 1]} : vector<2x8x32xf32> to vector<2x8x8xf32>
    %104 = vector.extract_strided_slice %37 {offsets = [0, 0, 24], sizes = [2, 8, 8], strides = [1, 1, 1]} : vector<2x8x32xf32> to vector<2x8x8xf32>
    "tpu.trace_start"() <{level = 10 : i32, message = "bnd,bmd->bnm"}> : () -> ()
    %cst_33 = arith.constant dense<0.000000e+00> : vector<2x8x8xf32>
    %105 = tpu.matmul %102, %103, %cst_33 {dimension_numbers = #tpu.dot_dimension_numbers<[2], [2], [1], [1], [0, 0, 0, 1, 1, 1], [0], [0]>} : vector<2x8x8xf32>, vector<2x8x8xf32>, vector<2x8x8xf32> -> vector<2x8x8xf32>
    "tpu.trace_stop"() : () -> ()
    %cst_34 = arith.constant dense<0xFF800000> : vector<2x8xf32>
    %106 = vector.multi_reduction <maximumf>, %105, %cst_34 [2] : vector<2x8x8xf32> to vector<2x8xf32>
    %107 = vector.shape_cast %106 : vector<2x8xf32> to vector<2x8x1xf32>
    %108 = vector.broadcast %107 : vector<2x8x1xf32> to vector<2x8x8xf32>
    %109 = arith.subf %105, %108 : vector<2x8x8xf32>
    %110 = math.exp %109 : vector<2x8x8xf32>
    %cst_35 = arith.constant dense<0.000000e+00> : vector<2x8xf32>
    %111 = vector.multi_reduction <add>, %110, %cst_35 [2] : vector<2x8x8xf32> to vector<2x8xf32>
    %112 = vector.shape_cast %111 : vector<2x8xf32> to vector<2x8x1xf32>
    %113 = tpu.reciprocal %112 {approx = true} : vector<2x8x1xf32> -> vector<2x8x1xf32>
    %114 = vector.broadcast %113 : vector<2x8x1xf32> to vector<2x8x8xf32>
    %115 = arith.mulf %110, %114 : vector<2x8x8xf32>
    "tpu.trace_start"() <{level = 10 : i32, message = "bnm,bmd->bnd"}> : () -> ()
    %cst_36 = arith.constant dense<0.000000e+00> : vector<2x8x8xf32>
    %116 = tpu.matmul %115, %104, %cst_36 {dimension_numbers = #tpu.dot_dimension_numbers<[2], [1], [1], [2], [0, 0, 0, 1, 1, 2], [0], [0]>} : vector<2x8x8xf32>, vector<2x8x8xf32>, vector<2x8x8xf32> -> vector<2x8x8xf32>
    "tpu.trace_stop"() : () -> ()
    %117 = vector.shape_cast %116 : vector<2x8x8xf32> to vector<16x8xf32>
    %118 = vector.extract_strided_slice %39 {offsets = [24, 0], sizes = [8, 32], strides = [1, 1]} : vector<32x32xf32> to vector<8x32xf32>
    %cst_37 = arith.constant dense<0.000000e+00> : vector<16x32xf32>
    %119 = tpu.matmul %117, %118, %cst_37 {dimension_numbers = #tpu.dot_dimension_numbers<[1], [0], [0], [1], [0, 0, 1, 1], [], []>} : vector<16x8xf32>, vector<8x32xf32>, vector<16x32xf32> -> vector<16x32xf32>
    %120 = arith.addf %101, %119 : vector<16x32xf32>
    %c0_38 = arith.constant 0 : index
    %c0_39 = arith.constant 0 : index
    %121 = vector.load %arg6[%c0_38, %c0_39] : memref<2x32xf32, #tpu.memory_space<vmem>>, vector<1x32xf32>
    %122 = vector.shape_cast %121 : vector<1x32xf32> to vector<32xf32>
    %c0_40 = arith.constant 0 : index
    %c0_41 = arith.constant 0 : index
    %123 = vector.load %arg7[%c0_40, %c0_41] : memref<2x32xf32, #tpu.memory_space<vmem>>, vector<1x32xf32>
    %124 = vector.shape_cast %123 : vector<1x32xf32> to vector<32xf32>
    %cst_42 = arith.constant dense<0.000000e+00> : vector<16xf32>
    %125 = vector.multi_reduction <add>, %120, %cst_42 [1] : vector<16x32xf32> to vector<16xf32>
    %126 = vector.shape_cast %125 : vector<16xf32> to vector<16x1xf32>
    %127 = arith.mulf %120, %120 : vector<16x32xf32>
    %cst_43 = arith.constant dense<0.000000e+00> : vector<16xf32>
    %128 = vector.multi_reduction <add>, %127, %cst_43 [1] : vector<16x32xf32> to vector<16xf32>
    %129 = vector.shape_cast %128 : vector<16xf32> to vector<16x1xf32>
    %cst_44 = arith.constant 3.125000e-02 : f32
    %130 = vector.broadcast %cst_44 : f32 to vector<16x1xf32>
    %131 = arith.mulf %126, %130 : vector<16x1xf32>
    %cst_45 = arith.constant 3.125000e-02 : f32
    %132 = vector.broadcast %cst_45 : f32 to vector<16x1xf32>
    %133 = arith.mulf %129, %132 : vector<16x1xf32>
    %134 = arith.mulf %131, %131 : vector<16x1xf32>
    %135 = arith.subf %133, %134 : vector<16x1xf32>
    %cst_46 = arith.constant 9.99999974E-6 : f32
    %136 = vector.broadcast %cst_46 : f32 to vector<16x1xf32>
    %137 = arith.addf %135, %136 : vector<16x1xf32>
    %138 = math.rsqrt %137 : vector<16x1xf32>
    %139 = vector.broadcast %131 : vector<16x1xf32> to vector<16x32xf32>
    %140 = arith.subf %120, %139 : vector<16x32xf32>
    %141 = vector.broadcast %138 : vector<16x1xf32> to vector<16x32xf32>
    %142 = arith.mulf %140, %141 : vector<16x32xf32>
    %143 = vector.shape_cast %122 : vector<32xf32> to vector<1x32xf32>
    %144 = vector.broadcast %143 : vector<1x32xf32> to vector<16x32xf32>
    %145 = arith.mulf %142, %144 : vector<16x32xf32>
    %146 = vector.shape_cast %124 : vector<32xf32> to vector<1x32xf32>
    %147 = vector.broadcast %146 : vector<1x32xf32> to vector<16x32xf32>
    %148 = arith.addf %145, %147 : vector<16x32xf32>
    %c0_47 = arith.constant 0 : index
    %c0_48 = arith.constant 0 : index
    %c0_49 = arith.constant 0 : index
    %149 = vector.load %arg8[%c0_47, %c0_48, %c0_49] : memref<2x32x64xf32, #tpu.memory_space<vmem>>, vector<1x32x64xf32>
    %150 = vector.shape_cast %149 : vector<1x32x64xf32> to vector<32x64xf32>
    %cst_50 = arith.constant dense<0.000000e+00> : vector<16x64xf32>
    %151 = tpu.matmul %148, %150, %cst_50 {dimension_numbers = #tpu.dot_dimension_numbers<[1], [0], [0], [1], [0, 0, 1, 1], [], []>} : vector<16x32xf32>, vector<32x64xf32>, vector<16x64xf32> -> vector<16x64xf32>
    %c0_51 = arith.constant 0 : index
    %c0_52 = arith.constant 0 : index
    %152 = vector.load %arg9[%c0_51, %c0_52] : memref<2x64xf32, #tpu.memory_space<vmem>>, vector<1x64xf32>
    %153 = vector.shape_cast %152 : vector<1x64xf32> to vector<64xf32>
    %154 = vector.shape_cast %153 : vector<64xf32> to vector<1x64xf32>
    %155 = vector.broadcast %154 : vector<1x64xf32> to vector<16x64xf32>
    %156 = arith.addf %151, %155 : vector<16x64xf32>
    %cst_53 = arith.constant 5.000000e-01 : f32
    %157 = vector.broadcast %cst_53 : f32 to vector<16x64xf32>
    %158 = arith.mulf %156, %157 : vector<16x64xf32>
    %cst_54 = arith.constant 2.000000e+00 : f32
    %159 = math.sqrt %cst_54 : f32
    %160 = vector.broadcast %159 : f32 to vector<16x64xf32>
    %161 = arith.divf %156, %160 : vector<16x64xf32>
    %162 = math.erf %161 : vector<16x64xf32>
    %cst_55 = arith.constant 1.000000e+00 : f32
    %163 = vector.broadcast %cst_55 : f32 to vector<16x64xf32>
    %164 = arith.addf %163, %162 : vector<16x64xf32>
    %165 = arith.mulf %158, %164 : vector<16x64xf32>
    %c0_56 = arith.constant 0 : index
    %c0_57 = arith.constant 0 : index
    %c0_58 = arith.constant 0 : index
    %166 = vector.load %arg10[%c0_56, %c0_57, %c0_58] : memref<2x64x32xf32, #tpu.memory_space<vmem>>, vector<1x64x32xf32>
    %167 = vector.shape_cast %166 : vector<1x64x32xf32> to vector<64x32xf32>
    %cst_59 = arith.constant dense<0.000000e+00> : vector<16x32xf32>
    %168 = tpu.matmul %165, %167, %cst_59 {dimension_numbers = #tpu.dot_dimension_numbers<[1], [0], [0], [1], [0, 0, 1, 1], [], []>} : vector<16x64xf32>, vector<64x32xf32>, vector<16x32xf32> -> vector<16x32xf32>
    %c0_60 = arith.constant 0 : index
    %c0_61 = arith.constant 0 : index
    %169 = vector.load %arg11[%c0_60, %c0_61] : memref<2x32xf32, #tpu.memory_space<vmem>>, vector<1x32xf32>
    %170 = vector.shape_cast %169 : vector<1x32xf32> to vector<32xf32>
    %171 = vector.shape_cast %170 : vector<32xf32> to vector<1x32xf32>
    %172 = vector.broadcast %171 : vector<1x32xf32> to vector<16x32xf32>
    %173 = arith.addf %168, %172 : vector<16x32xf32>
    %174 = arith.addf %173, %120 : vector<16x32xf32>
    %c1 = arith.constant 1 : index
    %c0_62 = arith.constant 0 : index
    %175 = vector.load %arg1[%c1, %c0_62] : memref<2x32xf32, #tpu.memory_space<vmem>>, vector<1x32xf32>
    %176 = vector.shape_cast %175 : vector<1x32xf32> to vector<32xf32>
    %c1_63 = arith.constant 1 : index
    %c0_64 = arith.constant 0 : index
    %177 = vector.load %arg2[%c1_63, %c0_64] : memref<2x32xf32, #tpu.memory_space<vmem>>, vector<1x32xf32>
    %178 = vector.shape_cast %177 : vector<1x32xf32> to vector<32xf32>
    %cst_65 = arith.constant dense<0.000000e+00> : vector<16xf32>
    %179 = vector.multi_reduction <add>, %174, %cst_65 [1] : vector<16x32xf32> to vector<16xf32>
    %180 = vector.shape_cast %179 : vector<16xf32> to vector<16x1xf32>
    %181 = arith.mulf %174, %174 : vector<16x32xf32>
    %cst_66 = arith.constant dense<0.000000e+00> : vector<16xf32>
    %182 = vector.multi_reduction <add>, %181, %cst_66 [1] : vector<16x32xf32> to vector<16xf32>
    %183 = vector.shape_cast %182 : vector<16xf32> to vector<16x1xf32>
    %cst_67 = arith.constant 3.125000e-02 : f32
    %184 = vector.broadcast %cst_67 : f32 to vector<16x1xf32>
    %185 = arith.mulf %180, %184 : vector<16x1xf32>
    %cst_68 = arith.constant 3.125000e-02 : f32
    %186 = vector.broadcast %cst_68 : f32 to vector<16x1xf32>
    %187 = arith.mulf %183, %186 : vector<16x1xf32>
    %188 = arith.mulf %185, %185 : vector<16x1xf32>
    %189 = arith.subf %187, %188 : vector<16x1xf32>
    %cst_69 = arith.constant 9.99999974E-6 : f32
    %190 = vector.broadcast %cst_69 : f32 to vector<16x1xf32>
    %191 = arith.addf %189, %190 : vector<16x1xf32>
    %192 = math.rsqrt %191 : vector<16x1xf32>
    %193 = vector.broadcast %185 : vector<16x1xf32> to vector<16x32xf32>
    %194 = arith.subf %174, %193 : vector<16x32xf32>
    %195 = vector.broadcast %192 : vector<16x1xf32> to vector<16x32xf32>
    %196 = arith.mulf %194, %195 : vector<16x32xf32>
    %197 = vector.shape_cast %176 : vector<32xf32> to vector<1x32xf32>
    %198 = vector.broadcast %197 : vector<1x32xf32> to vector<16x32xf32>
    %199 = arith.mulf %196, %198 : vector<16x32xf32>
    %200 = vector.shape_cast %178 : vector<32xf32> to vector<1x32xf32>
    %201 = vector.broadcast %200 : vector<1x32xf32> to vector<16x32xf32>
    %202 = arith.addf %199, %201 : vector<16x32xf32>
    %c1_70 = arith.constant 1 : index
    %c0_71 = arith.constant 0 : index
    %c0_72 = arith.constant 0 : index
    %203 = vector.load %arg3[%c1_70, %c0_71, %c0_72] : memref<2x32x96xf32, #tpu.memory_space<vmem>>, vector<1x32x96xf32>
    %204 = vector.shape_cast %203 : vector<1x32x96xf32> to vector<32x96xf32>
    %cst_73 = arith.constant dense<0.000000e+00> : vector<16x96xf32>
    %205 = tpu.matmul %202, %204, %cst_73 {dimension_numbers = #tpu.dot_dimension_numbers<[1], [0], [0], [1], [0, 0, 1, 1], [], []>} : vector<16x32xf32>, vector<32x96xf32>, vector<16x96xf32> -> vector<16x96xf32>
    %206 = vector.extract_strided_slice %205 {offsets = [0, 0], sizes = [16, 32], strides = [1, 1]} : vector<16x96xf32> to vector<16x32xf32>
    %207 = vector.shape_cast %206 : vector<16x32xf32> to vector<2x8x32xf32>
    %208 = vector.extract_strided_slice %205 {offsets = [0, 32], sizes = [16, 32], strides = [1, 1]} : vector<16x96xf32> to vector<16x32xf32>
    %209 = vector.shape_cast %208 : vector<16x32xf32> to vector<2x8x32xf32>
    %210 = vector.extract_strided_slice %205 {offsets = [0, 64], sizes = [16, 32], strides = [1, 1]} : vector<16x96xf32> to vector<16x32xf32>
    %211 = vector.shape_cast %210 : vector<16x32xf32> to vector<2x8x32xf32>
    %c1_74 = arith.constant 1 : index
    %c0_75 = arith.constant 0 : index
    %c0_76 = arith.constant 0 : index
    %212 = vector.load %arg4[%c1_74, %c0_75, %c0_76] : memref<2x32x32xf32, #tpu.memory_space<vmem>>, vector<1x32x32xf32>
    %213 = vector.shape_cast %212 : vector<1x32x32xf32> to vector<32x32xf32>
    %c1_77 = arith.constant 1 : index
    %c0_78 = arith.constant 0 : index
    %214 = vector.load %arg5[%c1_77, %c0_78] : memref<2x32xf32, #tpu.memory_space<vmem>>, vector<1x32xf32>
    %215 = vector.shape_cast %214 : vector<1x32xf32> to vector<32xf32>
    %216 = vector.shape_cast %215 : vector<32xf32> to vector<1x32xf32>
    %217 = vector.broadcast %216 : vector<1x32xf32> to vector<16x32xf32>
    %218 = arith.addf %174, %217 : vector<16x32xf32>
    %219 = vector.extract_strided_slice %207 {offsets = [0, 0, 0], sizes = [2, 8, 8], strides = [1, 1, 1]} : vector<2x8x32xf32> to vector<2x8x8xf32>
    %220 = vector.extract_strided_slice %209 {offsets = [0, 0, 0], sizes = [2, 8, 8], strides = [1, 1, 1]} : vector<2x8x32xf32> to vector<2x8x8xf32>
    %221 = vector.extract_strided_slice %211 {offsets = [0, 0, 0], sizes = [2, 8, 8], strides = [1, 1, 1]} : vector<2x8x32xf32> to vector<2x8x8xf32>
    "tpu.trace_start"() <{level = 10 : i32, message = "bnd,bmd->bnm"}> : () -> ()
    %cst_79 = arith.constant dense<0.000000e+00> : vector<2x8x8xf32>
    %222 = tpu.matmul %219, %220, %cst_79 {dimension_numbers = #tpu.dot_dimension_numbers<[2], [2], [1], [1], [0, 0, 0, 1, 1, 1], [0], [0]>} : vector<2x8x8xf32>, vector<2x8x8xf32>, vector<2x8x8xf32> -> vector<2x8x8xf32>
    "tpu.trace_stop"() : () -> ()
    %cst_80 = arith.constant dense<0xFF800000> : vector<2x8xf32>
    %223 = vector.multi_reduction <maximumf>, %222, %cst_80 [2] : vector<2x8x8xf32> to vector<2x8xf32>
    %224 = vector.shape_cast %223 : vector<2x8xf32> to vector<2x8x1xf32>
    %225 = vector.broadcast %224 : vector<2x8x1xf32> to vector<2x8x8xf32>
    %226 = arith.subf %222, %225 : vector<2x8x8xf32>
    %227 = math.exp %226 : vector<2x8x8xf32>
    %cst_81 = arith.constant dense<0.000000e+00> : vector<2x8xf32>
    %228 = vector.multi_reduction <add>, %227, %cst_81 [2] : vector<2x8x8xf32> to vector<2x8xf32>
    %229 = vector.shape_cast %228 : vector<2x8xf32> to vector<2x8x1xf32>
    %230 = tpu.reciprocal %229 {approx = true} : vector<2x8x1xf32> -> vector<2x8x1xf32>
    %231 = vector.broadcast %230 : vector<2x8x1xf32> to vector<2x8x8xf32>
    %232 = arith.mulf %227, %231 : vector<2x8x8xf32>
    "tpu.trace_start"() <{level = 10 : i32, message = "bnm,bmd->bnd"}> : () -> ()
    %cst_82 = arith.constant dense<0.000000e+00> : vector<2x8x8xf32>
    %233 = tpu.matmul %232, %221, %cst_82 {dimension_numbers = #tpu.dot_dimension_numbers<[2], [1], [1], [2], [0, 0, 0, 1, 1, 2], [0], [0]>} : vector<2x8x8xf32>, vector<2x8x8xf32>, vector<2x8x8xf32> -> vector<2x8x8xf32>
    "tpu.trace_stop"() : () -> ()
    %234 = vector.shape_cast %233 : vector<2x8x8xf32> to vector<16x8xf32>
    %235 = vector.extract_strided_slice %213 {offsets = [0, 0], sizes = [8, 32], strides = [1, 1]} : vector<32x32xf32> to vector<8x32xf32>
    %cst_83 = arith.constant dense<0.000000e+00> : vector<16x32xf32>
    %236 = tpu.matmul %234, %235, %cst_83 {dimension_numbers = #tpu.dot_dimension_numbers<[1], [0], [0], [1], [0, 0, 1, 1], [], []>} : vector<16x8xf32>, vector<8x32xf32>, vector<16x32xf32> -> vector<16x32xf32>
    %237 = arith.addf %218, %236 : vector<16x32xf32>
    %238 = vector.extract_strided_slice %207 {offsets = [0, 0, 8], sizes = [2, 8, 8], strides = [1, 1, 1]} : vector<2x8x32xf32> to vector<2x8x8xf32>
    %239 = vector.extract_strided_slice %209 {offsets = [0, 0, 8], sizes = [2, 8, 8], strides = [1, 1, 1]} : vector<2x8x32xf32> to vector<2x8x8xf32>
    %240 = vector.extract_strided_slice %211 {offsets = [0, 0, 8], sizes = [2, 8, 8], strides = [1, 1, 1]} : vector<2x8x32xf32> to vector<2x8x8xf32>
    "tpu.trace_start"() <{level = 10 : i32, message = "bnd,bmd->bnm"}> : () -> ()
    %cst_84 = arith.constant dense<0.000000e+00> : vector<2x8x8xf32>
    %241 = tpu.matmul %238, %239, %cst_84 {dimension_numbers = #tpu.dot_dimension_numbers<[2], [2], [1], [1], [0, 0, 0, 1, 1, 1], [0], [0]>} : vector<2x8x8xf32>, vector<2x8x8xf32>, vector<2x8x8xf32> -> vector<2x8x8xf32>
    "tpu.trace_stop"() : () -> ()
    %cst_85 = arith.constant dense<0xFF800000> : vector<2x8xf32>
    %242 = vector.multi_reduction <maximumf>, %241, %cst_85 [2] : vector<2x8x8xf32> to vector<2x8xf32>
    %243 = vector.shape_cast %242 : vector<2x8xf32> to vector<2x8x1xf32>
    %244 = vector.broadcast %243 : vector<2x8x1xf32> to vector<2x8x8xf32>
    %245 = arith.subf %241, %244 : vector<2x8x8xf32>
    %246 = math.exp %245 : vector<2x8x8xf32>
    %cst_86 = arith.constant dense<0.000000e+00> : vector<2x8xf32>
    %247 = vector.multi_reduction <add>, %246, %cst_86 [2] : vector<2x8x8xf32> to vector<2x8xf32>
    %248 = vector.shape_cast %247 : vector<2x8xf32> to vector<2x8x1xf32>
    %249 = tpu.reciprocal %248 {approx = true} : vector<2x8x1xf32> -> vector<2x8x1xf32>
    %250 = vector.broadcast %249 : vector<2x8x1xf32> to vector<2x8x8xf32>
    %251 = arith.mulf %246, %250 : vector<2x8x8xf32>
    "tpu.trace_start"() <{level = 10 : i32, message = "bnm,bmd->bnd"}> : () -> ()
    %cst_87 = arith.constant dense<0.000000e+00> : vector<2x8x8xf32>
    %252 = tpu.matmul %251, %240, %cst_87 {dimension_numbers = #tpu.dot_dimension_numbers<[2], [1], [1], [2], [0, 0, 0, 1, 1, 2], [0], [0]>} : vector<2x8x8xf32>, vector<2x8x8xf32>, vector<2x8x8xf32> -> vector<2x8x8xf32>
    "tpu.trace_stop"() : () -> ()
    %253 = vector.shape_cast %252 : vector<2x8x8xf32> to vector<16x8xf32>
    %254 = vector.extract_strided_slice %213 {offsets = [8, 0], sizes = [8, 32], strides = [1, 1]} : vector<32x32xf32> to vector<8x32xf32>
    %cst_88 = arith.constant dense<0.000000e+00> : vector<16x32xf32>
    %255 = tpu.matmul %253, %254, %cst_88 {dimension_numbers = #tpu.dot_dimension_numbers<[1], [0], [0], [1], [0, 0, 1, 1], [], []>} : vector<16x8xf32>, vector<8x32xf32>, vector<16x32xf32> -> vector<16x32xf32>
    %256 = arith.addf %237, %255 : vector<16x32xf32>
    %257 = vector.extract_strided_slice %207 {offsets = [0, 0, 16], sizes = [2, 8, 8], strides = [1, 1, 1]} : vector<2x8x32xf32> to vector<2x8x8xf32>
    %258 = vector.extract_strided_slice %209 {offsets = [0, 0, 16], sizes = [2, 8, 8], strides = [1, 1, 1]} : vector<2x8x32xf32> to vector<2x8x8xf32>
    %259 = vector.extract_strided_slice %211 {offsets = [0, 0, 16], sizes = [2, 8, 8], strides = [1, 1, 1]} : vector<2x8x32xf32> to vector<2x8x8xf32>
    "tpu.trace_start"() <{level = 10 : i32, message = "bnd,bmd->bnm"}> : () -> ()
    %cst_89 = arith.constant dense<0.000000e+00> : vector<2x8x8xf32>
    %260 = tpu.matmul %257, %258, %cst_89 {dimension_numbers = #tpu.dot_dimension_numbers<[2], [2], [1], [1], [0, 0, 0, 1, 1, 1], [0], [0]>} : vector<2x8x8xf32>, vector<2x8x8xf32>, vector<2x8x8xf32> -> vector<2x8x8xf32>
    "tpu.trace_stop"() : () -> ()
    %cst_90 = arith.constant dense<0xFF800000> : vector<2x8xf32>
    %261 = vector.multi_reduction <maximumf>, %260, %cst_90 [2] : vector<2x8x8xf32> to vector<2x8xf32>
    %262 = vector.shape_cast %261 : vector<2x8xf32> to vector<2x8x1xf32>
    %263 = vector.broadcast %262 : vector<2x8x1xf32> to vector<2x8x8xf32>
    %264 = arith.subf %260, %263 : vector<2x8x8xf32>
    %265 = math.exp %264 : vector<2x8x8xf32>
    %cst_91 = arith.constant dense<0.000000e+00> : vector<2x8xf32>
    %266 = vector.multi_reduction <add>, %265, %cst_91 [2] : vector<2x8x8xf32> to vector<2x8xf32>
    %267 = vector.shape_cast %266 : vector<2x8xf32> to vector<2x8x1xf32>
    %268 = tpu.reciprocal %267 {approx = true} : vector<2x8x1xf32> -> vector<2x8x1xf32>
    %269 = vector.broadcast %268 : vector<2x8x1xf32> to vector<2x8x8xf32>
    %270 = arith.mulf %265, %269 : vector<2x8x8xf32>
    "tpu.trace_start"() <{level = 10 : i32, message = "bnm,bmd->bnd"}> : () -> ()
    %cst_92 = arith.constant dense<0.000000e+00> : vector<2x8x8xf32>
    %271 = tpu.matmul %270, %259, %cst_92 {dimension_numbers = #tpu.dot_dimension_numbers<[2], [1], [1], [2], [0, 0, 0, 1, 1, 2], [0], [0]>} : vector<2x8x8xf32>, vector<2x8x8xf32>, vector<2x8x8xf32> -> vector<2x8x8xf32>
    "tpu.trace_stop"() : () -> ()
    %272 = vector.shape_cast %271 : vector<2x8x8xf32> to vector<16x8xf32>
    %273 = vector.extract_strided_slice %213 {offsets = [16, 0], sizes = [8, 32], strides = [1, 1]} : vector<32x32xf32> to vector<8x32xf32>
    %cst_93 = arith.constant dense<0.000000e+00> : vector<16x32xf32>
    %274 = tpu.matmul %272, %273, %cst_93 {dimension_numbers = #tpu.dot_dimension_numbers<[1], [0], [0], [1], [0, 0, 1, 1], [], []>} : vector<16x8xf32>, vector<8x32xf32>, vector<16x32xf32> -> vector<16x32xf32>
    %275 = arith.addf %256, %274 : vector<16x32xf32>
    %276 = vector.extract_strided_slice %207 {offsets = [0, 0, 24], sizes = [2, 8, 8], strides = [1, 1, 1]} : vector<2x8x32xf32> to vector<2x8x8xf32>
    %277 = vector.extract_strided_slice %209 {offsets = [0, 0, 24], sizes = [2, 8, 8], strides = [1, 1, 1]} : vector<2x8x32xf32> to vector<2x8x8xf32>
    %278 = vector.extract_strided_slice %211 {offsets = [0, 0, 24], sizes = [2, 8, 8], strides = [1, 1, 1]} : vector<2x8x32xf32> to vector<2x8x8xf32>
    "tpu.trace_start"() <{level = 10 : i32, message = "bnd,bmd->bnm"}> : () -> ()
    %cst_94 = arith.constant dense<0.000000e+00> : vector<2x8x8xf32>
    %279 = tpu.matmul %276, %277, %cst_94 {dimension_numbers = #tpu.dot_dimension_numbers<[2], [2], [1], [1], [0, 0, 0, 1, 1, 1], [0], [0]>} : vector<2x8x8xf32>, vector<2x8x8xf32>, vector<2x8x8xf32> -> vector<2x8x8xf32>
    "tpu.trace_stop"() : () -> ()
    %cst_95 = arith.constant dense<0xFF800000> : vector<2x8xf32>
    %280 = vector.multi_reduction <maximumf>, %279, %cst_95 [2] : vector<2x8x8xf32> to vector<2x8xf32>
    %281 = vector.shape_cast %280 : vector<2x8xf32> to vector<2x8x1xf32>
    %282 = vector.broadcast %281 : vector<2x8x1xf32> to vector<2x8x8xf32>
    %283 = arith.subf %279, %282 : vector<2x8x8xf32>
    %284 = math.exp %283 : vector<2x8x8xf32>
    %cst_96 = arith.constant dense<0.000000e+00> : vector<2x8xf32>
    %285 = vector.multi_reduction <add>, %284, %cst_96 [2] : vector<2x8x8xf32> to vector<2x8xf32>
    %286 = vector.shape_cast %285 : vector<2x8xf32> to vector<2x8x1xf32>
    %287 = tpu.reciprocal %286 {approx = true} : vector<2x8x1xf32> -> vector<2x8x1xf32>
    %288 = vector.broadcast %287 : vector<2x8x1xf32> to vector<2x8x8xf32>
    %289 = arith.mulf %284, %288 : vector<2x8x8xf32>
    "tpu.trace_start"() <{level = 10 : i32, message = "bnm,bmd->bnd"}> : () -> ()
    %cst_97 = arith.constant dense<0.000000e+00> : vector<2x8x8xf32>
    %290 = tpu.matmul %289, %278, %cst_97 {dimension_numbers = #tpu.dot_dimension_numbers<[2], [1], [1], [2], [0, 0, 0, 1, 1, 2], [0], [0]>} : vector<2x8x8xf32>, vector<2x8x8xf32>, vector<2x8x8xf32> -> vector<2x8x8xf32>
    "tpu.trace_stop"() : () -> ()
    %291 = vector.shape_cast %290 : vector<2x8x8xf32> to vector<16x8xf32>
    %292 = vector.extract_strided_slice %213 {offsets = [24, 0], sizes = [8, 32], strides = [1, 1]} : vector<32x32xf32> to vector<8x32xf32>
    %cst_98 = arith.constant dense<0.000000e+00> : vector<16x32xf32>
    %293 = tpu.matmul %291, %292, %cst_98 {dimension_numbers = #tpu.dot_dimension_numbers<[1], [0], [0], [1], [0, 0, 1, 1], [], []>} : vector<16x8xf32>, vector<8x32xf32>, vector<16x32xf32> -> vector<16x32xf32>
    %294 = arith.addf %275, %293 : vector<16x32xf32>
    %c1_99 = arith.constant 1 : index
    %c0_100 = arith.constant 0 : index
    %295 = vector.load %arg6[%c1_99, %c0_100] : memref<2x32xf32, #tpu.memory_space<vmem>>, vector<1x32xf32>
    %296 = vector.shape_cast %295 : vector<1x32xf32> to vector<32xf32>
    %c1_101 = arith.constant 1 : index
    %c0_102 = arith.constant 0 : index
    %297 = vector.load %arg7[%c1_101, %c0_102] : memref<2x32xf32, #tpu.memory_space<vmem>>, vector<1x32xf32>
    %298 = vector.shape_cast %297 : vector<1x32xf32> to vector<32xf32>
    %cst_103 = arith.constant dense<0.000000e+00> : vector<16xf32>
    %299 = vector.multi_reduction <add>, %294, %cst_103 [1] : vector<16x32xf32> to vector<16xf32>
    %300 = vector.shape_cast %299 : vector<16xf32> to vector<16x1xf32>
    %301 = arith.mulf %294, %294 : vector<16x32xf32>
    %cst_104 = arith.constant dense<0.000000e+00> : vector<16xf32>
    %302 = vector.multi_reduction <add>, %301, %cst_104 [1] : vector<16x32xf32> to vector<16xf32>
    %303 = vector.shape_cast %302 : vector<16xf32> to vector<16x1xf32>
    %cst_105 = arith.constant 3.125000e-02 : f32
    %304 = vector.broadcast %cst_105 : f32 to vector<16x1xf32>
    %305 = arith.mulf %300, %304 : vector<16x1xf32>
    %cst_106 = arith.constant 3.125000e-02 : f32
    %306 = vector.broadcast %cst_106 : f32 to vector<16x1xf32>
    %307 = arith.mulf %303, %306 : vector<16x1xf32>
    %308 = arith.mulf %305, %305 : vector<16x1xf32>
    %309 = arith.subf %307, %308 : vector<16x1xf32>
    %cst_107 = arith.constant 9.99999974E-6 : f32
    %310 = vector.broadcast %cst_107 : f32 to vector<16x1xf32>
    %311 = arith.addf %309, %310 : vector<16x1xf32>
    %312 = math.rsqrt %311 : vector<16x1xf32>
    %313 = vector.broadcast %305 : vector<16x1xf32> to vector<16x32xf32>
    %314 = arith.subf %294, %313 : vector<16x32xf32>
    %315 = vector.broadcast %312 : vector<16x1xf32> to vector<16x32xf32>
    %316 = arith.mulf %314, %315 : vector<16x32xf32>
    %317 = vector.shape_cast %296 : vector<32xf32> to vector<1x32xf32>
    %318 = vector.broadcast %317 : vector<1x32xf32> to vector<16x32xf32>
    %319 = arith.mulf %316, %318 : vector<16x32xf32>
    %320 = vector.shape_cast %298 : vector<32xf32> to vector<1x32xf32>
    %321 = vector.broadcast %320 : vector<1x32xf32> to vector<16x32xf32>
    %322 = arith.addf %319, %321 : vector<16x32xf32>
    %c1_108 = arith.constant 1 : index
    %c0_109 = arith.constant 0 : index
    %c0_110 = arith.constant 0 : index
    %323 = vector.load %arg8[%c1_108, %c0_109, %c0_110] : memref<2x32x64xf32, #tpu.memory_space<vmem>>, vector<1x32x64xf32>
    %324 = vector.shape_cast %323 : vector<1x32x64xf32> to vector<32x64xf32>
    %cst_111 = arith.constant dense<0.000000e+00> : vector<16x64xf32>
    %325 = tpu.matmul %322, %324, %cst_111 {dimension_numbers = #tpu.dot_dimension_numbers<[1], [0], [0], [1], [0, 0, 1, 1], [], []>} : vector<16x32xf32>, vector<32x64xf32>, vector<16x64xf32> -> vector<16x64xf32>
    %c1_112 = arith.constant 1 : index
    %c0_113 = arith.constant 0 : index
    %326 = vector.load %arg9[%c1_112, %c0_113] : memref<2x64xf32, #tpu.memory_space<vmem>>, vector<1x64xf32>
    %327 = vector.shape_cast %326 : vector<1x64xf32> to vector<64xf32>
    %328 = vector.shape_cast %327 : vector<64xf32> to vector<1x64xf32>
    %329 = vector.broadcast %328 : vector<1x64xf32> to vector<16x64xf32>
    %330 = arith.addf %325, %329 : vector<16x64xf32>
    %cst_114 = arith.constant 5.000000e-01 : f32
    %331 = vector.broadcast %cst_114 : f32 to vector<16x64xf32>
    %332 = arith.mulf %330, %331 : vector<16x64xf32>
    %cst_115 = arith.constant 2.000000e+00 : f32
    %333 = math.sqrt %cst_115 : f32
    %334 = vector.broadcast %333 : f32 to vector<16x64xf32>
    %335 = arith.divf %330, %334 : vector<16x64xf32>
    %336 = math.erf %335 : vector<16x64xf32>
    %cst_116 = arith.constant 1.000000e+00 : f32
    %337 = vector.broadcast %cst_116 : f32 to vector<16x64xf32>
    %338 = arith.addf %337, %336 : vector<16x64xf32>
    %339 = arith.mulf %332, %338 : vector<16x64xf32>
    %c1_117 = arith.constant 1 : index
    %c0_118 = arith.constant 0 : index
    %c0_119 = arith.constant 0 : index
    %340 = vector.load %arg10[%c1_117, %c0_118, %c0_119] : memref<2x64x32xf32, #tpu.memory_space<vmem>>, vector<1x64x32xf32>
    %341 = vector.shape_cast %340 : vector<1x64x32xf32> to vector<64x32xf32>
    %cst_120 = arith.constant dense<0.000000e+00> : vector<16x32xf32>
    %342 = tpu.matmul %339, %341, %cst_120 {dimension_numbers = #tpu.dot_dimension_numbers<[1], [0], [0], [1], [0, 0, 1, 1], [], []>} : vector<16x64xf32>, vector<64x32xf32>, vector<16x32xf32> -> vector<16x32xf32>
    %c1_121 = arith.constant 1 : index
    %c0_122 = arith.constant 0 : index
    %343 = vector.load %arg11[%c1_121, %c0_122] : memref<2x32xf32, #tpu.memory_space<vmem>>, vector<1x32xf32>
    %344 = vector.shape_cast %343 : vector<1x32xf32> to vector<32xf32>
    %345 = vector.shape_cast %344 : vector<32xf32> to vector<1x32xf32>
    %346 = vector.broadcast %345 : vector<1x32xf32> to vector<16x32xf32>
    %347 = arith.addf %342, %346 : vector<16x32xf32>
    %348 = arith.addf %347, %294 : vector<16x32xf32>
    %c0_123 = arith.constant 0 : index
    %c0_124 = arith.constant 0 : index
    %349 = vector.load %arg12[%c0_123, %c0_124] : memref<16x32xf32, #tpu.memory_space<vmem>>, vector<16x32xf32>
    tpu.vector_store %arg12[%c0_123, %c0_124], %348 {strides = array<i32>} : memref<16x32xf32, #tpu.memory_space<vmem>>, vector<16x32xf32>,
    return
  }
}

</mosaic_0001>

<llo_original>
// kernel: transformer_forward.1
$region0: #{transformer_forward.1}
  #allocation0 [shape = 'u32[]', space=smem, size = 0x4, offset = 0x4, fixed_abs, tag = 'smem constant byte address 0x4 - core index']
  #allocation1 [shape = 'u32[144,128]{1,0:T(1,128)}', space=vmem, size = 0x12000, scoped, tag = 'internal scratch']
  %s0 = inlined_call_operand.hbm [shape: f32[16,32], index: 0, kind: input, shape index: {}]
  %s1 = inlined_call_operand.vmem [shape: f32[2,32], index: 1, kind: input, shape index: {}]
  %s2 = inlined_call_operand.hbm [shape: f32[2,32], index: 2, kind: input, shape index: {}]
  %s3 = inlined_call_operand.vmem [shape: f32[2,32,96], index: 3, kind: input, shape index: {}]
  %s4 = inlined_call_operand.vmem [shape: f32[2,32,32], index: 4, kind: input, shape index: {}]
  %s5 = inlined_call_operand.vmem [shape: f32[2,32], index: 5, kind: input, shape index: {}]
  %s6 = inlined_call_operand.vmem [shape: f32[2,32], index: 6, kind: input, shape index: {}]
  %s7 = inlined_call_operand.vmem [shape: f32[2,32], index: 7, kind: input, shape index: {}]
  %s8 = inlined_call_operand.vmem [shape: f32[2,32,64], index: 8, kind: input, shape index: {}]
  %s9 = inlined_call_operand.vmem [shape: f32[2,64], index: 9, kind: input, shape index: {}]
  %s10 = inlined_call_operand.vmem [shape: f32[2,64,32], index: 10, kind: input, shape index: {}]
  %s11 = inlined_call_operand.vmem [shape: f32[2,32], index: 11, kind: input, shape index: {}]
  %s12 = inlined_call_operand.hbm [shape: f32[16,32], index: 12, kind: output, shape index: {}]
  %s13 = sld [smem:[#allocation0]]
  $region66: #{transformer_forward.1} parent=0
    _
  %s15 = ssub.s32 1, %s13
  %s16 = scalar_select 0, %s15, %s13
  $region1: #{transformer_forward.1} parent=0
    #allocation2 [shape = 'u8[8192]{0}', space=vmem, size = 0x2000, scoped, tag = 'input window, operand 0, single buffered']
    #allocation3 [shape = 's32[1]{0}', space=sflag, size = 0x4, scoped, tag = 'scoped memory for transformer_forward.1']
    #allocation4 [shape = 's32[1]{0}', space=sflag, size = 0x4, scoped, tag = 'scoped memory for transformer_forward.1']
    #allocation5 [shape = 'u8[1024]{0}', space=vmem, size = 0x400, scoped, tag = 'input window, operand 2, single buffered']
    #allocation6 [shape = 's32[1]{0}', space=sflag, size = 0x4, scoped, tag = 'scoped memory for transformer_forward.1']
    #allocation7 [shape = 'u8[8192]{0}', space=vmem, size = 0x2000, scoped, tag = 'output window, operand 0, single buffered']
    %17 = vsyncpa [#allocation3], 0
    %18 = vsyncpa [#allocation6], 0
    %19 = vsyncpa [#allocation4], 0
    // Predicated region
    $region2: #{transformer_forward.1} parent=1 // pred_check
      _
    $region3: #{transformer_forward.1} parent=1 // pred_check_branch
      %21 = sbr.rel (0) target = $region5
    $region4: #{transformer_forward.1} parent=1 // pred_region
      %s23 = ssub.s32 256, 256
      %24 = vsyncadd [#allocation3], %s23
      %s25 = sshll.u32 [#allocation2], 4
      %s26 = int_to_ptr.vmem [resolvable:$true] %s25
      %31 = dma.hbm_to_vmem [thread:$0]  %s0, 256, %s26, [#allocation3], 128, 128, 8
    $region5: #{transformer_forward.1} parent=1 // pred_fallthru
      _
    // Predicated region
    $region6: #{transformer_forward.1} parent=1 // pred_check
      _
    $region7: #{transformer_forward.1} parent=1 // pred_check_branch
      %33 = sbr.rel (0) target = $region9
    $region8: #{transformer_forward.1} parent=1 // pred_region
      _
    $region9: #{transformer_forward.1} parent=1 // pred_fallthru
      _
    // Predicated region
    $region10: #{transformer_forward.1} parent=1 // pred_check
      _
    $region11: #{transformer_forward.1} parent=1 // pred_check_branch
      %35 = sbr.rel (0) target = $region13
    $region12: #{transformer_forward.1} parent=1 // pred_region
      %s37 = ssub.s32 32, 32
      %38 = vsyncadd [#allocation6], %s37
      %s40 = sshll.u32 [#allocation5], 4
      %s41 = int_to_ptr.vmem [resolvable:$true] %s40
      %43 = dma.hbm_to_vmem [thread:$0]  %s2, 32, %s41, [#allocation6]
    $region13: #{transformer_forward.1} parent=1 // pred_fallthru
      _
    // Predicated region
    $region14: #{transformer_forward.1} parent=1 // pred_check
      _
    $region15: #{transformer_forward.1} parent=1 // pred_check_branch
      %45 = sbr.rel (0) target = $region17
    $region16: #{transformer_forward.1} parent=1 // pred_region
      _
    $region17: #{transformer_forward.1} parent=1 // pred_fallthru
      _
    // Predicated region
    $region18: #{transformer_forward.1} parent=1 // pred_check
      _
    $region19: #{transformer_forward.1} parent=1 // pred_check_branch
      %47 = sbr.rel (0) target = $region21
    $region20: #{transformer_forward.1} parent=1 // pred_region
      _
    $region21: #{transformer_forward.1} parent=1 // pred_fallthru
      _
    // Predicated region
    $region22: #{transformer_forward.1} parent=1 // pred_check
      _
    $region23: #{transformer_forward.1} parent=1 // pred_check_branch
      %49 = sbr.rel (0) target = $region25
    $region24: #{transformer_forward.1} parent=1 // pred_region
      _
    $region25: #{transformer_forward.1} parent=1 // pred_fallthru
      _
    // Predicated region
    $region26: #{transformer_forward.1} parent=1 // pred_check
      _
    $region27: #{transformer_forward.1} parent=1 // pred_check_branch
      %51 = sbr.rel (0) target = $region29
    $region28: #{transformer_forward.1} parent=1 // pred_region
      _
    $region29: #{transformer_forward.1} parent=1 // pred_fallthru
      _
    // Predicated region
    $region30: #{transformer_forward.1} parent=1 // pred_check
      _
    $region31: #{transformer_forward.1} parent=1 // pred_check_branch
      %53 = sbr.rel (0) target = $region33
    $region32: #{transformer_forward.1} parent=1 // pred_region
      _
    $region33: #{transformer_forward.1} parent=1 // pred_fallthru
      _
    // Predicated region
    $region34: #{transformer_forward.1} parent=1 // pred_check
      _
    $region35: #{transformer_forward.1} parent=1 // pred_check_branch
      %55 = sbr.rel (0) target = $region37
    $region36: #{transformer_forward.1} parent=1 // pred_region
      _
    $region37: #{transformer_forward.1} parent=1 // pred_fallthru
      _
    // Predicated region
    $region38: #{transformer_forward.1} parent=1 // pred_check
      _
    $region39: #{transformer_forward.1} parent=1 // pred_check_branch
      %57 = sbr.rel (0) target = $region41
    $region40: #{transformer_forward.1} parent=1 // pred_region
      _
    $region41: #{transformer_forward.1} parent=1 // pred_fallthru
      _
    // Predicated region
    $region42: #{transformer_forward.1} parent=1 // pred_check
      _
    $region43: #{transformer_forward.1} parent=1 // pred_check_branch
      %59 = sbr.rel (0) target = $region45
    $region44: #{transformer_forward.1} parent=1 // pred_region
      _
    $region45: #{transformer_forward.1} parent=1 // pred_fallthru
      _
    // Predicated region
    $region46: #{transformer_forward.1} parent=1 // pred_check
      _
    $region47: #{transformer_forward.1} parent=1 // pred_check_branch
      %61 = sbr.rel (0) target = $region49
    $region48: #{transformer_forward.1} parent=1 // pred_region
      _
    $region49: #{transformer_forward.1} parent=1 // pred_fallthru
      _
    // Predicated region
    $region50: #{transformer_forward.1} parent=1 // pred_check
      _
    $region51: #{transformer_forward.1} parent=1 // pred_check_branch
      %63 = sbr.rel (0) target = $region53
    $region52: #{transformer_forward.1} parent=1 // pred_region
      %64 = dma.done [#allocation3], 256
    $region53: #{transformer_forward.1} parent=1 // pred_fallthru
      _
    // Predicated region
    $region54: #{transformer_forward.1} parent=1 // pred_check
      _
    $region55: #{transformer_forward.1} parent=1 // pred_check_branch
      %66 = sbr.rel (0) target = $region57
    $region56: #{transformer_forward.1} parent=1 // pred_region
      %67 = dma.done [#allocation6], 32
    $region57: #{transformer_forward.1} parent=1 // pred_fallthru
      _
    %v68 = vld [vmem:[#allocation2] sm:$0xff]
    %v69 = vld [vmem:[#allocation2 + $0x8] sm:$0xff]
    %v70 = vld [vmem:[%s1] sm:$0x1]
    %v71 = vld [vmem:[#allocation5] sm:$0x1]
    %vm72 = vcmask 261120
    %v73 = vsel %vm72, %v68, 0.0
    %74 = vadd.xlane.f32.xlu0 %v73
    %v75 = vpop.xlane.xlu0 %74
    %v76 = vsel %vm72, %v69, 0.0
    %77 = vadd.xlane.f32.xlu0 %v76
    %v78 = vpop.xlane.xlu0 %77
    %v79 = vmul.f32 %v68, %v68
    %v80 = vmul.f32 %v69, %v69
    %v81 = vsel %vm72, %v79, 0.0
    %82 = vadd.xlane.f32.xlu0 %v81
    %v83 = vpop.xlane.xlu0 %82
    %v84 = vsel %vm72, %v80, 0.0
    %85 = vadd.xlane.f32.xlu0 %v84
    %v86 = vpop.xlane.xlu0 %85
    %v87 = vmul.f32 %v75, 0.03125
    %v88 = vmul.f32 %v78, 0.03125
    %v89 = vmul.f32 %v83, 0.03125
    %v90 = vmul.f32 %v86, 0.03125
    %v91 = vmul.f32 %v87, %v87
    %v92 = vmul.f32 %v88, %v88
    %v93 = vsub.f32 %v89, %v91
    %v94 = vsub.f32 %v90, %v92
    %v95 = vadd.f32 %v93, 1e-05
    %v96 = vadd.f32 %v94, 1e-05
    %v97 = vrsqrt.pop %v95
    %v98 = vrsqrt.pop %v96
    %v99 = vsub.f32 %v68, %v87
    %v100 = vsub.f32 %v69, %v88
    %v101 = vmul.f32 %v99, %v97
    %v102 = vmul.f32 %v100, %v98
    %v103 = vlaneseq
    %v104 = vshrl.u32 %v103, 7
    %v105 = vsub.s32 0, %v104
    %v106 = vrot.slane %v70, %v105
    %v107 = vmul.f32 %v101, %v106
    %v108 = vmul.f32 %v102, %v106
    %v109 = vlaneseq
    %v110 = vshrl.u32 %v109, 7
    %v111 = vsub.s32 0, %v110
    %v112 = vrot.slane %v71, %v111
    %v113 = vadd.f32 %v107, %v112
    %v114 = vadd.f32 %v108, %v112
    %v115 = vld [vmem:[%s3] sm:$0xff]
    %v116 = vld [vmem:[%s3 + $0x8] sm:$0xff]
    %v117 = vld [vmem:[%s3 + $0x10] sm:$0xff]
    %v118 = vld [vmem:[%s3 + $0x18] sm:$0xff]
    %v120 = vsel %vm72, %v113, 0
    %v123 = vsel %vm72, %v114, 0
    %125 = vmatprep.subr.mxu0 0.0
    %126 = vmatpush1.msra.mxu0 0.0
    %127 = vmatprep.subr.mxu0 0.0
    %128 = vmatpush1.msra.mxu0 0.0
    %129 = vmatprep.subr.mxu0 0.0
    %130 = vmatpush1.msra.mxu0 0.0
    %131 = vmatprep.subr.mxu0 0.0
    %132 = vmatpush1.msra.mxu0 0.0
    %133 = vmatprep.subr.mxu0 0.0
    %134 = vmatpush1.msra.mxu0 0.0
    %135 = vmatprep.subr.mxu0 0.0
    %136 = vmatpush1.msra.mxu0 0.0
    %137 = vmatprep.subr.mxu0 0.0
    %138 = vmatpush1.msra.mxu0 0.0
    %139 = vmatprep.subr.mxu0 0.0
    %140 = vmatpush1.msra.mxu0 0.0
    %141 = vmatprep.subr.mxu0 0.0
    %142 = vmatpush1.msra.mxu0 0.0
    %143 = vmatprep.subr.mxu0 0.0
    %144 = vmatpush1.msra.mxu0 0.0
    %145 = vmatprep.subr.mxu0 0.0
    %146 = vmatpush1.msra.mxu0 0.0
    %147 = vmatprep.subr.mxu0 0.0
    %148 = vmatpush1.msra.mxu0 0.0
    %149 = vmatprep.subr.mxu0 0.0
    %150 = vmatpush1.msra.mxu0 %v118
    %151 = vmatprep.subr.mxu0 0.0
    %152 = vmatpush1.msra.mxu0 %v117
    %153 = vmatprep.subr.mxu0 0.0
    %154 = vmatpush1.msra.mxu0 %v116
    %155 = vmatprep.subr.mxu0 0.0
    %156 = vmatpush1.msra.mxu0 %v115
    %157 = vmatprep.subr.mxu0 0.0
    %158 = vmatpush2.msra.mxu0 0.0
    %159 = vmatprep.subr.mxu0 0.0
    %160 = vmatpush2.msra.mxu0 0.0
    %161 = vmatprep.subr.mxu0 0.0
    %162 = vmatpush2.msra.mxu0 0.0
    %163 = vmatprep.subr.mxu0 0.0
    %164 = vmatpush2.msra.mxu0 0.0
    %165 = vmatprep.subr.mxu0 0.0
    %166 = vmatpush2.msra.mxu0 0.0
    %167 = vmatprep.subr.mxu0 0.0
    %168 = vmatpush2.msra.mxu0 0.0
    %169 = vmatprep.subr.mxu0 0.0
    %170 = vmatpush2.msra.mxu0 0.0
    %171 = vmatprep.subr.mxu0 0.0
    %172 = vmatpush2.msra.mxu0 0.0
    %173 = vmatprep.subr.mxu0 0.0
    %174 = vmatpush2.msra.mxu0 0.0
    %175 = vmatprep.subr.mxu0 0.0
    %176 = vmatpush2.msra.mxu0 0.0
    %177 = vmatprep.subr.mxu0 0.0
    %178 = vmatpush2.msra.mxu0 0.0
    %179 = vmatprep.subr.mxu0 0.0
    %180 = vmatpush2.msra.mxu0 0.0
    %181 = vmatprep.subr.mxu0 0.0
    %182 = vmatpush2.msra.mxu0 0.0
    %183 = vmatprep.subr.mxu0 0.0
    %184 = vmatpush2.msra.mxu0 0.0
    %185 = vmatprep.subr.mxu0 0.0
    %186 = vmatpush2.msra.mxu0 0.0
    %187 = vmatprep.subr.mxu0 0.0
    %188 = vmatpush2.msra.mxu0 0.0
    %189 = vmatprep.mubr.f32.mxu0 0.0
    %190 = vmatmul.mubr.f32.gmra.mxu0 %v120
    %v191 = vpop.f32.mrf.mxu0
    %v192 = vadd.f32 0.0, %v191
    %v193 = vpop.f32.mrf.mxu0
    %194 = vmatprep.mubr.f32.mxu0 0.0
    %195 = vmatmul.mubr.f32.gmra.mxu0 %v123
    %v196 = vpop.f32.mrf.mxu0
    %v197 = vadd.f32 0.0, %v196
    %v198 = vpop.f32.mrf.mxu0
    %199 = vdwg.mxu0
    %v200 = vld [vmem:[%s4] sm:$0xff]
    %v201 = vld [vmem:[%s4 + $0x8] sm:$0xff]
    %v202 = vld [vmem:[%s4 + $0x10] sm:$0xff]
    %v203 = vld [vmem:[%s4 + $0x18] sm:$0xff]
    %v204 = vld [vmem:[%s5] sm:$0x1]
    %v205 = vlaneseq
    %v206 = vshrl.u32 %v205, 7
    %v207 = vsub.s32 0, %v206
    %v208 = vrot.slane %v204, %v207
    %v209 = vadd.f32 %v68, %v208
    %v210 = vadd.f32 %v69, %v208
    %212 = vrot.lane.b32.xlu0 %v192, 96
    %v213 = vpop.permute.xlu0 %212
    %vm214 = vcmask 64512
    %v215 = vsel %vm214, %v192, 0
    %v217 = vsel %vm214, %v213, 0
    %219 = vmatprep.subr.mxu0 0.0
    %220 = vmatpush1.xpose.msra.mxu0 0.0
    %221 = vmatprep.subr.mxu0 0.0
    %222 = vmatpush1.xpose.msra.mxu0 0.0
    %223 = vmatprep.subr.mxu0 0.0
    %224 = vmatpush1.xpose.msra.mxu0 0.0
    %225 = vmatprep.subr.mxu0 0.0
    %226 = vmatpush1.xpose.msra.mxu0 0.0
    %227 = vmatprep.subr.mxu0 0.0
    %228 = vmatpush1.xpose.msra.mxu0 0.0
    %229 = vmatprep.subr.mxu0 0.0
    %230 = vmatpush1.xpose.msra.mxu0 0.0
    %231 = vmatprep.subr.mxu0 0.0
    %232 = vmatpush1.xpose.msra.mxu0 0.0
    %233 = vmatprep.subr.mxu0 0.0
    %234 = vmatpush1.xpose.msra.mxu0 0.0
    %235 = vmatprep.subr.mxu0 0.0
    %236 = vmatpush1.xpose.msra.mxu0 0.0
    %237 = vmatprep.subr.mxu0 0.0
    %238 = vmatpush1.xpose.msra.mxu0 0.0
    %239 = vmatprep.subr.mxu0 0.0
    %240 = vmatpush1.xpose.msra.mxu0 0.0
    %241 = vmatprep.subr.mxu0 0.0
    %242 = vmatpush1.xpose.msra.mxu0 0.0
    %243 = vmatprep.subr.mxu0 0.0
    %244 = vmatpush1.xpose.msra.mxu0 0.0
    %245 = vmatprep.subr.mxu0 0.0
    %246 = vmatpush1.xpose.msra.mxu0 0.0
    %247 = vmatprep.subr.mxu0 0.0
    %248 = vmatpush1.xpose.msra.mxu0 0.0
    %249 = vmatprep.subr.mxu0 0.0
    %250 = vmatpush1.xpose.msra.mxu0 %v217
    %251 = vmatprep.subr.mxu0 0.0
    %252 = vmatpush2.xpose.msra.mxu0 0.0
    %253 = vmatprep.subr.mxu0 0.0
    %254 = vmatpush2.xpose.msra.mxu0 0.0
    %255 = vmatprep.subr.mxu0 0.0
    %256 = vmatpush2.xpose.msra.mxu0 0.0
    %257 = vmatprep.subr.mxu0 0.0
    %258 = vmatpush2.xpose.msra.mxu0 0.0
    %259 = vmatprep.subr.mxu0 0.0
    %260 = vmatpush2.xpose.msra.mxu0 0.0
    %261 = vmatprep.subr.mxu0 0.0
    %262 = vmatpush2.xpose.msra.mxu0 0.0
    %263 = vmatprep.subr.mxu0 0.0
    %264 = vmatpush2.xpose.msra.mxu0 0.0
    %265 = vmatprep.subr.mxu0 0.0
    %266 = vmatpush2.xpose.msra.mxu0 0.0
    %267 = vmatprep.subr.mxu0 0.0
    %268 = vmatpush2.xpose.msra.mxu0 0.0
    %269 = vmatprep.subr.mxu0 0.0
    %270 = vmatpush2.xpose.msra.mxu0 0.0
    %271 = vmatprep.subr.mxu0 0.0
    %272 = vmatpush2.xpose.msra.mxu0 0.0
    %273 = vmatprep.subr.mxu0 0.0
    %274 = vmatpush2.xpose.msra.mxu0 0.0
    %275 = vmatprep.subr.mxu0 0.0
    %276 = vmatpush2.xpose.msra.mxu0 0.0
    %277 = vmatprep.subr.mxu0 0.0
    %278 = vmatpush2.xpose.msra.mxu0 0.0
    %279 = vmatprep.subr.mxu0 0.0
    %280 = vmatpush2.xpose.msra.mxu0 0.0
    %281 = vmatprep.subr.mxu0 0.0
    %282 = vmatpush2.xpose.msra.mxu0 0.0
    %283 = vmatprep.mubr.f32.mxu0 0.0
    %284 = vmatmul.mubr.f32.gmra.mxu0 %v215
    %v285 = vpop.f32.mrf.mxu0
    %v286 = vadd.f32 0.0, %v285
    %v287 = vpop.f32.mrf.mxu0
    %288 = vdwg.mxu0
    %290 = vrot.lane.b32.xlu0 %v197, 96
    %v291 = vpop.permute.xlu0 %290
    %v292 = vsel %vm214, %v197, 0
    %v294 = vsel %vm214, %v291, 0
    %296 = vmatprep.subr.mxu0 0.0
    %297 = vmatpush1.xpose.msra.mxu0 0.0
    %298 = vmatprep.subr.mxu0 0.0
    %299 = vmatpush1.xpose.msra.mxu0 0.0
    %300 = vmatprep.subr.mxu0 0.0
    %301 = vmatpush1.xpose.msra.mxu0 0.0
    %302 = vmatprep.subr.mxu0 0.0
    %303 = vmatpush1.xpose.msra.mxu0 0.0
    %304 = vmatprep.subr.mxu0 0.0
    %305 = vmatpush1.xpose.msra.mxu0 0.0
    %306 = vmatprep.subr.mxu0 0.0
    %307 = vmatpush1.xpose.msra.mxu0 0.0
    %308 = vmatprep.subr.mxu0 0.0
    %309 = vmatpush1.xpose.msra.mxu0 0.0
    %310 = vmatprep.subr.mxu0 0.0
    %311 = vmatpush1.xpose.msra.mxu0 0.0
    %312 = vmatprep.subr.mxu0 0.0
    %313 = vmatpush1.xpose.msra.mxu0 0.0
    %314 = vmatprep.subr.mxu0 0.0
    %315 = vmatpush1.xpose.msra.mxu0 0.0
    %316 = vmatprep.subr.mxu0 0.0
    %317 = vmatpush1.xpose.msra.mxu0 0.0
    %318 = vmatprep.subr.mxu0 0.0
    %319 = vmatpush1.xpose.msra.mxu0 0.0
    %320 = vmatprep.subr.mxu0 0.0
    %321 = vmatpush1.xpose.msra.mxu0 0.0
    %322 = vmatprep.subr.mxu0 0.0
    %323 = vmatpush1.xpose.msra.mxu0 0.0
    %324 = vmatprep.subr.mxu0 0.0
    %325 = vmatpush1.xpose.msra.mxu0 0.0
    %326 = vmatprep.subr.mxu0 0.0
    %327 = vmatpush1.xpose.msra.mxu0 %v294
    %328 = vmatprep.subr.mxu0 0.0
    %329 = vmatpush2.xpose.msra.mxu0 0.0
    %330 = vmatprep.subr.mxu0 0.0
    %331 = vmatpush2.xpose.msra.mxu0 0.0
    %332 = vmatprep.subr.mxu0 0.0
    %333 = vmatpush2.xpose.msra.mxu0 0.0
    %334 = vmatprep.subr.mxu0 0.0
    %335 = vmatpush2.xpose.msra.mxu0 0.0
    %336 = vmatprep.subr.mxu0 0.0
    %337 = vmatpush2.xpose.msra.mxu0 0.0
    %338 = vmatprep.subr.mxu0 0.0
    %339 = vmatpush2.xpose.msra.mxu0 0.0
    %340 = vmatprep.subr.mxu0 0.0
    %341 = vmatpush2.xpose.msra.mxu0 0.0
    %342 = vmatprep.subr.mxu0 0.0
    %343 = vmatpush2.xpose.msra.mxu0 0.0
    %344 = vmatprep.subr.mxu0 0.0
    %345 = vmatpush2.xpose.msra.mxu0 0.0
    %346 = vmatprep.subr.mxu0 0.0
    %347 = vmatpush2.xpose.msra.mxu0 0.0
    %348 = vmatprep.subr.mxu0 0.0
    %349 = vmatpush2.xpose.msra.mxu0 0.0
    %350 = vmatprep.subr.mxu0 0.0
    %351 = vmatpush2.xpose.msra.mxu0 0.0
    %352 = vmatprep.subr.mxu0 0.0
    %353 = vmatpush2.xpose.msra.mxu0 0.0
    %354 = vmatprep.subr.mxu0 0.0
    %355 = vmatpush2.xpose.msra.mxu0 0.0
    %356 = vmatprep.subr.mxu0 0.0
    %357 = vmatpush2.xpose.msra.mxu0 0.0
    %358 = vmatprep.subr.mxu0 0.0
    %359 = vmatpush2.xpose.msra.mxu0 0.0
    %360 = vmatprep.mubr.f32.mxu0 0.0
    %361 = vmatmul.mubr.f32.gmra.mxu0 %v292
    %v362 = vpop.f32.mrf.mxu0
    %v363 = vadd.f32 0.0, %v362
    %v364 = vpop.f32.mrf.mxu0
    %365 = vdwg.mxu0
    %v366 = vsel %vm214, %v286, -inf
    %367 = vmax.xlane.f32.xlu0 %v366
    %v368 = vpop.xlane.xlu0 %367
    %v369 = vsel %vm214, %v363, -inf
    %370 = vmax.xlane.f32.xlu0 %v369
    %v371 = vpop.xlane.xlu0 %370
    %v372 = vsub.f32 %v286, %v368
    %v373 = vsub.f32 %v363, %v371
    %v374 = vmul.f32 %v372, 1.442695
    %v375 = vpow.pop %v374
    %v376 = vmul.f32 %v373, 1.442695
    %v377 = vpow.pop %v376
    %v378 = vsel %vm214, %v375, 0.0
    %379 = vadd.xlane.f32.xlu0 %v378
    %v380 = vpop.xlane.xlu0 %379
    %v381 = vsel %vm214, %v377, 0.0
    %382 = vadd.xlane.f32.xlu0 %v381
    %v383 = vpop.xlane.xlu0 %382
    %v384 = vrcp.pop %v380
    %v385 = vrcp.pop %v383
    %v386 = vmul.f32 %v375, %v384
    %v387 = vmul.f32 %v377, %v385
    %388 = vrot.lane.b32.xlu0 %v192, 64
    %v389 = vpop.permute.xlu0 %388
    %v392 = vsel %vm214, %v386, 0
    %394 = vmatprep.subr.mxu0 0.0
    %395 = vmatpush1.msra.mxu0 0.0
    %396 = vmatprep.subr.mxu0 0.0
    %397 = vmatpush1.msra.mxu0 0.0
    %398 = vmatprep.subr.mxu0 0.0
    %399 = vmatpush1.msra.mxu0 0.0
    %400 = vmatprep.subr.mxu0 0.0
    %401 = vmatpush1.msra.mxu0 0.0
    %402 = vmatprep.subr.mxu0 0.0
    %403 = vmatpush1.msra.mxu0 0.0
    %404 = vmatprep.subr.mxu0 0.0
    %405 = vmatpush1.msra.mxu0 0.0
    %406 = vmatprep.subr.mxu0 0.0
    %407 = vmatpush1.msra.mxu0 0.0
    %408 = vmatprep.subr.mxu0 0.0
    %409 = vmatpush1.msra.mxu0 0.0
    %410 = vmatprep.subr.mxu0 0.0
    %411 = vmatpush1.msra.mxu0 0.0
    %412 = vmatprep.subr.mxu0 0.0
    %413 = vmatpush1.msra.mxu0 0.0
    %414 = vmatprep.subr.mxu0 0.0
    %415 = vmatpush1.msra.mxu0 0.0
    %416 = vmatprep.subr.mxu0 0.0
    %417 = vmatpush1.msra.mxu0 0.0
    %418 = vmatprep.subr.mxu0 0.0
    %419 = vmatpush1.msra.mxu0 0.0
    %420 = vmatprep.subr.mxu0 0.0
    %421 = vmatpush1.msra.mxu0 0.0
    %422 = vmatprep.subr.mxu0 0.0
    %423 = vmatpush1.msra.mxu0 0.0
    %424 = vmatprep.subr.mxu0 0.0
    %425 = vmatpush1.msra.mxu0 %v389
    %426 = vmatprep.subr.mxu0 0.0
    %427 = vmatpush2.msra.mxu0 0.0
    %428 = vmatprep.subr.mxu0 0.0
    %429 = vmatpush2.msra.mxu0 0.0
    %430 = vmatprep.subr.mxu0 0.0
    %431 = vmatpush2.msra.mxu0 0.0
    %432 = vmatprep.subr.mxu0 0.0
    %433 = vmatpush2.msra.mxu0 0.0
    %434 = vmatprep.subr.mxu0 0.0
    %435 = vmatpush2.msra.mxu0 0.0
    %436 = vmatprep.subr.mxu0 0.0
    %437 = vmatpush2.msra.mxu0 0.0
    %438 = vmatprep.subr.mxu0 0.0
    %439 = vmatpush2.msra.mxu0 0.0
    %440 = vmatprep.subr.mxu0 0.0
    %441 = vmatpush2.msra.mxu0 0.0
    %442 = vmatprep.subr.mxu0 0.0
    %443 = vmatpush2.msra.mxu0 0.0
    %444 = vmatprep.subr.mxu0 0.0
    %445 = vmatpush2.msra.mxu0 0.0
    %446 = vmatprep.subr.mxu0 0.0
    %447 = vmatpush2.msra.mxu0 0.0
    %448 = vmatprep.subr.mxu0 0.0
    %449 = vmatpush2.msra.mxu0 0.0
    %450 = vmatprep.subr.mxu0 0.0
    %451 = vmatpush2.msra.mxu0 0.0
    %452 = vmatprep.subr.mxu0 0.0
    %453 = vmatpush2.msra.mxu0 0.0
    %454 = vmatprep.subr.mxu0 0.0
    %455 = vmatpush2.msra.mxu0 0.0
    %456 = vmatprep.subr.mxu0 0.0
    %457 = vmatpush2.msra.mxu0 0.0
    %458 = vmatprep.mubr.f32.mxu0 0.0
    %459 = vmatmul.mubr.f32.gmra.mxu0 %v392
    %v460 = vpop.f32.mrf.mxu0
    %v461 = vadd.f32 0.0, %v460
    %v462 = vpop.f32.mrf.mxu0
    %463 = vdwg.mxu0
    %464 = vrot.lane.b32.xlu0 %v197, 64
    %v465 = vpop.permute.xlu0 %464
    %v468 = vsel %vm214, %v387, 0
    %470 = vmatprep.subr.mxu0 0.0
    %471 = vmatpush1.msra.mxu0 0.0
    %472 = vmatprep.subr.mxu0 0.0
    %473 = vmatpush1.msra.mxu0 0.0
    %474 = vmatprep.subr.mxu0 0.0
    %475 = vmatpush1.msra.mxu0 0.0
    %476 = vmatprep.subr.mxu0 0.0
    %477 = vmatpush1.msra.mxu0 0.0
    %478 = vmatprep.subr.mxu0 0.0
    %479 = vmatpush1.msra.mxu0 0.0
    %480 = vmatprep.subr.mxu0 0.0
    %481 = vmatpush1.msra.mxu0 0.0
    %482 = vmatprep.subr.mxu0 0.0
    %483 = vmatpush1.msra.mxu0 0.0
    %484 = vmatprep.subr.mxu0 0.0
    %485 = vmatpush1.msra.mxu0 0.0
    %486 = vmatprep.subr.mxu0 0.0
    %487 = vmatpush1.msra.mxu0 0.0
    %488 = vmatprep.subr.mxu0 0.0
    %489 = vmatpush1.msra.mxu0 0.0
    %490 = vmatprep.subr.mxu0 0.0
    %491 = vmatpush1.msra.mxu0 0.0
    %492 = vmatprep.subr.mxu0 0.0
    %493 = vmatpush1.msra.mxu0 0.0
    %494 = vmatprep.subr.mxu0 0.0
    %495 = vmatpush1.msra.mxu0 0.0
    %496 = vmatprep.subr.mxu0 0.0
    %497 = vmatpush1.msra.mxu0 0.0
    %498 = vmatprep.subr.mxu0 0.0
    %499 = vmatpush1.msra.mxu0 0.0
    %500 = vmatprep.subr.mxu0 0.0
    %501 = vmatpush1.msra.mxu0 %v465
    %502 = vmatprep.subr.mxu0 0.0
    %503 = vmatpush2.msra.mxu0 0.0
    %504 = vmatprep.subr.mxu0 0.0
    %505 = vmatpush2.msra.mxu0 0.0
    %506 = vmatprep.subr.mxu0 0.0
    %507 = vmatpush2.msra.mxu0 0.0
    %508 = vmatprep.subr.mxu0 0.0
    %509 = vmatpush2.msra.mxu0 0.0
    %510 = vmatprep.subr.mxu0 0.0
    %511 = vmatpush2.msra.mxu0 0.0
    %512 = vmatprep.subr.mxu0 0.0
    %513 = vmatpush2.msra.mxu0 0.0
    %514 = vmatprep.subr.mxu0 0.0
    %515 = vmatpush2.msra.mxu0 0.0
    %516 = vmatprep.subr.mxu0 0.0
    %517 = vmatpush2.msra.mxu0 0.0
    %518 = vmatprep.subr.mxu0 0.0
    %519 = vmatpush2.msra.mxu0 0.0
    %520 = vmatprep.subr.mxu0 0.0
    %521 = vmatpush2.msra.mxu0 0.0
    %522 = vmatprep.subr.mxu0 0.0
    %523 = vmatpush2.msra.mxu0 0.0
    %524 = vmatprep.subr.mxu0 0.0
    %525 = vmatpush2.msra.mxu0 0.0
    %526 = vmatprep.subr.mxu0 0.0
    %527 = vmatpush2.msra.mxu0 0.0
    %528 = vmatprep.subr.mxu0 0.0
    %529 = vmatpush2.msra.mxu0 0.0
    %530 = vmatprep.subr.mxu0 0.0
    %531 = vmatpush2.msra.mxu0 0.0
    %532 = vmatprep.subr.mxu0 0.0
    %533 = vmatpush2.msra.mxu0 0.0
    %534 = vmatprep.mubr.f32.mxu0 0.0
    %535 = vmatmul.mubr.f32.gmra.mxu0 %v468
    %v536 = vpop.f32.mrf.mxu0
    %v537 = vadd.f32 0.0, %v536
    %v538 = vpop.f32.mrf.mxu0
    %539 = vdwg.mxu0
    %v541 = vsel %vm214, %v461, 0
    %v544 = vsel %vm214, %v537, 0
    %546 = vmatprep.subr.mxu0 0.0
    %547 = vmatpush1.msra.mxu0 0.0
    %548 = vmatprep.subr.mxu0 0.0
    %549 = vmatpush1.msra.mxu0 0.0
    %550 = vmatprep.subr.mxu0 0.0
    %551 = vmatpush1.msra.mxu0 0.0
    %552 = vmatprep.subr.mxu0 0.0
    %553 = vmatpush1.msra.mxu0 0.0
    %554 = vmatprep.subr.mxu0 0.0
    %555 = vmatpush1.msra.mxu0 0.0
    %556 = vmatprep.subr.mxu0 0.0
    %557 = vmatpush1.msra.mxu0 0.0
    %558 = vmatprep.subr.mxu0 0.0
    %559 = vmatpush1.msra.mxu0 0.0
    %560 = vmatprep.subr.mxu0 0.0
    %561 = vmatpush1.msra.mxu0 0.0
    %562 = vmatprep.subr.mxu0 0.0
    %563 = vmatpush1.msra.mxu0 0.0
    %564 = vmatprep.subr.mxu0 0.0
    %565 = vmatpush1.msra.mxu0 0.0
    %566 = vmatprep.subr.mxu0 0.0
    %567 = vmatpush1.msra.mxu0 0.0
    %568 = vmatprep.subr.mxu0 0.0
    %569 = vmatpush1.msra.mxu0 0.0
    %570 = vmatprep.subr.mxu0 0.0
    %571 = vmatpush1.msra.mxu0 0.0
    %572 = vmatprep.subr.mxu0 0.0
    %573 = vmatpush1.msra.mxu0 0.0
    %574 = vmatprep.subr.mxu0 0.0
    %575 = vmatpush1.msra.mxu0 0.0
    %576 = vmatprep.subr.mxu0 0.0
    %577 = vmatpush1.msra.mxu0 %v200
    %578 = vmatprep.subr.mxu0 0.0
    %579 = vmatpush2.msra.mxu0 0.0
    %580 = vmatprep.subr.mxu0 0.0
    %581 = vmatpush2.msra.mxu0 0.0
    %582 = vmatprep.subr.mxu0 0.0
    %583 = vmatpush2.msra.mxu0 0.0
    %584 = vmatprep.subr.mxu0 0.0
    %585 = vmatpush2.msra.mxu0 0.0
    %586 = vmatprep.subr.mxu0 0.0
    %587 = vmatpush2.msra.mxu0 0.0
    %588 = vmatprep.subr.mxu0 0.0
    %589 = vmatpush2.msra.mxu0 0.0
    %590 = vmatprep.subr.mxu0 0.0
    %591 = vmatpush2.msra.mxu0 0.0
    %592 = vmatprep.subr.mxu0 0.0
    %593 = vmatpush2.msra.mxu0 0.0
    %594 = vmatprep.subr.mxu0 0.0
    %595 = vmatpush2.msra.mxu0 0.0
    %596 = vmatprep.subr.mxu0 0.0
    %597 = vmatpush2.msra.mxu0 0.0
    %598 = vmatprep.subr.mxu0 0.0
    %599 = vmatpush2.msra.mxu0 0.0
    %600 = vmatprep.subr.mxu0 0.0
    %601 = vmatpush2.msra.mxu0 0.0
    %602 = vmatprep.subr.mxu0 0.0
    %603 = vmatpush2.msra.mxu0 0.0
    %604 = vmatprep.subr.mxu0 0.0
    %605 = vmatpush2.msra.mxu0 0.0
    %606 = vmatprep.subr.mxu0 0.0
    %607 = vmatpush2.msra.mxu0 0.0
    %608 = vmatprep.subr.mxu0 0.0
    %609 = vmatpush2.msra.mxu0 0.0
    %610 = vmatprep.mubr.f32.mxu0 0.0
    %611 = vmatmul.mubr.f32.gmra.mxu0 %v541
    %v612 = vpop.f32.mrf.mxu0
    %v613 = vadd.f32 0.0, %v612
    %v614 = vpop.f32.mrf.mxu0
    %615 = vmatprep.mubr.f32.mxu0 0.0
    %616 = vmatmul.mubr.f32.gmra.mxu0 %v544
    %v617 = vpop.f32.mrf.mxu0
    %v618 = vadd.f32 0.0, %v617
    %v619 = vpop.f32.mrf.mxu0
    %620 = vdwg.mxu0
    %v621 = vadd.f32 %v209, %v613
    %v622 = vadd.f32 %v210, %v618
    %623 = vrot.lane.b32.xlu0 %v192, 120
    %v624 = vpop.permute.xlu0 %623
    %625 = vrot.lane.b32.xlu0 %v192, 88
    %v626 = vpop.permute.xlu0 %625
    %v627 = vsel %vm214, %v624, 0
    %v629 = vsel %vm214, %v626, 0
    %631 = vmatprep.subr.mxu0 0.0
    %632 = vmatpush1.xpose.msra.mxu0 0.0
    %633 = vmatprep.subr.mxu0 0.0
    %634 = vmatpush1.xpose.msra.mxu0 0.0
    %635 = vmatprep.subr.mxu0 0.0
    %636 = vmatpush1.xpose.msra.mxu0 0.0
    %637 = vmatprep.subr.mxu0 0.0
    %638 = vmatpush1.xpose.msra.mxu0 0.0
    %639 = vmatprep.subr.mxu0 0.0
    %640 = vmatpush1.xpose.msra.mxu0 0.0
    %641 = vmatprep.subr.mxu0 0.0
    %642 = vmatpush1.xpose.msra.mxu0 0.0
    %643 = vmatprep.subr.mxu0 0.0
    %644 = vmatpush1.xpose.msra.mxu0 0.0
    %645 = vmatprep.subr.mxu0 0.0
    %646 = vmatpush1.xpose.msra.mxu0 0.0
    %647 = vmatprep.subr.mxu0 0.0
    %648 = vmatpush1.xpose.msra.mxu0 0.0
    %649 = vmatprep.subr.mxu0 0.0
    %650 = vmatpush1.xpose.msra.mxu0 0.0
    %651 = vmatprep.subr.mxu0 0.0
    %652 = vmatpush1.xpose.msra.mxu0 0.0
    %653 = vmatprep.subr.mxu0 0.0
    %654 = vmatpush1.xpose.msra.mxu0 0.0
    %655 = vmatprep.subr.mxu0 0.0
    %656 = vmatpush1.xpose.msra.mxu0 0.0
    %657 = vmatprep.subr.mxu0 0.0
    %658 = vmatpush1.xpose.msra.mxu0 0.0
    %659 = vmatprep.subr.mxu0 0.0
    %660 = vmatpush1.xpose.msra.mxu0 0.0
    %661 = vmatprep.subr.mxu0 0.0
    %662 = vmatpush1.xpose.msra.mxu0 %v629
    %663 = vmatprep.subr.mxu0 0.0
    %664 = vmatpush2.xpose.msra.mxu0 0.0
    %665 = vmatprep.subr.mxu0 0.0
    %666 = vmatpush2.xpose.msra.mxu0 0.0
    %667 = vmatprep.subr.mxu0 0.0
    %668 = vmatpush2.xpose.msra.mxu0 0.0
    %669 = vmatprep.subr.mxu0 0.0
    %670 = vmatpush2.xpose.msra.mxu0 0.0
    %671 = vmatprep.subr.mxu0 0.0
    %672 = vmatpush2.xpose.msra.mxu0 0.0
    %673 = vmatprep.subr.mxu0 0.0
    %674 = vmatpush2.xpose.msra.mxu0 0.0
    %675 = vmatprep.subr.mxu0 0.0
    %676 = vmatpush2.xpose.msra.mxu0 0.0
    %677 = vmatprep.subr.mxu0 0.0
    %678 = vmatpush2.xpose.msra.mxu0 0.0
    %679 = vmatprep.subr.mxu0 0.0
    %680 = vmatpush2.xpose.msra.mxu0 0.0
    %681 = vmatprep.subr.mxu0 0.0
    %682 = vmatpush2.xpose.msra.mxu0 0.0
    %683 = vmatprep.subr.mxu0 0.0
    %684 = vmatpush2.xpose.msra.mxu0 0.0
    %685 = vmatprep.subr.mxu0 0.0
    %686 = vmatpush2.xpose.msra.mxu0 0.0
    %687 = vmatprep.subr.mxu0 0.0
    %688 = vmatpush2.xpose.msra.mxu0 0.0
    %689 = vmatprep.subr.mxu0 0.0
    %690 = vmatpush2.xpose.msra.mxu0 0.0
    %691 = vmatprep.subr.mxu0 0.0
    %692 = vmatpush2.xpose.msra.mxu0 0.0
    %693 = vmatprep.subr.mxu0 0.0
    %694 = vmatpush2.xpose.msra.mxu0 0.0
    %695 = vmatprep.mubr.f32.mxu0 0.0
    %696 = vmatmul.mubr.f32.gmra.mxu0 %v627
    %v697 = vpop.f32.mrf.mxu0
    %v698 = vadd.f32 0.0, %v697
    %v699 = vpop.f32.mrf.mxu0
    %700 = vdwg.mxu0
    %701 = vrot.lane.b32.xlu0 %v197, 120
    %v702 = vpop.permute.xlu0 %701
    %703 = vrot.lane.b32.xlu0 %v197, 88
    %v704 = vpop.permute.xlu0 %703
    %v705 = vsel %vm214, %v702, 0
    %v707 = vsel %vm214, %v704, 0
    %709 = vmatprep.subr.mxu0 0.0
    %710 = vmatpush1.xpose.msra.mxu0 0.0
    %711 = vmatprep.subr.mxu0 0.0
    %712 = vmatpush1.xpose.msra.mxu0 0.0
    %713 = vmatprep.subr.mxu0 0.0
    %714 = vmatpush1.xpose.msra.mxu0 0.0
    %715 = vmatprep.subr.mxu0 0.0
    %716 = vmatpush1.xpose.msra.mxu0 0.0
    %717 = vmatprep.subr.mxu0 0.0
    %718 = vmatpush1.xpose.msra.mxu0 0.0
    %719 = vmatprep.subr.mxu0 0.0
    %720 = vmatpush1.xpose.msra.mxu0 0.0
    %721 = vmatprep.subr.mxu0 0.0
    %722 = vmatpush1.xpose.msra.mxu0 0.0
    %723 = vmatprep.subr.mxu0 0.0
    %724 = vmatpush1.xpose.msra.mxu0 0.0
    %725 = vmatprep.subr.mxu0 0.0
    %726 = vmatpush1.xpose.msra.mxu0 0.0
    %727 = vmatprep.subr.mxu0 0.0
    %728 = vmatpush1.xpose.msra.mxu0 0.0
    %729 = vmatprep.subr.mxu0 0.0
    %730 = vmatpush1.xpose.msra.mxu0 0.0
    %731 = vmatprep.subr.mxu0 0.0
    %732 = vmatpush1.xpose.msra.mxu0 0.0
    %733 = vmatprep.subr.mxu0 0.0
    %734 = vmatpush1.xpose.msra.mxu0 0.0
    %735 = vmatprep.subr.mxu0 0.0
    %736 = vmatpush1.xpose.msra.mxu0 0.0
    %737 = vmatprep.subr.mxu0 0.0
    %738 = vmatpush1.xpose.msra.mxu0 0.0
    %739 = vmatprep.subr.mxu0 0.0
    %740 = vmatpush1.xpose.msra.mxu0 %v707
    %741 = vmatprep.subr.mxu0 0.0
    %742 = vmatpush2.xpose.msra.mxu0 0.0
    %743 = vmatprep.subr.mxu0 0.0
    %744 = vmatpush2.xpose.msra.mxu0 0.0
    %745 = vmatprep.subr.mxu0 0.0
    %746 = vmatpush2.xpose.msra.mxu0 0.0
    %747 = vmatprep.subr.mxu0 0.0
    %748 = vmatpush2.xpose.msra.mxu0 0.0
    %749 = vmatprep.subr.mxu0 0.0
    %750 = vmatpush2.xpose.msra.mxu0 0.0
    %751 = vmatprep.subr.mxu0 0.0
    %752 = vmatpush2.xpose.msra.mxu0 0.0
    %753 = vmatprep.subr.mxu0 0.0
    %754 = vmatpush2.xpose.msra.mxu0 0.0
    %755 = vmatprep.subr.mxu0 0.0
    %756 = vmatpush2.xpose.msra.mxu0 0.0
    %757 = vmatprep.subr.mxu0 0.0
    %758 = vmatpush2.xpose.msra.mxu0 0.0
    %759 = vmatprep.subr.mxu0 0.0
    %760 = vmatpush2.xpose.msra.mxu0 0.0
    %761 = vmatprep.subr.mxu0 0.0
    %762 = vmatpush2.xpose.msra.mxu0 0.0
    %763 = vmatprep.subr.mxu0 0.0
    %764 = vmatpush2.xpose.msra.mxu0 0.0
    %765 = vmatprep.subr.mxu0 0.0
    %766 = vmatpush2.xpose.msra.mxu0 0.0
    %767 = vmatprep.subr.mxu0 0.0
    %768 = vmatpush2.xpose.msra.mxu0 0.0
    %769 = vmatprep.subr.mxu0 0.0
    %770 = vmatpush2.xpose.msra.mxu0 0.0
    %771 = vmatprep.subr.mxu0 0.0
    %772 = vmatpush2.xpose.msra.mxu0 0.0
    %773 = vmatprep.mubr.f32.mxu0 0.0
    %774 = vmatmul.mubr.f32.gmra.mxu0 %v705
    %v775 = vpop.f32.mrf.mxu0
    %v776 = vadd.f32 0.0, %v775
    %v777 = vpop.f32.mrf.mxu0
    %778 = vdwg.mxu0
    %v779 = vsel %vm214, %v698, -inf
    %780 = vmax.xlane.f32.xlu0 %v779
    %v781 = vpop.xlane.xlu0 %780
    %v782 = vsel %vm214, %v776, -inf
    %783 = vmax.xlane.f32.xlu0 %v782
    %v784 = vpop.xlane.xlu0 %783
    %v785 = vsub.f32 %v698, %v781
    %v786 = vsub.f32 %v776, %v784
    %v787 = vmul.f32 %v785, 1.442695
    %v788 = vpow.pop %v787
    %v789 = vmul.f32 %v786, 1.442695
    %v790 = vpow.pop %v789
    %v791 = vsel %vm214, %v788, 0.0
    %792 = vadd.xlane.f32.xlu0 %v791
    %v793 = vpop.xlane.xlu0 %792
    %v794 = vsel %vm214, %v790, 0.0
    %795 = vadd.xlane.f32.xlu0 %v794
    %v796 = vpop.xlane.xlu0 %795
    %v797 = vrcp.pop %v793
    %v798 = vrcp.pop %v796
    %v799 = vmul.f32 %v788, %v797
    %v800 = vmul.f32 %v790, %v798
    %801 = vrot.lane.b32.xlu0 %v192, 56
    %v802 = vpop.permute.xlu0 %801
    %v805 = vsel %vm214, %v799, 0
    %807 = vmatprep.subr.mxu0 0.0
    %808 = vmatpush1.msra.mxu0 0.0
    %809 = vmatprep.subr.mxu0 0.0
    %810 = vmatpush1.msra.mxu0 0.0
    %811 = vmatprep.subr.mxu0 0.0
    %812 = vmatpush1.msra.mxu0 0.0
    %813 = vmatprep.subr.mxu0 0.0
    %814 = vmatpush1.msra.mxu0 0.0
    %815 = vmatprep.subr.mxu0 0.0
    %816 = vmatpush1.msra.mxu0 0.0
    %817 = vmatprep.subr.mxu0 0.0
    %818 = vmatpush1.msra.mxu0 0.0
    %819 = vmatprep.subr.mxu0 0.0
    %820 = vmatpush1.msra.mxu0 0.0
    %821 = vmatprep.subr.mxu0 0.0
    %822 = vmatpush1.msra.mxu0 0.0
    %823 = vmatprep.subr.mxu0 0.0
    %824 = vmatpush1.msra.mxu0 0.0
    %825 = vmatprep.subr.mxu0 0.0
    %826 = vmatpush1.msra.mxu0 0.0
    %827 = vmatprep.subr.mxu0 0.0
    %828 = vmatpush1.msra.mxu0 0.0
    %829 = vmatprep.subr.mxu0 0.0
    %830 = vmatpush1.msra.mxu0 0.0
    %831 = vmatprep.subr.mxu0 0.0
    %832 = vmatpush1.msra.mxu0 0.0
    %833 = vmatprep.subr.mxu0 0.0
    %834 = vmatpush1.msra.mxu0 0.0
    %835 = vmatprep.subr.mxu0 0.0
    %836 = vmatpush1.msra.mxu0 0.0
    %837 = vmatprep.subr.mxu0 0.0
    %838 = vmatpush1.msra.mxu0 %v802
    %839 = vmatprep.subr.mxu0 0.0
    %840 = vmatpush2.msra.mxu0 0.0
    %841 = vmatprep.subr.mxu0 0.0
    %842 = vmatpush2.msra.mxu0 0.0
    %843 = vmatprep.subr.mxu0 0.0
    %844 = vmatpush2.msra.mxu0 0.0
    %845 = vmatprep.subr.mxu0 0.0
    %846 = vmatpush2.msra.mxu0 0.0
    %847 = vmatprep.subr.mxu0 0.0
    %848 = vmatpush2.msra.mxu0 0.0
    %849 = vmatprep.subr.mxu0 0.0
    %850 = vmatpush2.msra.mxu0 0.0
    %851 = vmatprep.subr.mxu0 0.0
    %852 = vmatpush2.msra.mxu0 0.0
    %853 = vmatprep.subr.mxu0 0.0
    %854 = vmatpush2.msra.mxu0 0.0
    %855 = vmatprep.subr.mxu0 0.0
    %856 = vmatpush2.msra.mxu0 0.0
    %857 = vmatprep.subr.mxu0 0.0
    %858 = vmatpush2.msra.mxu0 0.0
    %859 = vmatprep.subr.mxu0 0.0
    %860 = vmatpush2.msra.mxu0 0.0
    %861 = vmatprep.subr.mxu0 0.0
    %862 = vmatpush2.msra.mxu0 0.0
    %863 = vmatprep.subr.mxu0 0.0
    %864 = vmatpush2.msra.mxu0 0.0
    %865 = vmatprep.subr.mxu0 0.0
    %866 = vmatpush2.msra.mxu0 0.0
    %867 = vmatprep.subr.mxu0 0.0
    %868 = vmatpush2.msra.mxu0 0.0
    %869 = vmatprep.subr.mxu0 0.0
    %870 = vmatpush2.msra.mxu0 0.0
    %871 = vmatprep.mubr.f32.mxu0 0.0
    %872 = vmatmul.mubr.f32.gmra.mxu0 %v805
    %v873 = vpop.f32.mrf.mxu0
    %v874 = vadd.f32 0.0, %v873
    %v875 = vpop.f32.mrf.mxu0
    %876 = vdwg.mxu0
    %877 = vrot.lane.b32.xlu0 %v197, 56
    %v878 = vpop.permute.xlu0 %877
    %v881 = vsel %vm214, %v800, 0
    %883 = vmatprep.subr.mxu0 0.0
    %884 = vmatpush1.msra.mxu0 0.0
    %885 = vmatprep.subr.mxu0 0.0
    %886 = vmatpush1.msra.mxu0 0.0
    %887 = vmatprep.subr.mxu0 0.0
    %888 = vmatpush1.msra.mxu0 0.0
    %889 = vmatprep.subr.mxu0 0.0
    %890 = vmatpush1.msra.mxu0 0.0
    %891 = vmatprep.subr.mxu0 0.0
    %892 = vmatpush1.msra.mxu0 0.0
    %893 = vmatprep.subr.mxu0 0.0
    %894 = vmatpush1.msra.mxu0 0.0
    %895 = vmatprep.subr.mxu0 0.0
    %896 = vmatpush1.msra.mxu0 0.0
    %897 = vmatprep.subr.mxu0 0.0
    %898 = vmatpush1.msra.mxu0 0.0
    %899 = vmatprep.subr.mxu0 0.0
    %900 = vmatpush1.msra.mxu0 0.0
    %901 = vmatprep.subr.mxu0 0.0
    %902 = vmatpush1.msra.mxu0 0.0
    %903 = vmatprep.subr.mxu0 0.0
    %904 = vmatpush1.msra.mxu0 0.0
    %905 = vmatprep.subr.mxu0 0.0
    %906 = vmatpush1.msra.mxu0 0.0
    %907 = vmatprep.subr.mxu0 0.0
    %908 = vmatpush1.msra.mxu0 0.0
    %909 = vmatprep.subr.mxu0 0.0
    %910 = vmatpush1.msra.mxu0 0.0
    %911 = vmatprep.subr.mxu0 0.0
    %912 = vmatpush1.msra.mxu0 0.0
    %913 = vmatprep.subr.mxu0 0.0
    %914 = vmatpush1.msra.mxu0 %v878
    %915 = vmatprep.subr.mxu0 0.0
    %916 = vmatpush2.msra.mxu0 0.0
    %917 = vmatprep.subr.mxu0 0.0
    %918 = vmatpush2.msra.mxu0 0.0
    %919 = vmatprep.subr.mxu0 0.0
    %920 = vmatpush2.msra.mxu0 0.0
    %921 = vmatprep.subr.mxu0 0.0
    %922 = vmatpush2.msra.mxu0 0.0
    %923 = vmatprep.subr.mxu0 0.0
    %924 = vmatpush2.msra.mxu0 0.0
    %925 = vmatprep.subr.mxu0 0.0
    %926 = vmatpush2.msra.mxu0 0.0
    %927 = vmatprep.subr.mxu0 0.0
    %928 = vmatpush2.msra.mxu0 0.0
    %929 = vmatprep.subr.mxu0 0.0
    %930 = vmatpush2.msra.mxu0 0.0
    %931 = vmatprep.subr.mxu0 0.0
    %932 = vmatpush2.msra.mxu0 0.0
    %933 = vmatprep.subr.mxu0 0.0
    %934 = vmatpush2.msra.mxu0 0.0
    %935 = vmatprep.subr.mxu0 0.0
    %936 = vmatpush2.msra.mxu0 0.0
    %937 = vmatprep.subr.mxu0 0.0
    %938 = vmatpush2.msra.mxu0 0.0
    %939 = vmatprep.subr.mxu0 0.0
    %940 = vmatpush2.msra.mxu0 0.0
    %941 = vmatprep.subr.mxu0 0.0
    %942 = vmatpush2.msra.mxu0 0.0
    %943 = vmatprep.subr.mxu0 0.0
    %944 = vmatpush2.msra.mxu0 0.0
    %945 = vmatprep.subr.mxu0 0.0
    %946 = vmatpush2.msra.mxu0 0.0
    %947 = vmatprep.mubr.f32.mxu0 0.0
    %948 = vmatmul.mubr.f32.gmra.mxu0 %v881
    %v949 = vpop.f32.mrf.mxu0
    %v950 = vadd.f32 0.0, %v949
    %v951 = vpop.f32.mrf.mxu0
    %952 = vdwg.mxu0
    %v954 = vsel %vm214, %v874, 0
    %v957 = vsel %vm214, %v950, 0
    %959 = vmatprep.subr.mxu0 0.0
    %960 = vmatpush1.msra.mxu0 0.0
    %961 = vmatprep.subr.mxu0 0.0
    %962 = vmatpush1.msra.mxu0 0.0
    %963 = vmatprep.subr.mxu0 0.0
    %964 = vmatpush1.msra.mxu0 0.0
    %965 = vmatprep.subr.mxu0 0.0
    %966 = vmatpush1.msra.mxu0 0.0
    %967 = vmatprep.subr.mxu0 0.0
    %968 = vmatpush1.msra.mxu0 0.0
    %969 = vmatprep.subr.mxu0 0.0
    %970 = vmatpush1.msra.mxu0 0.0
    %971 = vmatprep.subr.mxu0 0.0
    %972 = vmatpush1.msra.mxu0 0.0
    %973 = vmatprep.subr.mxu0 0.0
    %974 = vmatpush1.msra.mxu0 0.0
    %975 = vmatprep.subr.mxu0 0.0
    %976 = vmatpush1.msra.mxu0 0.0
    %977 = vmatprep.subr.mxu0 0.0
    %978 = vmatpush1.msra.mxu0 0.0
    %979 = vmatprep.subr.mxu0 0.0
    %980 = vmatpush1.msra.mxu0 0.0
    %981 = vmatprep.subr.mxu0 0.0
    %982 = vmatpush1.msra.mxu0 0.0
    %983 = vmatprep.subr.mxu0 0.0
    %984 = vmatpush1.msra.mxu0 0.0
    %985 = vmatprep.subr.mxu0 0.0
    %986 = vmatpush1.msra.mxu0 0.0
    %987 = vmatprep.subr.mxu0 0.0
    %988 = vmatpush1.msra.mxu0 0.0
    %989 = vmatprep.subr.mxu0 0.0
    %990 = vmatpush1.msra.mxu0 %v201
    %991 = vmatprep.subr.mxu0 0.0
    %992 = vmatpush2.msra.mxu0 0.0
    %993 = vmatprep.subr.mxu0 0.0
    %994 = vmatpush2.msra.mxu0 0.0
    %995 = vmatprep.subr.mxu0 0.0
    %996 = vmatpush2.msra.mxu0 0.0
    %997 = vmatprep.subr.mxu0 0.0
    %998 = vmatpush2.msra.mxu0 0.0
    %999 = vmatprep.subr.mxu0 0.0
    %1000 = vmatpush2.msra.mxu0 0.0
    %1001 = vmatprep.subr.mxu0 0.0
    %1002 = vmatpush2.msra.mxu0 0.0
    %1003 = vmatprep.subr.mxu0 0.0
    %1004 = vmatpush2.msra.mxu0 0.0
    %1005 = vmatprep.subr.mxu0 0.0
    %1006 = vmatpush2.msra.mxu0 0.0
    %1007 = vmatprep.subr.mxu0 0.0
    %1008 = vmatpush2.msra.mxu0 0.0
    %1009 = vmatprep.subr.mxu0 0.0
    %1010 = vmatpush2.msra.mxu0 0.0
    %1011 = vmatprep.subr.mxu0 0.0
    %1012 = vmatpush2.msra.mxu0 0.0
    %1013 = vmatprep.subr.mxu0 0.0
    %1014 = vmatpush2.msra.mxu0 0.0
    %1015 = vmatprep.subr.mxu0 0.0
    %1016 = vmatpush2.msra.mxu0 0.0
    %1017 = vmatprep.subr.mxu0 0.0
    %1018 = vmatpush2.msra.mxu0 0.0
    %1019 = vmatprep.subr.mxu0 0.0
    %1020 = vmatpush2.msra.mxu0 0.0
    %1021 = vmatprep.subr.mxu0 0.0
    %1022 = vmatpush2.msra.mxu0 0.0
    %1023 = vmatprep.mubr.f32.mxu0 0.0
    %1024 = vmatmul.mubr.f32.gmra.mxu0 %v954
    %v1025 = vpop.f32.mrf.mxu0
    %v1026 = vadd.f32 0.0, %v1025
    %v1027 = vpop.f32.mrf.mxu0
    %1028 = vmatprep.mubr.f32.mxu0 0.0
    %1029 = vmatmul.mubr.f32.gmra.mxu0 %v957
    %v1030 = vpop.f32.mrf.mxu0
    %v1031 = vadd.f32 0.0, %v1030
    %v1032 = vpop.f32.mrf.mxu0
    %1033 = vdwg.mxu0
    %v1034 = vadd.f32 %v621, %v1026
    %v1035 = vadd.f32 %v622, %v1031
    %1036 = vrot.lane.b32.xlu0 %v192, 112
    %v1037 = vpop.permute.xlu0 %1036
    %1038 = vrot.lane.b32.xlu0 %v192, 80
    %v1039 = vpop.permute.xlu0 %1038
    %v1040 = vsel %vm214, %v1037, 0
    %v1042 = vsel %vm214, %v1039, 0
    %1044 = vmatprep.subr.mxu0 0.0
    %1045 = vmatpush1.xpose.msra.mxu0 0.0
    %1046 = vmatprep.subr.mxu0 0.0
    %1047 = vmatpush1.xpose.msra.mxu0 0.0
    %1048 = vmatprep.subr.mxu0 0.0
    %1049 = vmatpush1.xpose.msra.mxu0 0.0
    %1050 = vmatprep.subr.mxu0 0.0
    %1051 = vmatpush1.xpose.msra.mxu0 0.0
    %1052 = vmatprep.subr.mxu0 0.0
    %1053 = vmatpush1.xpose.msra.mxu0 0.0
    %1054 = vmatprep.subr.mxu0 0.0
    %1055 = vmatpush1.xpose.msra.mxu0 0.0
    %1056 = vmatprep.subr.mxu0 0.0
    %1057 = vmatpush1.xpose.msra.mxu0 0.0
    %1058 = vmatprep.subr.mxu0 0.0
    %1059 = vmatpush1.xpose.msra.mxu0 0.0
    %1060 = vmatprep.subr.mxu0 0.0
    %1061 = vmatpush1.xpose.msra.mxu0 0.0
    %1062 = vmatprep.subr.mxu0 0.0
    %1063 = vmatpush1.xpose.msra.mxu0 0.0
    %1064 = vmatprep.subr.mxu0 0.0
    %1065 = vmatpush1.xpose.msra.mxu0 0.0
    %1066 = vmatprep.subr.mxu0 0.0
    %1067 = vmatpush1.xpose.msra.mxu0 0.0
    %1068 = vmatprep.subr.mxu0 0.0
    %1069 = vmatpush1.xpose.msra.mxu0 0.0
    %1070 = vmatprep.subr.mxu0 0.0
    %1071 = vmatpush1.xpose.msra.mxu0 0.0
    %1072 = vmatprep.subr.mxu0 0.0
    %1073 = vmatpush1.xpose.msra.mxu0 0.0
    %1074 = vmatprep.subr.mxu0 0.0
    %1075 = vmatpush1.xpose.msra.mxu0 %v1042
    %1076 = vmatprep.subr.mxu0 0.0
    %1077 = vmatpush2.xpose.msra.mxu0 0.0
    %1078 = vmatprep.subr.mxu0 0.0
    %1079 = vmatpush2.xpose.msra.mxu0 0.0
    %1080 = vmatprep.subr.mxu0 0.0
    %1081 = vmatpush2.xpose.msra.mxu0 0.0
    %1082 = vmatprep.subr.mxu0 0.0
    %1083 = vmatpush2.xpose.msra.mxu0 0.0
    %1084 = vmatprep.subr.mxu0 0.0
    %1085 = vmatpush2.xpose.msra.mxu0 0.0
    %1086 = vmatprep.subr.mxu0 0.0
    %1087 = vmatpush2.xpose.msra.mxu0 0.0
    %1088 = vmatprep.subr.mxu0 0.0
    %1089 = vmatpush2.xpose.msra.mxu0 0.0
    %1090 = vmatprep.subr.mxu0 0.0
    %1091 = vmatpush2.xpose.msra.mxu0 0.0
    %1092 = vmatprep.subr.mxu0 0.0
    %1093 = vmatpush2.xpose.msra.mxu0 0.0
    %1094 = vmatprep.subr.mxu0 0.0
    %1095 = vmatpush2.xpose.msra.mxu0 0.0
    %1096 = vmatprep.subr.mxu0 0.0
    %1097 = vmatpush2.xpose.msra.mxu0 0.0
    %1098 = vmatprep.subr.mxu0 0.0
    %1099 = vmatpush2.xpose.msra.mxu0 0.0
    %1100 = vmatprep.subr.mxu0 0.0
    %1101 = vmatpush2.xpose.msra.mxu0 0.0
    %1102 = vmatprep.subr.mxu0 0.0
    %1103 = vmatpush2.xpose.msra.mxu0 0.0
    %1104 = vmatprep.subr.mxu0 0.0
    %1105 = vmatpush2.xpose.msra.mxu0 0.0
    %1106 = vmatprep.subr.mxu0 0.0
    %1107 = vmatpush2.xpose.msra.mxu0 0.0
    %1108 = vmatprep.mubr.f32.mxu0 0.0
    %1109 = vmatmul.mubr.f32.gmra.mxu0 %v1040
    %v1110 = vpop.f32.mrf.mxu0
    %v1111 = vadd.f32 0.0, %v1110
    %v1112 = vpop.f32.mrf.mxu0
    %1113 = vdwg.mxu0
    %1114 = vrot.lane.b32.xlu0 %v197, 112
    %v1115 = vpop.permute.xlu0 %1114
    %1116 = vrot.lane.b32.xlu0 %v197, 80
    %v1117 = vpop.permute.xlu0 %1116
    %v1118 = vsel %vm214, %v1115, 0
    %v1120 = vsel %vm214, %v1117, 0
    %1122 = vmatprep.subr.mxu0 0.0
    %1123 = vmatpush1.xpose.msra.mxu0 0.0
    %1124 = vmatprep.subr.mxu0 0.0
    %1125 = vmatpush1.xpose.msra.mxu0 0.0
    %1126 = vmatprep.subr.mxu0 0.0
    %1127 = vmatpush1.xpose.msra.mxu0 0.0
    %1128 = vmatprep.subr.mxu0 0.0
    %1129 = vmatpush1.xpose.msra.mxu0 0.0
    %1130 = vmatprep.subr.mxu0 0.0
    %1131 = vmatpush1.xpose.msra.mxu0 0.0
    %1132 = vmatprep.subr.mxu0 0.0
    %1133 = vmatpush1.xpose.msra.mxu0 0.0
    %1134 = vmatprep.subr.mxu0 0.0
    %1135 = vmatpush1.xpose.msra.mxu0 0.0
    %1136 = vmatprep.subr.mxu0 0.0
    %1137 = vmatpush1.xpose.msra.mxu0 0.0
    %1138 = vmatprep.subr.mxu0 0.0
    %1139 = vmatpush1.xpose.msra.mxu0 0.0
    %1140 = vmatprep.subr.mxu0 0.0
    %1141 = vmatpush1.xpose.msra.mxu0 0.0
    %1142 = vmatprep.subr.mxu0 0.0
    %1143 = vmatpush1.xpose.msra.mxu0 0.0
    %1144 = vmatprep.subr.mxu0 0.0
    %1145 = vmatpush1.xpose.msra.mxu0 0.0
    %1146 = vmatprep.subr.mxu0 0.0
    %1147 = vmatpush1.xpose.msra.mxu0 0.0
    %1148 = vmatprep.subr.mxu0 0.0
    %1149 = vmatpush1.xpose.msra.mxu0 0.0
    %1150 = vmatprep.subr.mxu0 0.0
    %1151 = vmatpush1.xpose.msra.mxu0 0.0
    %1152 = vmatprep.subr.mxu0 0.0
    %1153 = vmatpush1.xpose.msra.mxu0 %v1120
    %1154 = vmatprep.subr.mxu0 0.0
    %1155 = vmatpush2.xpose.msra.mxu0 0.0
    %1156 = vmatprep.subr.mxu0 0.0
    %1157 = vmatpush2.xpose.msra.mxu0 0.0
    %1158 = vmatprep.subr.mxu0 0.0
    %1159 = vmatpush2.xpose.msra.mxu0 0.0
    %1160 = vmatprep.subr.mxu0 0.0
    %1161 = vmatpush2.xpose.msra.mxu0 0.0
    %1162 = vmatprep.subr.mxu0 0.0
    %1163 = vmatpush2.xpose.msra.mxu0 0.0
    %1164 = vmatprep.subr.mxu0 0.0
    %1165 = vmatpush2.xpose.msra.mxu0 0.0
    %1166 = vmatprep.subr.mxu0 0.0
    %1167 = vmatpush2.xpose.msra.mxu0 0.0
    %1168 = vmatprep.subr.mxu0 0.0
    %1169 = vmatpush2.xpose.msra.mxu0 0.0
    %1170 = vmatprep.subr.mxu0 0.0
    %1171 = vmatpush2.xpose.msra.mxu0 0.0
    %1172 = vmatprep.subr.mxu0 0.0
    %1173 = vmatpush2.xpose.msra.mxu0 0.0
    %1174 = vmatprep.subr.mxu0 0.0
    %1175 = vmatpush2.xpose.msra.mxu0 0.0
    %1176 = vmatprep.subr.mxu0 0.0
    %1177 = vmatpush2.xpose.msra.mxu0 0.0
    %1178 = vmatprep.subr.mxu0 0.0
    %1179 = vmatpush2.xpose.msra.mxu0 0.0
    %1180 = vmatprep.subr.mxu0 0.0
    %1181 = vmatpush2.xpose.msra.mxu0 0.0
    %1182 = vmatprep.subr.mxu0 0.0
    %1183 = vmatpush2.xpose.msra.mxu0 0.0
    %1184 = vmatprep.subr.mxu0 0.0
    %1185 = vmatpush2.xpose.msra.mxu0 0.0
    %1186 = vmatprep.mubr.f32.mxu0 0.0
    %1187 = vmatmul.mubr.f32.gmra.mxu0 %v1118
    %v1188 = vpop.f32.mrf.mxu0
    %v1189 = vadd.f32 0.0, %v1188
    %v1190 = vpop.f32.mrf.mxu0
    %1191 = vdwg.mxu0
    %v1192 = vsel %vm214, %v1111, -inf
    %1193 = vmax.xlane.f32.xlu0 %v1192
    %v1194 = vpop.xlane.xlu0 %1193
    %v1195 = vsel %vm214, %v1189, -inf
    %1196 = vmax.xlane.f32.xlu0 %v1195
    %v1197 = vpop.xlane.xlu0 %1196
    %v1198 = vsub.f32 %v1111, %v1194
    %v1199 = vsub.f32 %v1189, %v1197
    %v1200 = vmul.f32 %v1198, 1.442695
    %v1201 = vpow.pop %v1200
    %v1202 = vmul.f32 %v1199, 1.442695
    %v1203 = vpow.pop %v1202
    %v1204 = vsel %vm214, %v1201, 0.0
    %1205 = vadd.xlane.f32.xlu0 %v1204
    %v1206 = vpop.xlane.xlu0 %1205
    %v1207 = vsel %vm214, %v1203, 0.0
    %1208 = vadd.xlane.f32.xlu0 %v1207
    %v1209 = vpop.xlane.xlu0 %1208
    %v1210 = vrcp.pop %v1206
    %v1211 = vrcp.pop %v1209
    %v1212 = vmul.f32 %v1201, %v1210
    %v1213 = vmul.f32 %v1203, %v1211
    %1214 = vrot.lane.b32.xlu0 %v192, 48
    %v1215 = vpop.permute.xlu0 %1214
    %v1218 = vsel %vm214, %v1212, 0
    %1220 = vmatprep.subr.mxu0 0.0
    %1221 = vmatpush1.msra.mxu0 0.0
    %1222 = vmatprep.subr.mxu0 0.0
    %1223 = vmatpush1.msra.mxu0 0.0
    %1224 = vmatprep.subr.mxu0 0.0
    %1225 = vmatpush1.msra.mxu0 0.0
    %1226 = vmatprep.subr.mxu0 0.0
    %1227 = vmatpush1.msra.mxu0 0.0
    %1228 = vmatprep.subr.mxu0 0.0
    %1229 = vmatpush1.msra.mxu0 0.0
    %1230 = vmatprep.subr.mxu0 0.0
    %1231 = vmatpush1.msra.mxu0 0.0
    %1232 = vmatprep.subr.mxu0 0.0
    %1233 = vmatpush1.msra.mxu0 0.0
    %1234 = vmatprep.subr.mxu0 0.0
    %1235 = vmatpush1.msra.mxu0 0.0
    %1236 = vmatprep.subr.mxu0 0.0
    %1237 = vmatpush1.msra.mxu0 0.0
    %1238 = vmatprep.subr.mxu0 0.0
    %1239 = vmatpush1.msra.mxu0 0.0
    %1240 = vmatprep.subr.mxu0 0.0
    %1241 = vmatpush1.msra.mxu0 0.0
    %1242 = vmatprep.subr.mxu0 0.0
    %1243 = vmatpush1.msra.mxu0 0.0
    %1244 = vmatprep.subr.mxu0 0.0
    %1245 = vmatpush1.msra.mxu0 0.0
    %1246 = vmatprep.subr.mxu0 0.0
    %1247 = vmatpush1.msra.mxu0 0.0
    %1248 = vmatprep.subr.mxu0 0.0
    %1249 = vmatpush1.msra.mxu0 0.0
    %1250 = vmatprep.subr.mxu0 0.0
    %1251 = vmatpush1.msra.mxu0 %v1215
    %1252 = vmatprep.subr.mxu0 0.0
    %1253 = vmatpush2.msra.mxu0 0.0
    %1254 = vmatprep.subr.mxu0 0.0
    %1255 = vmatpush2.msra.mxu0 0.0
    %1256 = vmatprep.subr.mxu0 0.0
    %1257 = vmatpush2.msra.mxu0 0.0
    %1258 = vmatprep.subr.mxu0 0.0
    %1259 = vmatpush2.msra.mxu0 0.0
    %1260 = vmatprep.subr.mxu0 0.0
    %1261 = vmatpush2.msra.mxu0 0.0
    %1262 = vmatprep.subr.mxu0 0.0
    %1263 = vmatpush2.msra.mxu0 0.0
    %1264 = vmatprep.subr.mxu0 0.0
    %1265 = vmatpush2.msra.mxu0 0.0
    %1266 = vmatprep.subr.mxu0 0.0
    %1267 = vmatpush2.msra.mxu0 0.0
    %1268 = vmatprep.subr.mxu0 0.0
    %1269 = vmatpush2.msra.mxu0 0.0
    %1270 = vmatprep.subr.mxu0 0.0
    %1271 = vmatpush2.msra.mxu0 0.0
    %1272 = vmatprep.subr.mxu0 0.0
    %1273 = vmatpush2.msra.mxu0 0.0
    %1274 = vmatprep.subr.mxu0 0.0
    %1275 = vmatpush2.msra.mxu0 0.0
    %1276 = vmatprep.subr.mxu0 0.0
    %1277 = vmatpush2.msra.mxu0 0.0
    %1278 = vmatprep.subr.mxu0 0.0
    %1279 = vmatpush2.msra.mxu0 0.0
    %1280 = vmatprep.subr.mxu0 0.0
    %1281 = vmatpush2.msra.mxu0 0.0
    %1282 = vmatprep.subr.mxu0 0.0
    %1283 = vmatpush2.msra.mxu0 0.0
    %1284 = vmatprep.mubr.f32.mxu0 0.0
    %1285 = vmatmul.mubr.f32.gmra.mxu0 %v1218
    %v1286 = vpop.f32.mrf.mxu0
    %v1287 = vadd.f32 0.0, %v1286
    %v1288 = vpop.f32.mrf.mxu0
    %1289 = vdwg.mxu0
    %1290 = vrot.lane.b32.xlu0 %v197, 48
    %v1291 = vpop.permute.xlu0 %1290
    %v1294 = vsel %vm214, %v1213, 0
    %1296 = vmatprep.subr.mxu0 0.0
    %1297 = vmatpush1.msra.mxu0 0.0
    %1298 = vmatprep.subr.mxu0 0.0
    %1299 = vmatpush1.msra.mxu0 0.0
    %1300 = vmatprep.subr.mxu0 0.0
    %1301 = vmatpush1.msra.mxu0 0.0
    %1302 = vmatprep.subr.mxu0 0.0
    %1303 = vmatpush1.msra.mxu0 0.0
    %1304 = vmatprep.subr.mxu0 0.0
    %1305 = vmatpush1.msra.mxu0 0.0
    %1306 = vmatprep.subr.mxu0 0.0
    %1307 = vmatpush1.msra.mxu0 0.0
    %1308 = vmatprep.subr.mxu0 0.0
    %1309 = vmatpush1.msra.mxu0 0.0
    %1310 = vmatprep.subr.mxu0 0.0
    %1311 = vmatpush1.msra.mxu0 0.0
    %1312 = vmatprep.subr.mxu0 0.0
    %1313 = vmatpush1.msra.mxu0 0.0
    %1314 = vmatprep.subr.mxu0 0.0
    %1315 = vmatpush1.msra.mxu0 0.0
    %1316 = vmatprep.subr.mxu0 0.0
    %1317 = vmatpush1.msra.mxu0 0.0
    %1318 = vmatprep.subr.mxu0 0.0
    %1319 = vmatpush1.msra.mxu0 0.0
    %1320 = vmatprep.subr.mxu0 0.0
    %1321 = vmatpush1.msra.mxu0 0.0
    %1322 = vmatprep.subr.mxu0 0.0
    %1323 = vmatpush1.msra.mxu0 0.0
    %1324 = vmatprep.subr.mxu0 0.0
    %1325 = vmatpush1.msra.mxu0 0.0
    %1326 = vmatprep.subr.mxu0 0.0
    %1327 = vmatpush1.msra.mxu0 %v1291
    %1328 = vmatprep.subr.mxu0 0.0
    %1329 = vmatpush2.msra.mxu0 0.0
    %1330 = vmatprep.subr.mxu0 0.0
    %1331 = vmatpush2.msra.mxu0 0.0
    %1332 = vmatprep.subr.mxu0 0.0
    %1333 = vmatpush2.msra.mxu0 0.0
    %1334 = vmatprep.subr.mxu0 0.0
    %1335 = vmatpush2.msra.mxu0 0.0
    %1336 = vmatprep.subr.mxu0 0.0
    %1337 = vmatpush2.msra.mxu0 0.0
    %1338 = vmatprep.subr.mxu0 0.0
    %1339 = vmatpush2.msra.mxu0 0.0
    %1340 = vmatprep.subr.mxu0 0.0
    %1341 = vmatpush2.msra.mxu0 0.0
    %1342 = vmatprep.subr.mxu0 0.0
    %1343 = vmatpush2.msra.mxu0 0.0
    %1344 = vmatprep.subr.mxu0 0.0
    %1345 = vmatpush2.msra.mxu0 0.0
    %1346 = vmatprep.subr.mxu0 0.0
    %1347 = vmatpush2.msra.mxu0 0.0
    %1348 = vmatprep.subr.mxu0 0.0
    %1349 = vmatpush2.msra.mxu0 0.0
    %1350 = vmatprep.subr.mxu0 0.0
    %1351 = vmatpush2.msra.mxu0 0.0
    %1352 = vmatprep.subr.mxu0 0.0
    %1353 = vmatpush2.msra.mxu0 0.0
    %1354 = vmatprep.subr.mxu0 0.0
    %1355 = vmatpush2.msra.mxu0 0.0
    %1356 = vmatprep.subr.mxu0 0.0
    %1357 = vmatpush2.msra.mxu0 0.0
    %1358 = vmatprep.subr.mxu0 0.0
    %1359 = vmatpush2.msra.mxu0 0.0
    %1360 = vmatprep.mubr.f32.mxu0 0.0
    %1361 = vmatmul.mubr.f32.gmra.mxu0 %v1294
    %v1362 = vpop.f32.mrf.mxu0
    %v1363 = vadd.f32 0.0, %v1362
    %v1364 = vpop.f32.mrf.mxu0
    %1365 = vdwg.mxu0
    %v1367 = vsel %vm214, %v1287, 0
    %v1370 = vsel %vm214, %v1363, 0
    %1372 = vmatprep.subr.mxu0 0.0
    %1373 = vmatpush1.msra.mxu0 0.0
    %1374 = vmatprep.subr.mxu0 0.0
    %1375 = vmatpush1.msra.mxu0 0.0
    %1376 = vmatprep.subr.mxu0 0.0
    %1377 = vmatpush1.msra.mxu0 0.0
    %1378 = vmatprep.subr.mxu0 0.0
    %1379 = vmatpush1.msra.mxu0 0.0
    %1380 = vmatprep.subr.mxu0 0.0
    %1381 = vmatpush1.msra.mxu0 0.0
    %1382 = vmatprep.subr.mxu0 0.0
    %1383 = vmatpush1.msra.mxu0 0.0
    %1384 = vmatprep.subr.mxu0 0.0
    %1385 = vmatpush1.msra.mxu0 0.0
    %1386 = vmatprep.subr.mxu0 0.0
    %1387 = vmatpush1.msra.mxu0 0.0
    %1388 = vmatprep.subr.mxu0 0.0
    %1389 = vmatpush1.msra.mxu0 0.0
    %1390 = vmatprep.subr.mxu0 0.0
    %1391 = vmatpush1.msra.mxu0 0.0
    %1392 = vmatprep.subr.mxu0 0.0
    %1393 = vmatpush1.msra.mxu0 0.0
    %1394 = vmatprep.subr.mxu0 0.0
    %1395 = vmatpush1.msra.mxu0 0.0
    %1396 = vmatprep.subr.mxu0 0.0
    %1397 = vmatpush1.msra.mxu0 0.0
    %1398 = vmatprep.subr.mxu0 0.0
    %1399 = vmatpush1.msra.mxu0 0.0
    %1400 = vmatprep.subr.mxu0 0.0
    %1401 = vmatpush1.msra.mxu0 0.0
    %1402 = vmatprep.subr.mxu0 0.0
    %1403 = vmatpush1.msra.mxu0 %v202
    %1404 = vmatprep.subr.mxu0 0.0
    %1405 = vmatpush2.msra.mxu0 0.0
    %1406 = vmatprep.subr.mxu0 0.0
    %1407 = vmatpush2.msra.mxu0 0.0
    %1408 = vmatprep.subr.mxu0 0.0
    %1409 = vmatpush2.msra.mxu0 0.0
    %1410 = vmatprep.subr.mxu0 0.0
    %1411 = vmatpush2.msra.mxu0 0.0
    %1412 = vmatprep.subr.mxu0 0.0
    %1413 = vmatpush2.msra.mxu0 0.0
    %1414 = vmatprep.subr.mxu0 0.0
    %1415 = vmatpush2.msra.mxu0 0.0
    %1416 = vmatprep.subr.mxu0 0.0
    %1417 = vmatpush2.msra.mxu0 0.0
    %1418 = vmatprep.subr.mxu0 0.0
    %1419 = vmatpush2.msra.mxu0 0.0
    %1420 = vmatprep.subr.mxu0 0.0
    %1421 = vmatpush2.msra.mxu0 0.0
    %1422 = vmatprep.subr.mxu0 0.0
    %1423 = vmatpush2.msra.mxu0 0.0
    %1424 = vmatprep.subr.mxu0 0.0
    %1425 = vmatpush2.msra.mxu0 0.0
    %1426 = vmatprep.subr.mxu0 0.0
    %1427 = vmatpush2.msra.mxu0 0.0
    %1428 = vmatprep.subr.mxu0 0.0
    %1429 = vmatpush2.msra.mxu0 0.0
    %1430 = vmatprep.subr.mxu0 0.0
    %1431 = vmatpush2.msra.mxu0 0.0
    %1432 = vmatprep.subr.mxu0 0.0
    %1433 = vmatpush2.msra.mxu0 0.0
    %1434 = vmatprep.subr.mxu0 0.0
    %1435 = vmatpush2.msra.mxu0 0.0
    %1436 = vmatprep.mubr.f32.mxu0 0.0
    %1437 = vmatmul.mubr.f32.gmra.mxu0 %v1367
    %v1438 = vpop.f32.mrf.mxu0
    %v1439 = vadd.f32 0.0, %v1438
    %v1440 = vpop.f32.mrf.mxu0
    %1441 = vmatprep.mubr.f32.mxu0 0.0
    %1442 = vmatmul.mubr.f32.gmra.mxu0 %v1370
    %v1443 = vpop.f32.mrf.mxu0
    %v1444 = vadd.f32 0.0, %v1443
    %v1445 = vpop.f32.mrf.mxu0
    %1446 = vdwg.mxu0
    %v1447 = vadd.f32 %v1034, %v1439
    %v1448 = vadd.f32 %v1035, %v1444
    %1449 = vrot.lane.b32.xlu0 %v192, 104
    %v1450 = vpop.permute.xlu0 %1449
    %1451 = vrot.lane.b32.xlu0 %v192, 72
    %v1452 = vpop.permute.xlu0 %1451
    %v1453 = vsel %vm214, %v1450, 0
    %v1455 = vsel %vm214, %v1452, 0
    %1457 = vmatprep.subr.mxu0 0.0
    %1458 = vmatpush1.xpose.msra.mxu0 0.0
    %1459 = vmatprep.subr.mxu0 0.0
    %1460 = vmatpush1.xpose.msra.mxu0 0.0
    %1461 = vmatprep.subr.mxu0 0.0
    %1462 = vmatpush1.xpose.msra.mxu0 0.0
    %1463 = vmatprep.subr.mxu0 0.0
    %1464 = vmatpush1.xpose.msra.mxu0 0.0
    %1465 = vmatprep.subr.mxu0 0.0
    %1466 = vmatpush1.xpose.msra.mxu0 0.0
    %1467 = vmatprep.subr.mxu0 0.0
    %1468 = vmatpush1.xpose.msra.mxu0 0.0
    %1469 = vmatprep.subr.mxu0 0.0
    %1470 = vmatpush1.xpose.msra.mxu0 0.0
    %1471 = vmatprep.subr.mxu0 0.0
    %1472 = vmatpush1.xpose.msra.mxu0 0.0
    %1473 = vmatprep.subr.mxu0 0.0
    %1474 = vmatpush1.xpose.msra.mxu0 0.0
    %1475 = vmatprep.subr.mxu0 0.0
    %1476 = vmatpush1.xpose.msra.mxu0 0.0
    %1477 = vmatprep.subr.mxu0 0.0
    %1478 = vmatpush1.xpose.msra.mxu0 0.0
    %1479 = vmatprep.subr.mxu0 0.0
    %1480 = vmatpush1.xpose.msra.mxu0 0.0
    %1481 = vmatprep.subr.mxu0 0.0
    %1482 = vmatpush1.xpose.msra.mxu0 0.0
    %1483 = vmatprep.subr.mxu0 0.0
    %1484 = vmatpush1.xpose.msra.mxu0 0.0
    %1485 = vmatprep.subr.mxu0 0.0
    %1486 = vmatpush1.xpose.msra.mxu0 0.0
    %1487 = vmatprep.subr.mxu0 0.0
    %1488 = vmatpush1.xpose.msra.mxu0 %v1455
    %1489 = vmatprep.subr.mxu0 0.0
    %1490 = vmatpush2.xpose.msra.mxu0 0.0
    %1491 = vmatprep.subr.mxu0 0.0
    %1492 = vmatpush2.xpose.msra.mxu0 0.0
    %1493 = vmatprep.subr.mxu0 0.0
    %1494 = vmatpush2.xpose.msra.mxu0 0.0
    %1495 = vmatprep.subr.mxu0 0.0
    %1496 = vmatpush2.xpose.msra.mxu0 0.0
    %1497 = vmatprep.subr.mxu0 0.0
    %1498 = vmatpush2.xpose.msra.mxu0 0.0
    %1499 = vmatprep.subr.mxu0 0.0
    %1500 = vmatpush2.xpose.msra.mxu0 0.0
    %1501 = vmatprep.subr.mxu0 0.0
    %1502 = vmatpush2.xpose.msra.mxu0 0.0
    %1503 = vmatprep.subr.mxu0 0.0
    %1504 = vmatpush2.xpose.msra.mxu0 0.0
    %1505 = vmatprep.subr.mxu0 0.0
    %1506 = vmatpush2.xpose.msra.mxu0 0.0
    %1507 = vmatprep.subr.mxu0 0.0
    %1508 = vmatpush2.xpose.msra.mxu0 0.0
    %1509 = vmatprep.subr.mxu0 0.0
    %1510 = vmatpush2.xpose.msra.mxu0 0.0
    %1511 = vmatprep.subr.mxu0 0.0
    %1512 = vmatpush2.xpose.msra.mxu0 0.0
    %1513 = vmatprep.subr.mxu0 0.0
    %1514 = vmatpush2.xpose.msra.mxu0 0.0
    %1515 = vmatprep.subr.mxu0 0.0
    %1516 = vmatpush2.xpose.msra.mxu0 0.0
    %1517 = vmatprep.subr.mxu0 0.0
    %1518 = vmatpush2.xpose.msra.mxu0 0.0
    %1519 = vmatprep.subr.mxu0 0.0
    %1520 = vmatpush2.xpose.msra.mxu0 0.0
    %1521 = vmatprep.mubr.f32.mxu0 0.0
    %1522 = vmatmul.mubr.f32.gmra.mxu0 %v1453
    %v1523 = vpop.f32.mrf.mxu0
    %v1524 = vadd.f32 0.0, %v1523
    %v1525 = vpop.f32.mrf.mxu0
    %1526 = vdwg.mxu0
    %1527 = vrot.lane.b32.xlu0 %v197, 104
    %v1528 = vpop.permute.xlu0 %1527
    %1529 = vrot.lane.b32.xlu0 %v197, 72
    %v1530 = vpop.permute.xlu0 %1529
    %v1531 = vsel %vm214, %v1528, 0
    %v1533 = vsel %vm214, %v1530, 0
    %1535 = vmatprep.subr.mxu0 0.0
    %1536 = vmatpush1.xpose.msra.mxu0 0.0
    %1537 = vmatprep.subr.mxu0 0.0
    %1538 = vmatpush1.xpose.msra.mxu0 0.0
    %1539 = vmatprep.subr.mxu0 0.0
    %1540 = vmatpush1.xpose.msra.mxu0 0.0
    %1541 = vmatprep.subr.mxu0 0.0
    %1542 = vmatpush1.xpose.msra.mxu0 0.0
    %1543 = vmatprep.subr.mxu0 0.0
    %1544 = vmatpush1.xpose.msra.mxu0 0.0
    %1545 = vmatprep.subr.mxu0 0.0
    %1546 = vmatpush1.xpose.msra.mxu0 0.0
    %1547 = vmatprep.subr.mxu0 0.0
    %1548 = vmatpush1.xpose.msra.mxu0 0.0
    %1549 = vmatprep.subr.mxu0 0.0
    %1550 = vmatpush1.xpose.msra.mxu0 0.0
    %1551 = vmatprep.subr.mxu0 0.0
    %1552 = vmatpush1.xpose.msra.mxu0 0.0
    %1553 = vmatprep.subr.mxu0 0.0
    %1554 = vmatpush1.xpose.msra.mxu0 0.0
    %1555 = vmatprep.subr.mxu0 0.0
    %1556 = vmatpush1.xpose.msra.mxu0 0.0
    %1557 = vmatprep.subr.mxu0 0.0
    %1558 = vmatpush1.xpose.msra.mxu0 0.0
    %1559 = vmatprep.subr.mxu0 0.0
    %1560 = vmatpush1.xpose.msra.mxu0 0.0
    %1561 = vmatprep.subr.mxu0 0.0
    %1562 = vmatpush1.xpose.msra.mxu0 0.0
    %1563 = vmatprep.subr.mxu0 0.0
    %1564 = vmatpush1.xpose.msra.mxu0 0.0
    %1565 = vmatprep.subr.mxu0 0.0
    %1566 = vmatpush1.xpose.msra.mxu0 %v1533
    %1567 = vmatprep.subr.mxu0 0.0
    %1568 = vmatpush2.xpose.msra.mxu0 0.0
    %1569 = vmatprep.subr.mxu0 0.0
    %1570 = vmatpush2.xpose.msra.mxu0 0.0
    %1571 = vmatprep.subr.mxu0 0.0
    %1572 = vmatpush2.xpose.msra.mxu0 0.0
    %1573 = vmatprep.subr.mxu0 0.0
    %1574 = vmatpush2.xpose.msra.mxu0 0.0
    %1575 = vmatprep.subr.mxu0 0.0
    %1576 = vmatpush2.xpose.msra.mxu0 0.0
    %1577 = vmatprep.subr.mxu0 0.0
    %1578 = vmatpush2.xpose.msra.mxu0 0.0
    %1579 = vmatprep.subr.mxu0 0.0
    %1580 = vmatpush2.xpose.msra.mxu0 0.0
    %1581 = vmatprep.subr.mxu0 0.0
    %1582 = vmatpush2.xpose.msra.mxu0 0.0
    %1583 = vmatprep.subr.mxu0 0.0
    %1584 = vmatpush2.xpose.msra.mxu0 0.0
    %1585 = vmatprep.subr.mxu0 0.0
    %1586 = vmatpush2.xpose.msra.mxu0 0.0
    %1587 = vmatprep.subr.mxu0 0.0
    %1588 = vmatpush2.xpose.msra.mxu0 0.0
    %1589 = vmatprep.subr.mxu0 0.0
    %1590 = vmatpush2.xpose.msra.mxu0 0.0
    %1591 = vmatprep.subr.mxu0 0.0
    %1592 = vmatpush2.xpose.msra.mxu0 0.0
    %1593 = vmatprep.subr.mxu0 0.0
    %1594 = vmatpush2.xpose.msra.mxu0 0.0
    %1595 = vmatprep.subr.mxu0 0.0
    %1596 = vmatpush2.xpose.msra.mxu0 0.0
    %1597 = vmatprep.subr.mxu0 0.0
    %1598 = vmatpush2.xpose.msra.mxu0 0.0
    %1599 = vmatprep.mubr.f32.mxu0 0.0
    %1600 = vmatmul.mubr.f32.gmra.mxu0 %v1531
    %v1601 = vpop.f32.mrf.mxu0
    %v1602 = vadd.f32 0.0, %v1601
    %v1603 = vpop.f32.mrf.mxu0
    %1604 = vdwg.mxu0
    %v1605 = vsel %vm214, %v1524, -inf
    %1606 = vmax.xlane.f32.xlu0 %v1605
    %v1607 = vpop.xlane.xlu0 %1606
    %v1608 = vsel %vm214, %v1602, -inf
    %1609 = vmax.xlane.f32.xlu0 %v1608
    %v1610 = vpop.xlane.xlu0 %1609
    %v1611 = vsub.f32 %v1524, %v1607
    %v1612 = vsub.f32 %v1602, %v1610
    %v1613 = vmul.f32 %v1611, 1.442695
    %v1614 = vpow.pop %v1613
    %v1615 = vmul.f32 %v1612, 1.442695
    %v1616 = vpow.pop %v1615
    %v1617 = vsel %vm214, %v1614, 0.0
    %1618 = vadd.xlane.f32.xlu0 %v1617
    %v1619 = vpop.xlane.xlu0 %1618
    %v1620 = vsel %vm214, %v1616, 0.0
    %1621 = vadd.xlane.f32.xlu0 %v1620
    %v1622 = vpop.xlane.xlu0 %1621
    %v1623 = vrcp.pop %v1619
    %v1624 = vrcp.pop %v1622
    %v1625 = vmul.f32 %v1614, %v1623
    %v1626 = vmul.f32 %v1616, %v1624
    %1627 = vrot.lane.b32.xlu0 %v192, 40
    %v1628 = vpop.permute.xlu0 %1627
    %v1631 = vsel %vm214, %v1625, 0
    %1633 = vmatprep.subr.mxu0 0.0
    %1634 = vmatpush1.msra.mxu0 0.0
    %1635 = vmatprep.subr.mxu0 0.0
    %1636 = vmatpush1.msra.mxu0 0.0
    %1637 = vmatprep.subr.mxu0 0.0
    %1638 = vmatpush1.msra.mxu0 0.0
    %1639 = vmatprep.subr.mxu0 0.0
    %1640 = vmatpush1.msra.mxu0 0.0
    %1641 = vmatprep.subr.mxu0 0.0
    %1642 = vmatpush1.msra.mxu0 0.0
    %1643 = vmatprep.subr.mxu0 0.0
    %1644 = vmatpush1.msra.mxu0 0.0
    %1645 = vmatprep.subr.mxu0 0.0
    %1646 = vmatpush1.msra.mxu0 0.0
    %1647 = vmatprep.subr.mxu0 0.0
    %1648 = vmatpush1.msra.mxu0 0.0
    %1649 = vmatprep.subr.mxu0 0.0
    %1650 = vmatpush1.msra.mxu0 0.0
    %1651 = vmatprep.subr.mxu0 0.0
    %1652 = vmatpush1.msra.mxu0 0.0
    %1653 = vmatprep.subr.mxu0 0.0
    %1654 = vmatpush1.msra.mxu0 0.0
    %1655 = vmatprep.subr.mxu0 0.0
    %1656 = vmatpush1.msra.mxu0 0.0
    %1657 = vmatprep.subr.mxu0 0.0
    %1658 = vmatpush1.msra.mxu0 0.0
    %1659 = vmatprep.subr.mxu0 0.0
    %1660 = vmatpush1.msra.mxu0 0.0
    %1661 = vmatprep.subr.mxu0 0.0
    %1662 = vmatpush1.msra.mxu0 0.0
    %1663 = vmatprep.subr.mxu0 0.0
    %1664 = vmatpush1.msra.mxu0 %v1628
    %1665 = vmatprep.subr.mxu0 0.0
    %1666 = vmatpush2.msra.mxu0 0.0
    %1667 = vmatprep.subr.mxu0 0.0
    %1668 = vmatpush2.msra.mxu0 0.0
    %1669 = vmatprep.subr.mxu0 0.0
    %1670 = vmatpush2.msra.mxu0 0.0
    %1671 = vmatprep.subr.mxu0 0.0
    %1672 = vmatpush2.msra.mxu0 0.0
    %1673 = vmatprep.subr.mxu0 0.0
    %1674 = vmatpush2.msra.mxu0 0.0
    %1675 = vmatprep.subr.mxu0 0.0
    %1676 = vmatpush2.msra.mxu0 0.0
    %1677 = vmatprep.subr.mxu0 0.0
    %1678 = vmatpush2.msra.mxu0 0.0
    %1679 = vmatprep.subr.mxu0 0.0
    %1680 = vmatpush2.msra.mxu0 0.0
    %1681 = vmatprep.subr.mxu0 0.0
    %1682 = vmatpush2.msra.mxu0 0.0
    %1683 = vmatprep.subr.mxu0 0.0
    %1684 = vmatpush2.msra.mxu0 0.0
    %1685 = vmatprep.subr.mxu0 0.0
    %1686 = vmatpush2.msra.mxu0 0.0
    %1687 = vmatprep.subr.mxu0 0.0
    %1688 = vmatpush2.msra.mxu0 0.0
    %1689 = vmatprep.subr.mxu0 0.0
    %1690 = vmatpush2.msra.mxu0 0.0
    %1691 = vmatprep.subr.mxu0 0.0
    %1692 = vmatpush2.msra.mxu0 0.0
    %1693 = vmatprep.subr.mxu0 0.0
    %1694 = vmatpush2.msra.mxu0 0.0
    %1695 = vmatprep.subr.mxu0 0.0
    %1696 = vmatpush2.msra.mxu0 0.0
    %1697 = vmatprep.mubr.f32.mxu0 0.0
    %1698 = vmatmul.mubr.f32.gmra.mxu0 %v1631
    %v1699 = vpop.f32.mrf.mxu0
    %v1700 = vadd.f32 0.0, %v1699
    %v1701 = vpop.f32.mrf.mxu0
    %1702 = vdwg.mxu0
    %1703 = vrot.lane.b32.xlu0 %v197, 40
    %v1704 = vpop.permute.xlu0 %1703
    %v1707 = vsel %vm214, %v1626, 0
    %1709 = vmatprep.subr.mxu0 0.0
    %1710 = vmatpush1.msra.mxu0 0.0
    %1711 = vmatprep.subr.mxu0 0.0
    %1712 = vmatpush1.msra.mxu0 0.0
    %1713 = vmatprep.subr.mxu0 0.0
    %1714 = vmatpush1.msra.mxu0 0.0
    %1715 = vmatprep.subr.mxu0 0.0
    %1716 = vmatpush1.msra.mxu0 0.0
    %1717 = vmatprep.subr.mxu0 0.0
    %1718 = vmatpush1.msra.mxu0 0.0
    %1719 = vmatprep.subr.mxu0 0.0
    %1720 = vmatpush1.msra.mxu0 0.0
    %1721 = vmatprep.subr.mxu0 0.0
    %1722 = vmatpush1.msra.mxu0 0.0
    %1723 = vmatprep.subr.mxu0 0.0
    %1724 = vmatpush1.msra.mxu0 0.0
    %1725 = vmatprep.subr.mxu0 0.0
    %1726 = vmatpush1.msra.mxu0 0.0
    %1727 = vmatprep.subr.mxu0 0.0
    %1728 = vmatpush1.msra.mxu0 0.0
    %1729 = vmatprep.subr.mxu0 0.0
    %1730 = vmatpush1.msra.mxu0 0.0
    %1731 = vmatprep.subr.mxu0 0.0
    %1732 = vmatpush1.msra.mxu0 0.0
    %1733 = vmatprep.subr.mxu0 0.0
    %1734 = vmatpush1.msra.mxu0 0.0
    %1735 = vmatprep.subr.mxu0 0.0
    %1736 = vmatpush1.msra.mxu0 0.0
    %1737 = vmatprep.subr.mxu0 0.0
    %1738 = vmatpush1.msra.mxu0 0.0
    %1739 = vmatprep.subr.mxu0 0.0
    %1740 = vmatpush1.msra.mxu0 %v1704
    %1741 = vmatprep.subr.mxu0 0.0
    %1742 = vmatpush2.msra.mxu0 0.0
    %1743 = vmatprep.subr.mxu0 0.0
    %1744 = vmatpush2.msra.mxu0 0.0
    %1745 = vmatprep.subr.mxu0 0.0
    %1746 = vmatpush2.msra.mxu0 0.0
    %1747 = vmatprep.subr.mxu0 0.0
    %1748 = vmatpush2.msra.mxu0 0.0
    %1749 = vmatprep.subr.mxu0 0.0
    %1750 = vmatpush2.msra.mxu0 0.0
    %1751 = vmatprep.subr.mxu0 0.0
    %1752 = vmatpush2.msra.mxu0 0.0
    %1753 = vmatprep.subr.mxu0 0.0
    %1754 = vmatpush2.msra.mxu0 0.0
    %1755 = vmatprep.subr.mxu0 0.0
    %1756 = vmatpush2.msra.mxu0 0.0
    %1757 = vmatprep.subr.mxu0 0.0
    %1758 = vmatpush2.msra.mxu0 0.0
    %1759 = vmatprep.subr.mxu0 0.0
    %1760 = vmatpush2.msra.mxu0 0.0
    %1761 = vmatprep.subr.mxu0 0.0
    %1762 = vmatpush2.msra.mxu0 0.0
    %1763 = vmatprep.subr.mxu0 0.0
    %1764 = vmatpush2.msra.mxu0 0.0
    %1765 = vmatprep.subr.mxu0 0.0
    %1766 = vmatpush2.msra.mxu0 0.0
    %1767 = vmatprep.subr.mxu0 0.0
    %1768 = vmatpush2.msra.mxu0 0.0
    %1769 = vmatprep.subr.mxu0 0.0
    %1770 = vmatpush2.msra.mxu0 0.0
    %1771 = vmatprep.subr.mxu0 0.0
    %1772 = vmatpush2.msra.mxu0 0.0
    %1773 = vmatprep.mubr.f32.mxu0 0.0
    %1774 = vmatmul.mubr.f32.gmra.mxu0 %v1707
    %v1775 = vpop.f32.mrf.mxu0
    %v1776 = vadd.f32 0.0, %v1775
    %v1777 = vpop.f32.mrf.mxu0
    %1778 = vdwg.mxu0
    %v1780 = vsel %vm214, %v1700, 0
    %v1783 = vsel %vm214, %v1776, 0
    %1785 = vmatprep.subr.mxu0 0.0
    %1786 = vmatpush1.msra.mxu0 0.0
    %1787 = vmatprep.subr.mxu0 0.0
    %1788 = vmatpush1.msra.mxu0 0.0
    %1789 = vmatprep.subr.mxu0 0.0
    %1790 = vmatpush1.msra.mxu0 0.0
    %1791 = vmatprep.subr.mxu0 0.0
    %1792 = vmatpush1.msra.mxu0 0.0
    %1793 = vmatprep.subr.mxu0 0.0
    %1794 = vmatpush1.msra.mxu0 0.0
    %1795 = vmatprep.subr.mxu0 0.0
    %1796 = vmatpush1.msra.mxu0 0.0
    %1797 = vmatprep.subr.mxu0 0.0
    %1798 = vmatpush1.msra.mxu0 0.0
    %1799 = vmatprep.subr.mxu0 0.0
    %1800 = vmatpush1.msra.mxu0 0.0
    %1801 = vmatprep.subr.mxu0 0.0
    %1802 = vmatpush1.msra.mxu0 0.0
    %1803 = vmatprep.subr.mxu0 0.0
    %1804 = vmatpush1.msra.mxu0 0.0
    %1805 = vmatprep.subr.mxu0 0.0
    %1806 = vmatpush1.msra.mxu0 0.0
    %1807 = vmatprep.subr.mxu0 0.0
    %1808 = vmatpush1.msra.mxu0 0.0
    %1809 = vmatprep.subr.mxu0 0.0
    %1810 = vmatpush1.msra.mxu0 0.0
    %1811 = vmatprep.subr.mxu0 0.0
    %1812 = vmatpush1.msra.mxu0 0.0
    %1813 = vmatprep.subr.mxu0 0.0
    %1814 = vmatpush1.msra.mxu0 0.0
    %1815 = vmatprep.subr.mxu0 0.0
    %1816 = vmatpush1.msra.mxu0 %v203
    %1817 = vmatprep.subr.mxu0 0.0
    %1818 = vmatpush2.msra.mxu0 0.0
    %1819 = vmatprep.subr.mxu0 0.0
    %1820 = vmatpush2.msra.mxu0 0.0
    %1821 = vmatprep.subr.mxu0 0.0
    %1822 = vmatpush2.msra.mxu0 0.0
    %1823 = vmatprep.subr.mxu0 0.0
    %1824 = vmatpush2.msra.mxu0 0.0
    %1825 = vmatprep.subr.mxu0 0.0
    %1826 = vmatpush2.msra.mxu0 0.0
    %1827 = vmatprep.subr.mxu0 0.0
    %1828 = vmatpush2.msra.mxu0 0.0
    %1829 = vmatprep.subr.mxu0 0.0
    %1830 = vmatpush2.msra.mxu0 0.0
    %1831 = vmatprep.subr.mxu0 0.0
    %1832 = vmatpush2.msra.mxu0 0.0
    %1833 = vmatprep.subr.mxu0 0.0
    %1834 = vmatpush2.msra.mxu0 0.0
    %1835 = vmatprep.subr.mxu0 0.0
    %1836 = vmatpush2.msra.mxu0 0.0
    %1837 = vmatprep.subr.mxu0 0.0
    %1838 = vmatpush2.msra.mxu0 0.0
    %1839 = vmatprep.subr.mxu0 0.0
    %1840 = vmatpush2.msra.mxu0 0.0
    %1841 = vmatprep.subr.mxu0 0.0
    %1842 = vmatpush2.msra.mxu0 0.0
    %1843 = vmatprep.subr.mxu0 0.0
    %1844 = vmatpush2.msra.mxu0 0.0
    %1845 = vmatprep.subr.mxu0 0.0
    %1846 = vmatpush2.msra.mxu0 0.0
    %1847 = vmatprep.subr.mxu0 0.0
    %1848 = vmatpush2.msra.mxu0 0.0
    %1849 = vmatprep.mubr.f32.mxu0 0.0
    %1850 = vmatmul.mubr.f32.gmra.mxu0 %v1780
    %v1851 = vpop.f32.mrf.mxu0
    %v1852 = vadd.f32 0.0, %v1851
    %v1853 = vpop.f32.mrf.mxu0
    %1854 = vmatprep.mubr.f32.mxu0 0.0
    %1855 = vmatmul.mubr.f32.gmra.mxu0 %v1783
    %v1856 = vpop.f32.mrf.mxu0
    %v1857 = vadd.f32 0.0, %v1856
    %v1858 = vpop.f32.mrf.mxu0
    %1859 = vdwg.mxu0
    %v1860 = vadd.f32 %v1447, %v1852
    %v1861 = vadd.f32 %v1448, %v1857
    %v1862 = vld [vmem:[%s6] sm:$0x1]
    %v1863 = vld [vmem:[%s7] sm:$0x1]
    %v1864 = vsel %vm72, %v1860, 0.0
    %1865 = vadd.xlane.f32.xlu0 %v1864
    %v1866 = vpop.xlane.xlu0 %1865
    %v1867 = vsel %vm72, %v1861, 0.0
    %1868 = vadd.xlane.f32.xlu0 %v1867
    %v1869 = vpop.xlane.xlu0 %1868
    %v1870 = vmul.f32 %v1860, %v1860
    %v1871 = vmul.f32 %v1861, %v1861
    %v1872 = vsel %vm72, %v1870, 0.0
    %1873 = vadd.xlane.f32.xlu0 %v1872
    %v1874 = vpop.xlane.xlu0 %1873
    %v1875 = vsel %vm72, %v1871, 0.0
    %1876 = vadd.xlane.f32.xlu0 %v1875
    %v1877 = vpop.xlane.xlu0 %1876
    %v1878 = vmul.f32 %v1866, 0.03125
    %v1879 = vmul.f32 %v1869, 0.03125
    %v1880 = vmul.f32 %v1874, 0.03125
    %v1881 = vmul.f32 %v1877, 0.03125
    %v1882 = vmul.f32 %v1878, %v1878
    %v1883 = vmul.f32 %v1879, %v1879
    %v1884 = vsub.f32 %v1880, %v1882
    %v1885 = vsub.f32 %v1881, %v1883
    %v1886 = vadd.f32 %v1884, 1e-05
    %v1887 = vadd.f32 %v1885, 1e-05
    %v1888 = vrsqrt.pop %v1886
    %v1889 = vrsqrt.pop %v1887
    %v1890 = vsub.f32 %v1860, %v1878
    %v1891 = vsub.f32 %v1861, %v1879
    %v1892 = vmul.f32 %v1890, %v1888
    %v1893 = vmul.f32 %v1891, %v1889
    %v1894 = vlaneseq
    %v1895 = vshrl.u32 %v1894, 7
    %v1896 = vsub.s32 0, %v1895
    %v1897 = vrot.slane %v1862, %v1896
    %v1898 = vmul.f32 %v1892, %v1897
    %v1899 = vmul.f32 %v1893, %v1897
    %v1900 = vlaneseq
    %v1901 = vshrl.u32 %v1900, 7
    %v1902 = vsub.s32 0, %v1901
    %v1903 = vrot.slane %v1863, %v1902
    %v1904 = vadd.f32 %v1898, %v1903
    %v1905 = vadd.f32 %v1899, %v1903
    %v1906 = vld [vmem:[%s8] sm:$0xff]
    %v1907 = vld [vmem:[%s8 + $0x8] sm:$0xff]
    %v1908 = vld [vmem:[%s8 + $0x10] sm:$0xff]
    %v1909 = vld [vmem:[%s8 + $0x18] sm:$0xff]
    %v1910 = vld [vmem:[%s9] sm:$0x1]
    %v1911 = vlaneseq
    %v1912 = vshrl.u32 %v1911, 7
    %v1913 = vsub.s32 0, %v1912
    %v1914 = vrot.slane %v1910, %v1913
    %v1916 = vsel %vm72, %v1904, 0
    %v1919 = vsel %vm72, %v1905, 0
    %1921 = vmatprep.subr.mxu0 0.0
    %1922 = vmatpush1.msra.mxu0 0.0
    %1923 = vmatprep.subr.mxu0 0.0
    %1924 = vmatpush1.msra.mxu0 0.0
    %1925 = vmatprep.subr.mxu0 0.0
    %1926 = vmatpush1.msra.mxu0 0.0
    %1927 = vmatprep.subr.mxu0 0.0
    %1928 = vmatpush1.msra.mxu0 0.0
    %1929 = vmatprep.subr.mxu0 0.0
    %1930 = vmatpush1.msra.mxu0 0.0
    %1931 = vmatprep.subr.mxu0 0.0
    %1932 = vmatpush1.msra.mxu0 0.0
    %1933 = vmatprep.subr.mxu0 0.0
    %1934 = vmatpush1.msra.mxu0 0.0
    %1935 = vmatprep.subr.mxu0 0.0
    %1936 = vmatpush1.msra.mxu0 0.0
    %1937 = vmatprep.subr.mxu0 0.0
    %1938 = vmatpush1.msra.mxu0 0.0
    %1939 = vmatprep.subr.mxu0 0.0
    %1940 = vmatpush1.msra.mxu0 0.0
    %1941 = vmatprep.subr.mxu0 0.0
    %1942 = vmatpush1.msra.mxu0 0.0
    %1943 = vmatprep.subr.mxu0 0.0
    %1944 = vmatpush1.msra.mxu0 0.0
    %1945 = vmatprep.subr.mxu0 0.0
    %1946 = vmatpush1.msra.mxu0 %v1909
    %1947 = vmatprep.subr.mxu0 0.0
    %1948 = vmatpush1.msra.mxu0 %v1908
    %1949 = vmatprep.subr.mxu0 0.0
    %1950 = vmatpush1.msra.mxu0 %v1907
    %1951 = vmatprep.subr.mxu0 0.0
    %1952 = vmatpush1.msra.mxu0 %v1906
    %1953 = vmatprep.subr.mxu0 0.0
    %1954 = vmatpush2.msra.mxu0 0.0
    %1955 = vmatprep.subr.mxu0 0.0
    %1956 = vmatpush2.msra.mxu0 0.0
    %1957 = vmatprep.subr.mxu0 0.0
    %1958 = vmatpush2.msra.mxu0 0.0
    %1959 = vmatprep.subr.mxu0 0.0
    %1960 = vmatpush2.msra.mxu0 0.0
    %1961 = vmatprep.subr.mxu0 0.0
    %1962 = vmatpush2.msra.mxu0 0.0
    %1963 = vmatprep.subr.mxu0 0.0
    %1964 = vmatpush2.msra.mxu0 0.0
    %1965 = vmatprep.subr.mxu0 0.0
    %1966 = vmatpush2.msra.mxu0 0.0
    %1967 = vmatprep.subr.mxu0 0.0
    %1968 = vmatpush2.msra.mxu0 0.0
    %1969 = vmatprep.subr.mxu0 0.0
    %1970 = vmatpush2.msra.mxu0 0.0
    %1971 = vmatprep.subr.mxu0 0.0
    %1972 = vmatpush2.msra.mxu0 0.0
    %1973 = vmatprep.subr.mxu0 0.0
    %1974 = vmatpush2.msra.mxu0 0.0
    %1975 = vmatprep.subr.mxu0 0.0
    %1976 = vmatpush2.msra.mxu0 0.0
    %1977 = vmatprep.subr.mxu0 0.0
    %1978 = vmatpush2.msra.mxu0 0.0
    %1979 = vmatprep.subr.mxu0 0.0
    %1980 = vmatpush2.msra.mxu0 0.0
    %1981 = vmatprep.subr.mxu0 0.0
    %1982 = vmatpush2.msra.mxu0 0.0
    %1983 = vmatprep.subr.mxu0 0.0
    %1984 = vmatpush2.msra.mxu0 0.0
    %1985 = vmatprep.mubr.f32.mxu0 0.0
    %1986 = vmatmul.mubr.f32.gmra.mxu0 %v1916
    %v1987 = vpop.f32.mrf.mxu0
    %v1988 = vadd.f32 %v1914, %v1987
    %v1989 = vpop.f32.mrf.mxu0
    %1990 = vmatprep.mubr.f32.mxu0 0.0
    %1991 = vmatmul.mubr.f32.gmra.mxu0 %v1919
    %v1992 = vpop.f32.mrf.mxu0
    %v1993 = vadd.f32 %v1914, %v1992
    %v1994 = vpop.f32.mrf.mxu0
    %1995 = vdwg.mxu0
    %v1996 = vmul.f32 %v1988, 0.5
    %v1997 = vmul.f32 %v1993, 0.5
    %v1998 = vrcp.pop 1.4142135
    %v1999 = vmul.f32 %v1988, %v1998
    %v2000 = vmul.f32 %v1993, %v1998
    %v2001 = verf.f32.pop %v1999
    %v2002 = verf.f32.pop %v2000
    %v2003 = vadd.f32 %v2001, 1.0
    %v2004 = vadd.f32 %v2002, 1.0
    %v2005 = vmul.f32 %v1996, %v2003
    %v2006 = vmul.f32 %v1997, %v2004
    %v2007 = vld [vmem:[%s10] sm:$0xff]
    %v2008 = vld [vmem:[%s10 + $0x8] sm:$0xff]
    %v2009 = vld [vmem:[%s10 + $0x10] sm:$0xff]
    %v2010 = vld [vmem:[%s10 + $0x18] sm:$0xff]
    %v2011 = vld [vmem:[%s10 + $0x20] sm:$0xff]
    %v2012 = vld [vmem:[%s10 + $0x28] sm:$0xff]
    %v2013 = vld [vmem:[%s10 + $0x30] sm:$0xff]
    %v2014 = vld [vmem:[%s10 + $0x38] sm:$0xff]
    %v2015 = vld [vmem:[%s11] sm:$0x1]
    %v2016 = vlaneseq
    %v2017 = vshrl.u32 %v2016, 7
    %v2018 = vsub.s32 0, %v2017
    %v2019 = vrot.slane %v2015, %v2018
    %vm2020 = vcmask 523264
    %v2022 = vsel %vm2020, %v2005, 0
    %v2025 = vsel %vm2020, %v2006, 0
    %2027 = vmatprep.subr.mxu0 0.0
    %2028 = vmatpush1.msra.mxu0 0.0
    %2029 = vmatprep.subr.mxu0 0.0
    %2030 = vmatpush1.msra.mxu0 0.0
    %2031 = vmatprep.subr.mxu0 0.0
    %2032 = vmatpush1.msra.mxu0 0.0
    %2033 = vmatprep.subr.mxu0 0.0
    %2034 = vmatpush1.msra.mxu0 0.0
    %2035 = vmatprep.subr.mxu0 0.0
    %2036 = vmatpush1.msra.mxu0 0.0
    %2037 = vmatprep.subr.mxu0 0.0
    %2038 = vmatpush1.msra.mxu0 0.0
    %2039 = vmatprep.subr.mxu0 0.0
    %2040 = vmatpush1.msra.mxu0 0.0
    %2041 = vmatprep.subr.mxu0 0.0
    %2042 = vmatpush1.msra.mxu0 0.0
    %2043 = vmatprep.subr.mxu0 0.0
    %2044 = vmatpush1.msra.mxu0 %v2014
    %2045 = vmatprep.subr.mxu0 0.0
    %2046 = vmatpush1.msra.mxu0 %v2013
    %2047 = vmatprep.subr.mxu0 0.0
    %2048 = vmatpush1.msra.mxu0 %v2012
    %2049 = vmatprep.subr.mxu0 0.0
    %2050 = vmatpush1.msra.mxu0 %v2011
    %2051 = vmatprep.subr.mxu0 0.0
    %2052 = vmatpush1.msra.mxu0 %v2010
    %2053 = vmatprep.subr.mxu0 0.0
    %2054 = vmatpush1.msra.mxu0 %v2009
    %2055 = vmatprep.subr.mxu0 0.0
    %2056 = vmatpush1.msra.mxu0 %v2008
    %2057 = vmatprep.subr.mxu0 0.0
    %2058 = vmatpush1.msra.mxu0 %v2007
    %2059 = vmatprep.subr.mxu0 0.0
    %2060 = vmatpush2.msra.mxu0 0.0
    %2061 = vmatprep.subr.mxu0 0.0
    %2062 = vmatpush2.msra.mxu0 0.0
    %2063 = vmatprep.subr.mxu0 0.0
    %2064 = vmatpush2.msra.mxu0 0.0
    %2065 = vmatprep.subr.mxu0 0.0
    %2066 = vmatpush2.msra.mxu0 0.0
    %2067 = vmatprep.subr.mxu0 0.0
    %2068 = vmatpush2.msra.mxu0 0.0
    %2069 = vmatprep.subr.mxu0 0.0
    %2070 = vmatpush2.msra.mxu0 0.0
    %2071 = vmatprep.subr.mxu0 0.0
    %2072 = vmatpush2.msra.mxu0 0.0
    %2073 = vmatprep.subr.mxu0 0.0
    %2074 = vmatpush2.msra.mxu0 0.0
    %2075 = vmatprep.subr.mxu0 0.0
    %2076 = vmatpush2.msra.mxu0 0.0
    %2077 = vmatprep.subr.mxu0 0.0
    %2078 = vmatpush2.msra.mxu0 0.0
    %2079 = vmatprep.subr.mxu0 0.0
    %2080 = vmatpush2.msra.mxu0 0.0
    %2081 = vmatprep.subr.mxu0 0.0
    %2082 = vmatpush2.msra.mxu0 0.0
    %2083 = vmatprep.subr.mxu0 0.0
    %2084 = vmatpush2.msra.mxu0 0.0
    %2085 = vmatprep.subr.mxu0 0.0
    %2086 = vmatpush2.msra.mxu0 0.0
    %2087 = vmatprep.subr.mxu0 0.0
    %2088 = vmatpush2.msra.mxu0 0.0
    %2089 = vmatprep.subr.mxu0 0.0
    %2090 = vmatpush2.msra.mxu0 0.0
    %2091 = vmatprep.mubr.f32.mxu0 0.0
    %2092 = vmatmul.mubr.f32.gmra.mxu0 %v2022
    %v2093 = vpop.f32.mrf.mxu0
    %v2094 = vadd.f32 %v2019, %v2093
    %v2095 = vpop.f32.mrf.mxu0
    %2096 = vmatprep.mubr.f32.mxu0 0.0
    %2097 = vmatmul.mubr.f32.gmra.mxu0 %v2025
    %v2098 = vpop.f32.mrf.mxu0
    %v2099 = vadd.f32 %v2019, %v2098
    %v2100 = vpop.f32.mrf.mxu0
    %2101 = vdwg.mxu0
    %v2102 = vadd.f32 %v2094, %v1860
    %v2103 = vadd.f32 %v2099, %v1861
    %v2104 = vld [vmem:[%s1 + $0x1] sm:$0x1]
    %v2105 = vld [vmem:[#allocation5 + $0x1] sm:$0x1]
    %v2106 = vsel %vm72, %v2102, 0.0
    %2107 = vadd.xlane.f32.xlu0 %v2106
    %v2108 = vpop.xlane.xlu0 %2107
    %v2109 = vsel %vm72, %v2103, 0.0
    %2110 = vadd.xlane.f32.xlu0 %v2109
    %v2111 = vpop.xlane.xlu0 %2110
    %v2112 = vmul.f32 %v2102, %v2102
    %v2113 = vmul.f32 %v2103, %v2103
    %v2114 = vsel %vm72, %v2112, 0.0
    %2115 = vadd.xlane.f32.xlu0 %v2114
    %v2116 = vpop.xlane.xlu0 %2115
    %v2117 = vsel %vm72, %v2113, 0.0
    %2118 = vadd.xlane.f32.xlu0 %v2117
    %v2119 = vpop.xlane.xlu0 %2118
    %v2120 = vmul.f32 %v2108, 0.03125
    %v2121 = vmul.f32 %v2111, 0.03125
    %v2122 = vmul.f32 %v2116, 0.03125
    %v2123 = vmul.f32 %v2119, 0.03125
    %v2124 = vmul.f32 %v2120, %v2120
    %v2125 = vmul.f32 %v2121, %v2121
    %v2126 = vsub.f32 %v2122, %v2124
    %v2127 = vsub.f32 %v2123, %v2125
    %v2128 = vadd.f32 %v2126, 1e-05
    %v2129 = vadd.f32 %v2127, 1e-05
    %v2130 = vrsqrt.pop %v2128
    %v2131 = vrsqrt.pop %v2129
    %v2132 = vsub.f32 %v2102, %v2120
    %v2133 = vsub.f32 %v2103, %v2121
    %v2134 = vmul.f32 %v2132, %v2130
    %v2135 = vmul.f32 %v2133, %v2131
    %v2136 = vlaneseq
    %v2137 = vshrl.u32 %v2136, 7
    %v2138 = vsub.s32 0, %v2137
    %v2139 = vrot.slane %v2104, %v2138
    %v2140 = vmul.f32 %v2134, %v2139
    %v2141 = vmul.f32 %v2135, %v2139
    %v2142 = vlaneseq
    %v2143 = vshrl.u32 %v2142, 7
    %v2144 = vsub.s32 0, %v2143
    %v2145 = vrot.slane %v2105, %v2144
    %v2146 = vadd.f32 %v2140, %v2145
    %v2147 = vadd.f32 %v2141, %v2145
    %s2148 = scalar_lea.vmem %s3, 32
    %v2149 = vld [vmem:[%s2148] sm:$0xff]
    %v2150 = vld [vmem:[%s2148 + $0x8] sm:$0xff]
    %v2151 = vld [vmem:[%s2148 + $0x10] sm:$0xff]
    %v2152 = vld [vmem:[%s2148 + $0x18] sm:$0xff]
    %v2154 = vsel %vm72, %v2146, 0
    %v2157 = vsel %vm72, %v2147, 0
    %2159 = vmatprep.subr.mxu0 0.0
    %2160 = vmatpush1.msra.mxu0 0.0
    %2161 = vmatprep.subr.mxu0 0.0
    %2162 = vmatpush1.msra.mxu0 0.0
    %2163 = vmatprep.subr.mxu0 0.0
    %2164 = vmatpush1.msra.mxu0 0.0
    %2165 = vmatprep.subr.mxu0 0.0
    %2166 = vmatpush1.msra.mxu0 0.0
    %2167 = vmatprep.subr.mxu0 0.0
    %2168 = vmatpush1.msra.mxu0 0.0
    %2169 = vmatprep.subr.mxu0 0.0
    %2170 = vmatpush1.msra.mxu0 0.0
    %2171 = vmatprep.subr.mxu0 0.0
    %2172 = vmatpush1.msra.mxu0 0.0
    %2173 = vmatprep.subr.mxu0 0.0
    %2174 = vmatpush1.msra.mxu0 0.0
    %2175 = vmatprep.subr.mxu0 0.0
    %2176 = vmatpush1.msra.mxu0 0.0
    %2177 = vmatprep.subr.mxu0 0.0
    %2178 = vmatpush1.msra.mxu0 0.0
    %2179 = vmatprep.subr.mxu0 0.0
    %2180 = vmatpush1.msra.mxu0 0.0
    %2181 = vmatprep.subr.mxu0 0.0
    %2182 = vmatpush1.msra.mxu0 0.0
    %2183 = vmatprep.subr.mxu0 0.0
    %2184 = vmatpush1.msra.mxu0 %v2152
    %2185 = vmatprep.subr.mxu0 0.0
    %2186 = vmatpush1.msra.mxu0 %v2151
    %2187 = vmatprep.subr.mxu0 0.0
    %2188 = vmatpush1.msra.mxu0 %v2150
    %2189 = vmatprep.subr.mxu0 0.0
    %2190 = vmatpush1.msra.mxu0 %v2149
    %2191 = vmatprep.subr.mxu0 0.0
    %2192 = vmatpush2.msra.mxu0 0.0
    %2193 = vmatprep.subr.mxu0 0.0
    %2194 = vmatpush2.msra.mxu0 0.0
    %2195 = vmatprep.subr.mxu0 0.0
    %2196 = vmatpush2.msra.mxu0 0.0
    %2197 = vmatprep.subr.mxu0 0.0
    %2198 = vmatpush2.msra.mxu0 0.0
    %2199 = vmatprep.subr.mxu0 0.0
    %2200 = vmatpush2.msra.mxu0 0.0
    %2201 = vmatprep.subr.mxu0 0.0
    %2202 = vmatpush2.msra.mxu0 0.0
    %2203 = vmatprep.subr.mxu0 0.0
    %2204 = vmatpush2.msra.mxu0 0.0
    %2205 = vmatprep.subr.mxu0 0.0
    %2206 = vmatpush2.msra.mxu0 0.0
    %2207 = vmatprep.subr.mxu0 0.0
    %2208 = vmatpush2.msra.mxu0 0.0
    %2209 = vmatprep.subr.mxu0 0.0
    %2210 = vmatpush2.msra.mxu0 0.0
    %2211 = vmatprep.subr.mxu0 0.0
    %2212 = vmatpush2.msra.mxu0 0.0
    %2213 = vmatprep.subr.mxu0 0.0
    %2214 = vmatpush2.msra.mxu0 0.0
    %2215 = vmatprep.subr.mxu0 0.0
    %2216 = vmatpush2.msra.mxu0 0.0
    %2217 = vmatprep.subr.mxu0 0.0
    %2218 = vmatpush2.msra.mxu0 0.0
    %2219 = vmatprep.subr.mxu0 0.0
    %2220 = vmatpush2.msra.mxu0 0.0
    %2221 = vmatprep.subr.mxu0 0.0
    %2222 = vmatpush2.msra.mxu0 0.0
    %2223 = vmatprep.mubr.f32.mxu0 0.0
    %2224 = vmatmul.mubr.f32.gmra.mxu0 %v2154
    %v2225 = vpop.f32.mrf.mxu0
    %v2226 = vadd.f32 0.0, %v2225
    %v2227 = vpop.f32.mrf.mxu0
    %2228 = vmatprep.mubr.f32.mxu0 0.0
    %2229 = vmatmul.mubr.f32.gmra.mxu0 %v2157
    %v2230 = vpop.f32.mrf.mxu0
    %v2231 = vadd.f32 0.0, %v2230
    %v2232 = vpop.f32.mrf.mxu0
    %2233 = vdwg.mxu0
    %s2234 = scalar_lea.vmem %s4, 32
    %v2235 = vld [vmem:[%s2234] sm:$0xff]
    %v2236 = vld [vmem:[%s2234 + $0x8] sm:$0xff]
    %v2237 = vld [vmem:[%s2234 + $0x10] sm:$0xff]
    %v2238 = vld [vmem:[%s2234 + $0x18] sm:$0xff]
    %v2239 = vld [vmem:[%s5 + $0x1] sm:$0x1]
    %v2240 = vlaneseq
    %v2241 = vshrl.u32 %v2240, 7
    %v2242 = vsub.s32 0, %v2241
    %v2243 = vrot.slane %v2239, %v2242
    %v2244 = vadd.f32 %v2102, %v2243
    %v2245 = vadd.f32 %v2103, %v2243
    %2247 = vrot.lane.b32.xlu0 %v2226, 96
    %v2248 = vpop.permute.xlu0 %2247
    %v2249 = vsel %vm214, %v2226, 0
    %v2251 = vsel %vm214, %v2248, 0
    %2253 = vmatprep.subr.mxu0 0.0
    %2254 = vmatpush1.xpose.msra.mxu0 0.0
    %2255 = vmatprep.subr.mxu0 0.0
    %2256 = vmatpush1.xpose.msra.mxu0 0.0
    %2257 = vmatprep.subr.mxu0 0.0
    %2258 = vmatpush1.xpose.msra.mxu0 0.0
    %2259 = vmatprep.subr.mxu0 0.0
    %2260 = vmatpush1.xpose.msra.mxu0 0.0
    %2261 = vmatprep.subr.mxu0 0.0
    %2262 = vmatpush1.xpose.msra.mxu0 0.0
    %2263 = vmatprep.subr.mxu0 0.0
    %2264 = vmatpush1.xpose.msra.mxu0 0.0
    %2265 = vmatprep.subr.mxu0 0.0
    %2266 = vmatpush1.xpose.msra.mxu0 0.0
    %2267 = vmatprep.subr.mxu0 0.0
    %2268 = vmatpush1.xpose.msra.mxu0 0.0
    %2269 = vmatprep.subr.mxu0 0.0
    %2270 = vmatpush1.xpose.msra.mxu0 0.0
    %2271 = vmatprep.subr.mxu0 0.0
    %2272 = vmatpush1.xpose.msra.mxu0 0.0
    %2273 = vmatprep.subr.mxu0 0.0
    %2274 = vmatpush1.xpose.msra.mxu0 0.0
    %2275 = vmatprep.subr.mxu0 0.0
    %2276 = vmatpush1.xpose.msra.mxu0 0.0
    %2277 = vmatprep.subr.mxu0 0.0
    %2278 = vmatpush1.xpose.msra.mxu0 0.0
    %2279 = vmatprep.subr.mxu0 0.0
    %2280 = vmatpush1.xpose.msra.mxu0 0.0
    %2281 = vmatprep.subr.mxu0 0.0
    %2282 = vmatpush1.xpose.msra.mxu0 0.0
    %2283 = vmatprep.subr.mxu0 0.0
    %2284 = vmatpush1.xpose.msra.mxu0 %v2251
    %2285 = vmatprep.subr.mxu0 0.0
    %2286 = vmatpush2.xpose.msra.mxu0 0.0
    %2287 = vmatprep.subr.mxu0 0.0
    %2288 = vmatpush2.xpose.msra.mxu0 0.0
    %2289 = vmatprep.subr.mxu0 0.0
    %2290 = vmatpush2.xpose.msra.mxu0 0.0
    %2291 = vmatprep.subr.mxu0 0.0
    %2292 = vmatpush2.xpose.msra.mxu0 0.0
    %2293 = vmatprep.subr.mxu0 0.0
    %2294 = vmatpush2.xpose.msra.mxu0 0.0
    %2295 = vmatprep.subr.mxu0 0.0
    %2296 = vmatpush2.xpose.msra.mxu0 0.0
    %2297 = vmatprep.subr.mxu0 0.0
    %2298 = vmatpush2.xpose.msra.mxu0 0.0
    %2299 = vmatprep.subr.mxu0 0.0
    %2300 = vmatpush2.xpose.msra.mxu0 0.0
    %2301 = vmatprep.subr.mxu0 0.0
    %2302 = vmatpush2.xpose.msra.mxu0 0.0
    %2303 = vmatprep.subr.mxu0 0.0
    %2304 = vmatpush2.xpose.msra.mxu0 0.0
    %2305 = vmatprep.subr.mxu0 0.0
    %2306 = vmatpush2.xpose.msra.mxu0 0.0
    %2307 = vmatprep.subr.mxu0 0.0
    %2308 = vmatpush2.xpose.msra.mxu0 0.0
    %2309 = vmatprep.subr.mxu0 0.0
    %2310 = vmatpush2.xpose.msra.mxu0 0.0
    %2311 = vmatprep.subr.mxu0 0.0
    %2312 = vmatpush2.xpose.msra.mxu0 0.0
    %2313 = vmatprep.subr.mxu0 0.0
    %2314 = vmatpush2.xpose.msra.mxu0 0.0
    %2315 = vmatprep.subr.mxu0 0.0
    %2316 = vmatpush2.xpose.msra.mxu0 0.0
    %2317 = vmatprep.mubr.f32.mxu0 0.0
    %2318 = vmatmul.mubr.f32.gmra.mxu0 %v2249
    %v2319 = vpop.f32.mrf.mxu0
    %v2320 = vadd.f32 0.0, %v2319
    %v2321 = vpop.f32.mrf.mxu0
    %2322 = vdwg.mxu0
    %2324 = vrot.lane.b32.xlu0 %v2231, 96
    %v2325 = vpop.permute.xlu0 %2324
    %v2326 = vsel %vm214, %v2231, 0
    %v2328 = vsel %vm214, %v2325, 0
    %2330 = vmatprep.subr.mxu0 0.0
    %2331 = vmatpush1.xpose.msra.mxu0 0.0
    %2332 = vmatprep.subr.mxu0 0.0
    %2333 = vmatpush1.xpose.msra.mxu0 0.0
    %2334 = vmatprep.subr.mxu0 0.0
    %2335 = vmatpush1.xpose.msra.mxu0 0.0
    %2336 = vmatprep.subr.mxu0 0.0
    %2337 = vmatpush1.xpose.msra.mxu0 0.0
    %2338 = vmatprep.subr.mxu0 0.0
    %2339 = vmatpush1.xpose.msra.mxu0 0.0
    %2340 = vmatprep.subr.mxu0 0.0
    %2341 = vmatpush1.xpose.msra.mxu0 0.0
    %2342 = vmatprep.subr.mxu0 0.0
    %2343 = vmatpush1.xpose.msra.mxu0 0.0
    %2344 = vmatprep.subr.mxu0 0.0
    %2345 = vmatpush1.xpose.msra.mxu0 0.0
    %2346 = vmatprep.subr.mxu0 0.0
    %2347 = vmatpush1.xpose.msra.mxu0 0.0
    %2348 = vmatprep.subr.mxu0 0.0
    %2349 = vmatpush1.xpose.msra.mxu0 0.0
    %2350 = vmatprep.subr.mxu0 0.0
    %2351 = vmatpush1.xpose.msra.mxu0 0.0
    %2352 = vmatprep.subr.mxu0 0.0
    %2353 = vmatpush1.xpose.msra.mxu0 0.0
    %2354 = vmatprep.subr.mxu0 0.0
    %2355 = vmatpush1.xpose.msra.mxu0 0.0
    %2356 = vmatprep.subr.mxu0 0.0
    %2357 = vmatpush1.xpose.msra.mxu0 0.0
    %2358 = vmatprep.subr.mxu0 0.0
    %2359 = vmatpush1.xpose.msra.mxu0 0.0
    %2360 = vmatprep.subr.mxu0 0.0
    %2361 = vmatpush1.xpose.msra.mxu0 %v2328
    %2362 = vmatprep.subr.mxu0 0.0
    %2363 = vmatpush2.xpose.msra.mxu0 0.0
    %2364 = vmatprep.subr.mxu0 0.0
    %2365 = vmatpush2.xpose.msra.mxu0 0.0
    %2366 = vmatprep.subr.mxu0 0.0
    %2367 = vmatpush2.xpose.msra.mxu0 0.0
    %2368 = vmatprep.subr.mxu0 0.0
    %2369 = vmatpush2.xpose.msra.mxu0 0.0
    %2370 = vmatprep.subr.mxu0 0.0
    %2371 = vmatpush2.xpose.msra.mxu0 0.0
    %2372 = vmatprep.subr.mxu0 0.0
    %2373 = vmatpush2.xpose.msra.mxu0 0.0
    %2374 = vmatprep.subr.mxu0 0.0
    %2375 = vmatpush2.xpose.msra.mxu0 0.0
    %2376 = vmatprep.subr.mxu0 0.0
    %2377 = vmatpush2.xpose.msra.mxu0 0.0
    %2378 = vmatprep.subr.mxu0 0.0
    %2379 = vmatpush2.xpose.msra.mxu0 0.0
    %2380 = vmatprep.subr.mxu0 0.0
    %2381 = vmatpush2.xpose.msra.mxu0 0.0
    %2382 = vmatprep.subr.mxu0 0.0
    %2383 = vmatpush2.xpose.msra.mxu0 0.0
    %2384 = vmatprep.subr.mxu0 0.0
    %2385 = vmatpush2.xpose.msra.mxu0 0.0
    %2386 = vmatprep.subr.mxu0 0.0
    %2387 = vmatpush2.xpose.msra.mxu0 0.0
    %2388 = vmatprep.subr.mxu0 0.0
    %2389 = vmatpush2.xpose.msra.mxu0 0.0
    %2390 = vmatprep.subr.mxu0 0.0
    %2391 = vmatpush2.xpose.msra.mxu0 0.0
    %2392 = vmatprep.subr.mxu0 0.0
    %2393 = vmatpush2.xpose.msra.mxu0 0.0
    %2394 = vmatprep.mubr.f32.mxu0 0.0
    %2395 = vmatmul.mubr.f32.gmra.mxu0 %v2326
    %v2396 = vpop.f32.mrf.mxu0
    %v2397 = vadd.f32 0.0, %v2396
    %v2398 = vpop.f32.mrf.mxu0
    %2399 = vdwg.mxu0
    %v2400 = vsel %vm214, %v2320, -inf
    %2401 = vmax.xlane.f32.xlu0 %v2400
    %v2402 = vpop.xlane.xlu0 %2401
    %v2403 = vsel %vm214, %v2397, -inf
    %2404 = vmax.xlane.f32.xlu0 %v2403
    %v2405 = vpop.xlane.xlu0 %2404
    %v2406 = vsub.f32 %v2320, %v2402
    %v2407 = vsub.f32 %v2397, %v2405
    %v2408 = vmul.f32 %v2406, 1.442695
    %v2409 = vpow.pop %v2408
    %v2410 = vmul.f32 %v2407, 1.442695
    %v2411 = vpow.pop %v2410
    %v2412 = vsel %vm214, %v2409, 0.0
    %2413 = vadd.xlane.f32.xlu0 %v2412
    %v2414 = vpop.xlane.xlu0 %2413
    %v2415 = vsel %vm214, %v2411, 0.0
    %2416 = vadd.xlane.f32.xlu0 %v2415
    %v2417 = vpop.xlane.xlu0 %2416
    %v2418 = vrcp.pop %v2414
    %v2419 = vrcp.pop %v2417
    %v2420 = vmul.f32 %v2409, %v2418
    %v2421 = vmul.f32 %v2411, %v2419
    %2422 = vrot.lane.b32.xlu0 %v2226, 64
    %v2423 = vpop.permute.xlu0 %2422
    %v2426 = vsel %vm214, %v2420, 0
    %2428 = vmatprep.subr.mxu0 0.0
    %2429 = vmatpush1.msra.mxu0 0.0
    %2430 = vmatprep.subr.mxu0 0.0
    %2431 = vmatpush1.msra.mxu0 0.0
    %2432 = vmatprep.subr.mxu0 0.0
    %2433 = vmatpush1.msra.mxu0 0.0
    %2434 = vmatprep.subr.mxu0 0.0
    %2435 = vmatpush1.msra.mxu0 0.0
    %2436 = vmatprep.subr.mxu0 0.0
    %2437 = vmatpush1.msra.mxu0 0.0
    %2438 = vmatprep.subr.mxu0 0.0
    %2439 = vmatpush1.msra.mxu0 0.0
    %2440 = vmatprep.subr.mxu0 0.0
    %2441 = vmatpush1.msra.mxu0 0.0
    %2442 = vmatprep.subr.mxu0 0.0
    %2443 = vmatpush1.msra.mxu0 0.0
    %2444 = vmatprep.subr.mxu0 0.0
    %2445 = vmatpush1.msra.mxu0 0.0
    %2446 = vmatprep.subr.mxu0 0.0
    %2447 = vmatpush1.msra.mxu0 0.0
    %2448 = vmatprep.subr.mxu0 0.0
    %2449 = vmatpush1.msra.mxu0 0.0
    %2450 = vmatprep.subr.mxu0 0.0
    %2451 = vmatpush1.msra.mxu0 0.0
    %2452 = vmatprep.subr.mxu0 0.0
    %2453 = vmatpush1.msra.mxu0 0.0
    %2454 = vmatprep.subr.mxu0 0.0
    %2455 = vmatpush1.msra.mxu0 0.0
    %2456 = vmatprep.subr.mxu0 0.0
    %2457 = vmatpush1.msra.mxu0 0.0
    %2458 = vmatprep.subr.mxu0 0.0
    %2459 = vmatpush1.msra.mxu0 %v2423
    %2460 = vmatprep.subr.mxu0 0.0
    %2461 = vmatpush2.msra.mxu0 0.0
    %2462 = vmatprep.subr.mxu0 0.0
    %2463 = vmatpush2.msra.mxu0 0.0
    %2464 = vmatprep.subr.mxu0 0.0
    %2465 = vmatpush2.msra.mxu0 0.0
    %2466 = vmatprep.subr.mxu0 0.0
    %2467 = vmatpush2.msra.mxu0 0.0
    %2468 = vmatprep.subr.mxu0 0.0
    %2469 = vmatpush2.msra.mxu0 0.0
    %2470 = vmatprep.subr.mxu0 0.0
    %2471 = vmatpush2.msra.mxu0 0.0
    %2472 = vmatprep.subr.mxu0 0.0
    %2473 = vmatpush2.msra.mxu0 0.0
    %2474 = vmatprep.subr.mxu0 0.0
    %2475 = vmatpush2.msra.mxu0 0.0
    %2476 = vmatprep.subr.mxu0 0.0
    %2477 = vmatpush2.msra.mxu0 0.0
    %2478 = vmatprep.subr.mxu0 0.0
    %2479 = vmatpush2.msra.mxu0 0.0
    %2480 = vmatprep.subr.mxu0 0.0
    %2481 = vmatpush2.msra.mxu0 0.0
    %2482 = vmatprep.subr.mxu0 0.0
    %2483 = vmatpush2.msra.mxu0 0.0
    %2484 = vmatprep.subr.mxu0 0.0
    %2485 = vmatpush2.msra.mxu0 0.0
    %2486 = vmatprep.subr.mxu0 0.0
    %2487 = vmatpush2.msra.mxu0 0.0
    %2488 = vmatprep.subr.mxu0 0.0
    %2489 = vmatpush2.msra.mxu0 0.0
    %2490 = vmatprep.subr.mxu0 0.0
    %2491 = vmatpush2.msra.mxu0 0.0
    %2492 = vmatprep.mubr.f32.mxu0 0.0
    %2493 = vmatmul.mubr.f32.gmra.mxu0 %v2426
    %v2494 = vpop.f32.mrf.mxu0
    %v2495 = vadd.f32 0.0, %v2494
    %v2496 = vpop.f32.mrf.mxu0
    %2497 = vdwg.mxu0
    %2498 = vrot.lane.b32.xlu0 %v2231, 64
    %v2499 = vpop.permute.xlu0 %2498
    %v2502 = vsel %vm214, %v2421, 0
    %2504 = vmatprep.subr.mxu0 0.0
    %2505 = vmatpush1.msra.mxu0 0.0
    %2506 = vmatprep.subr.mxu0 0.0
    %2507 = vmatpush1.msra.mxu0 0.0
    %2508 = vmatprep.subr.mxu0 0.0
    %2509 = vmatpush1.msra.mxu0 0.0
    %2510 = vmatprep.subr.mxu0 0.0
    %2511 = vmatpush1.msra.mxu0 0.0
    %2512 = vmatprep.subr.mxu0 0.0
    %2513 = vmatpush1.msra.mxu0 0.0
    %2514 = vmatprep.subr.mxu0 0.0
    %2515 = vmatpush1.msra.mxu0 0.0
    %2516 = vmatprep.subr.mxu0 0.0
    %2517 = vmatpush1.msra.mxu0 0.0
    %2518 = vmatprep.subr.mxu0 0.0
    %2519 = vmatpush1.msra.mxu0 0.0
    %2520 = vmatprep.subr.mxu0 0.0
    %2521 = vmatpush1.msra.mxu0 0.0
    %2522 = vmatprep.subr.mxu0 0.0
    %2523 = vmatpush1.msra.mxu0 0.0
    %2524 = vmatprep.subr.mxu0 0.0
    %2525 = vmatpush1.msra.mxu0 0.0
    %2526 = vmatprep.subr.mxu0 0.0
    %2527 = vmatpush1.msra.mxu0 0.0
    %2528 = vmatprep.subr.mxu0 0.0
    %2529 = vmatpush1.msra.mxu0 0.0
    %2530 = vmatprep.subr.mxu0 0.0
    %2531 = vmatpush1.msra.mxu0 0.0
    %2532 = vmatprep.subr.mxu0 0.0
    %2533 = vmatpush1.msra.mxu0 0.0
    %2534 = vmatprep.subr.mxu0 0.0
    %2535 = vmatpush1.msra.mxu0 %v2499
    %2536 = vmatprep.subr.mxu0 0.0
    %2537 = vmatpush2.msra.mxu0 0.0
    %2538 = vmatprep.subr.mxu0 0.0
    %2539 = vmatpush2.msra.mxu0 0.0
    %2540 = vmatprep.subr.mxu0 0.0
    %2541 = vmatpush2.msra.mxu0 0.0
    %2542 = vmatprep.subr.mxu0 0.0
    %2543 = vmatpush2.msra.mxu0 0.0
    %2544 = vmatprep.subr.mxu0 0.0
    %2545 = vmatpush2.msra.mxu0 0.0
    %2546 = vmatprep.subr.mxu0 0.0
    %2547 = vmatpush2.msra.mxu0 0.0
    %2548 = vmatprep.subr.mxu0 0.0
    %2549 = vmatpush2.msra.mxu0 0.0
    %2550 = vmatprep.subr.mxu0 0.0
    %2551 = vmatpush2.msra.mxu0 0.0
    %2552 = vmatprep.subr.mxu0 0.0
    %2553 = vmatpush2.msra.mxu0 0.0
    %2554 = vmatprep.subr.mxu0 0.0
    %2555 = vmatpush2.msra.mxu0 0.0
    %2556 = vmatprep.subr.mxu0 0.0
    %2557 = vmatpush2.msra.mxu0 0.0
    %2558 = vmatprep.subr.mxu0 0.0
    %2559 = vmatpush2.msra.mxu0 0.0
    %2560 = vmatprep.subr.mxu0 0.0
    %2561 = vmatpush2.msra.mxu0 0.0
    %2562 = vmatprep.subr.mxu0 0.0
    %2563 = vmatpush2.msra.mxu0 0.0
    %2564 = vmatprep.subr.mxu0 0.0
    %2565 = vmatpush2.msra.mxu0 0.0
    %2566 = vmatprep.subr.mxu0 0.0
    %2567 = vmatpush2.msra.mxu0 0.0
    %2568 = vmatprep.mubr.f32.mxu0 0.0
    %2569 = vmatmul.mubr.f32.gmra.mxu0 %v2502
    %v2570 = vpop.f32.mrf.mxu0
    %v2571 = vadd.f32 0.0, %v2570
    %v2572 = vpop.f32.mrf.mxu0
    %2573 = vdwg.mxu0
    %v2575 = vsel %vm214, %v2495, 0
    %v2578 = vsel %vm214, %v2571, 0
    %2580 = vmatprep.subr.mxu0 0.0
    %2581 = vmatpush1.msra.mxu0 0.0
    %2582 = vmatprep.subr.mxu0 0.0
    %2583 = vmatpush1.msra.mxu0 0.0
    %2584 = vmatprep.subr.mxu0 0.0
    %2585 = vmatpush1.msra.mxu0 0.0
    %2586 = vmatprep.subr.mxu0 0.0
    %2587 = vmatpush1.msra.mxu0 0.0
    %2588 = vmatprep.subr.mxu0 0.0
    %2589 = vmatpush1.msra.mxu0 0.0
    %2590 = vmatprep.subr.mxu0 0.0
    %2591 = vmatpush1.msra.mxu0 0.0
    %2592 = vmatprep.subr.mxu0 0.0
    %2593 = vmatpush1.msra.mxu0 0.0
    %2594 = vmatprep.subr.mxu0 0.0
    %2595 = vmatpush1.msra.mxu0 0.0
    %2596 = vmatprep.subr.mxu0 0.0
    %2597 = vmatpush1.msra.mxu0 0.0
    %2598 = vmatprep.subr.mxu0 0.0
    %2599 = vmatpush1.msra.mxu0 0.0
    %2600 = vmatprep.subr.mxu0 0.0
    %2601 = vmatpush1.msra.mxu0 0.0
    %2602 = vmatprep.subr.mxu0 0.0
    %2603 = vmatpush1.msra.mxu0 0.0
    %2604 = vmatprep.subr.mxu0 0.0
    %2605 = vmatpush1.msra.mxu0 0.0
    %2606 = vmatprep.subr.mxu0 0.0
    %2607 = vmatpush1.msra.mxu0 0.0
    %2608 = vmatprep.subr.mxu0 0.0
    %2609 = vmatpush1.msra.mxu0 0.0
    %2610 = vmatprep.subr.mxu0 0.0
    %2611 = vmatpush1.msra.mxu0 %v2235
    %2612 = vmatprep.subr.mxu0 0.0
    %2613 = vmatpush2.msra.mxu0 0.0
    %2614 = vmatprep.subr.mxu0 0.0
    %2615 = vmatpush2.msra.mxu0 0.0
    %2616 = vmatprep.subr.mxu0 0.0
    %2617 = vmatpush2.msra.mxu0 0.0
    %2618 = vmatprep.subr.mxu0 0.0
    %2619 = vmatpush2.msra.mxu0 0.0
    %2620 = vmatprep.subr.mxu0 0.0
    %2621 = vmatpush2.msra.mxu0 0.0
    %2622 = vmatprep.subr.mxu0 0.0
    %2623 = vmatpush2.msra.mxu0 0.0
    %2624 = vmatprep.subr.mxu0 0.0
    %2625 = vmatpush2.msra.mxu0 0.0
    %2626 = vmatprep.subr.mxu0 0.0
    %2627 = vmatpush2.msra.mxu0 0.0
    %2628 = vmatprep.subr.mxu0 0.0
    %2629 = vmatpush2.msra.mxu0 0.0
    %2630 = vmatprep.subr.mxu0 0.0
    %2631 = vmatpush2.msra.mxu0 0.0
    %2632 = vmatprep.subr.mxu0 0.0
    %2633 = vmatpush2.msra.mxu0 0.0
    %2634 = vmatprep.subr.mxu0 0.0
    %2635 = vmatpush2.msra.mxu0 0.0
    %2636 = vmatprep.subr.mxu0 0.0
    %2637 = vmatpush2.msra.mxu0 0.0
    %2638 = vmatprep.subr.mxu0 0.0
    %2639 = vmatpush2.msra.mxu0 0.0
    %2640 = vmatprep.subr.mxu0 0.0
    %2641 = vmatpush2.msra.mxu0 0.0
    %2642 = vmatprep.subr.mxu0 0.0
    %2643 = vmatpush2.msra.mxu0 0.0
    %2644 = vmatprep.mubr.f32.mxu0 0.0
    %2645 = vmatmul.mubr.f32.gmra.mxu0 %v2575
    %v2646 = vpop.f32.mrf.mxu0
    %v2647 = vadd.f32 0.0, %v2646
    %v2648 = vpop.f32.mrf.mxu0
    %2649 = vmatprep.mubr.f32.mxu0 0.0
    %2650 = vmatmul.mubr.f32.gmra.mxu0 %v2578
    %v2651 = vpop.f32.mrf.mxu0
    %v2652 = vadd.f32 0.0, %v2651
    %v2653 = vpop.f32.mrf.mxu0
    %2654 = vdwg.mxu0
    %v2655 = vadd.f32 %v2244, %v2647
    %v2656 = vadd.f32 %v2245, %v2652
    %2657 = vrot.lane.b32.xlu0 %v2226, 120
    %v2658 = vpop.permute.xlu0 %2657
    %2659 = vrot.lane.b32.xlu0 %v2226, 88
    %v2660 = vpop.permute.xlu0 %2659
    %v2661 = vsel %vm214, %v2658, 0
    %v2663 = vsel %vm214, %v2660, 0
    %2665 = vmatprep.subr.mxu0 0.0
    %2666 = vmatpush1.xpose.msra.mxu0 0.0
    %2667 = vmatprep.subr.mxu0 0.0
    %2668 = vmatpush1.xpose.msra.mxu0 0.0
    %2669 = vmatprep.subr.mxu0 0.0
    %2670 = vmatpush1.xpose.msra.mxu0 0.0
    %2671 = vmatprep.subr.mxu0 0.0
    %2672 = vmatpush1.xpose.msra.mxu0 0.0
    %2673 = vmatprep.subr.mxu0 0.0
    %2674 = vmatpush1.xpose.msra.mxu0 0.0
    %2675 = vmatprep.subr.mxu0 0.0
    %2676 = vmatpush1.xpose.msra.mxu0 0.0
    %2677 = vmatprep.subr.mxu0 0.0
    %2678 = vmatpush1.xpose.msra.mxu0 0.0
    %2679 = vmatprep.subr.mxu0 0.0
    %2680 = vmatpush1.xpose.msra.mxu0 0.0
    %2681 = vmatprep.subr.mxu0 0.0
    %2682 = vmatpush1.xpose.msra.mxu0 0.0
    %2683 = vmatprep.subr.mxu0 0.0
    %2684 = vmatpush1.xpose.msra.mxu0 0.0
    %2685 = vmatprep.subr.mxu0 0.0
    %2686 = vmatpush1.xpose.msra.mxu0 0.0
    %2687 = vmatprep.subr.mxu0 0.0
    %2688 = vmatpush1.xpose.msra.mxu0 0.0
    %2689 = vmatprep.subr.mxu0 0.0
    %2690 = vmatpush1.xpose.msra.mxu0 0.0
    %2691 = vmatprep.subr.mxu0 0.0
    %2692 = vmatpush1.xpose.msra.mxu0 0.0
    %2693 = vmatprep.subr.mxu0 0.0
    %2694 = vmatpush1.xpose.msra.mxu0 0.0
    %2695 = vmatprep.subr.mxu0 0.0
    %2696 = vmatpush1.xpose.msra.mxu0 %v2663
    %2697 = vmatprep.subr.mxu0 0.0
    %2698 = vmatpush2.xpose.msra.mxu0 0.0
    %2699 = vmatprep.subr.mxu0 0.0
    %2700 = vmatpush2.xpose.msra.mxu0 0.0
    %2701 = vmatprep.subr.mxu0 0.0
    %2702 = vmatpush2.xpose.msra.mxu0 0.0
    %2703 = vmatprep.subr.mxu0 0.0
    %2704 = vmatpush2.xpose.msra.mxu0 0.0
    %2705 = vmatprep.subr.mxu0 0.0
    %2706 = vmatpush2.xpose.msra.mxu0 0.0
    %2707 = vmatprep.subr.mxu0 0.0
    %2708 = vmatpush2.xpose.msra.mxu0 0.0
    %2709 = vmatprep.subr.mxu0 0.0
    %2710 = vmatpush2.xpose.msra.mxu0 0.0
    %2711 = vmatprep.subr.mxu0 0.0
    %2712 = vmatpush2.xpose.msra.mxu0 0.0
    %2713 = vmatprep.subr.mxu0 0.0
    %2714 = vmatpush2.xpose.msra.mxu0 0.0
    %2715 = vmatprep.subr.mxu0 0.0
    %2716 = vmatpush2.xpose.msra.mxu0 0.0
    %2717 = vmatprep.subr.mxu0 0.0
    %2718 = vmatpush2.xpose.msra.mxu0 0.0
    %2719 = vmatprep.subr.mxu0 0.0
    %2720 = vmatpush2.xpose.msra.mxu0 0.0
    %2721 = vmatprep.subr.mxu0 0.0
    %2722 = vmatpush2.xpose.msra.mxu0 0.0
    %2723 = vmatprep.subr.mxu0 0.0
    %2724 = vmatpush2.xpose.msra.mxu0 0.0
    %2725 = vmatprep.subr.mxu0 0.0
    %2726 = vmatpush2.xpose.msra.mxu0 0.0
    %2727 = vmatprep.subr.mxu0 0.0
    %2728 = vmatpush2.xpose.msra.mxu0 0.0
    %2729 = vmatprep.mubr.f32.mxu0 0.0
    %2730 = vmatmul.mubr.f32.gmra.mxu0 %v2661
    %v2731 = vpop.f32.mrf.mxu0
    %v2732 = vadd.f32 0.0, %v2731
    %v2733 = vpop.f32.mrf.mxu0
    %2734 = vdwg.mxu0
    %2735 = vrot.lane.b32.xlu0 %v2231, 120
    %v2736 = vpop.permute.xlu0 %2735
    %2737 = vrot.lane.b32.xlu0 %v2231, 88
    %v2738 = vpop.permute.xlu0 %2737
    %v2739 = vsel %vm214, %v2736, 0
    %v2741 = vsel %vm214, %v2738, 0
    %2743 = vmatprep.subr.mxu0 0.0
    %2744 = vmatpush1.xpose.msra.mxu0 0.0
    %2745 = vmatprep.subr.mxu0 0.0
    %2746 = vmatpush1.xpose.msra.mxu0 0.0
    %2747 = vmatprep.subr.mxu0 0.0
    %2748 = vmatpush1.xpose.msra.mxu0 0.0
    %2749 = vmatprep.subr.mxu0 0.0
    %2750 = vmatpush1.xpose.msra.mxu0 0.0
    %2751 = vmatprep.subr.mxu0 0.0
    %2752 = vmatpush1.xpose.msra.mxu0 0.0
    %2753 = vmatprep.subr.mxu0 0.0
    %2754 = vmatpush1.xpose.msra.mxu0 0.0
    %2755 = vmatprep.subr.mxu0 0.0
    %2756 = vmatpush1.xpose.msra.mxu0 0.0
    %2757 = vmatprep.subr.mxu0 0.0
    %2758 = vmatpush1.xpose.msra.mxu0 0.0
    %2759 = vmatprep.subr.mxu0 0.0
    %2760 = vmatpush1.xpose.msra.mxu0 0.0
    %2761 = vmatprep.subr.mxu0 0.0
    %2762 = vmatpush1.xpose.msra.mxu0 0.0
    %2763 = vmatprep.subr.mxu0 0.0
    %2764 = vmatpush1.xpose.msra.mxu0 0.0
    %2765 = vmatprep.subr.mxu0 0.0
    %2766 = vmatpush1.xpose.msra.mxu0 0.0
    %2767 = vmatprep.subr.mxu0 0.0
    %2768 = vmatpush1.xpose.msra.mxu0 0.0
    %2769 = vmatprep.subr.mxu0 0.0
    %2770 = vmatpush1.xpose.msra.mxu0 0.0
    %2771 = vmatprep.subr.mxu0 0.0
    %2772 = vmatpush1.xpose.msra.mxu0 0.0
    %2773 = vmatprep.subr.mxu0 0.0
    %2774 = vmatpush1.xpose.msra.mxu0 %v2741
    %2775 = vmatprep.subr.mxu0 0.0
    %2776 = vmatpush2.xpose.msra.mxu0 0.0
    %2777 = vmatprep.subr.mxu0 0.0
    %2778 = vmatpush2.xpose.msra.mxu0 0.0
    %2779 = vmatprep.subr.mxu0 0.0
    %2780 = vmatpush2.xpose.msra.mxu0 0.0
    %2781 = vmatprep.subr.mxu0 0.0
    %2782 = vmatpush2.xpose.msra.mxu0 0.0
    %2783 = vmatprep.subr.mxu0 0.0
    %2784 = vmatpush2.xpose.msra.mxu0 0.0
    %2785 = vmatprep.subr.mxu0 0.0
    %2786 = vmatpush2.xpose.msra.mxu0 0.0
    %2787 = vmatprep.subr.mxu0 0.0
    %2788 = vmatpush2.xpose.msra.mxu0 0.0
    %2789 = vmatprep.subr.mxu0 0.0
    %2790 = vmatpush2.xpose.msra.mxu0 0.0
    %2791 = vmatprep.subr.mxu0 0.0
    %2792 = vmatpush2.xpose.msra.mxu0 0.0
    %2793 = vmatprep.subr.mxu0 0.0
    %2794 = vmatpush2.xpose.msra.mxu0 0.0
    %2795 = vmatprep.subr.mxu0 0.0
    %2796 = vmatpush2.xpose.msra.mxu0 0.0
    %2797 = vmatprep.subr.mxu0 0.0
    %2798 = vmatpush2.xpose.msra.mxu0 0.0
    %2799 = vmatprep.subr.mxu0 0.0
    %2800 = vmatpush2.xpose.msra.mxu0 0.0
    %2801 = vmatprep.subr.mxu0 0.0
    %2802 = vmatpush2.xpose.msra.mxu0 0.0
    %2803 = vmatprep.subr.mxu0 0.0
    %2804 = vmatpush2.xpose.msra.mxu0 0.0
    %2805 = vmatprep.subr.mxu0 0.0
    %2806 = vmatpush2.xpose.msra.mxu0 0.0
    %2807 = vmatprep.mubr.f32.mxu0 0.0
    %2808 = vmatmul.mubr.f32.gmra.mxu0 %v2739
    %v2809 = vpop.f32.mrf.mxu0
    %v2810 = vadd.f32 0.0, %v2809
    %v2811 = vpop.f32.mrf.mxu0
    %2812 = vdwg.mxu0
    %v2813 = vsel %vm214, %v2732, -inf
    %2814 = vmax.xlane.f32.xlu0 %v2813
    %v2815 = vpop.xlane.xlu0 %2814
    %v2816 = vsel %vm214, %v2810, -inf
    %2817 = vmax.xlane.f32.xlu0 %v2816
    %v2818 = vpop.xlane.xlu0 %2817
    %v2819 = vsub.f32 %v2732, %v2815
    %v2820 = vsub.f32 %v2810, %v2818
    %v2821 = vmul.f32 %v2819, 1.442695
    %v2822 = vpow.pop %v2821
    %v2823 = vmul.f32 %v2820, 1.442695
    %v2824 = vpow.pop %v2823
    %v2825 = vsel %vm214, %v2822, 0.0
    %2826 = vadd.xlane.f32.xlu0 %v2825
    %v2827 = vpop.xlane.xlu0 %2826
    %v2828 = vsel %vm214, %v2824, 0.0
    %2829 = vadd.xlane.f32.xlu0 %v2828
    %v2830 = vpop.xlane.xlu0 %2829
    %v2831 = vrcp.pop %v2827
    %v2832 = vrcp.pop %v2830
    %v2833 = vmul.f32 %v2822, %v2831
    %v2834 = vmul.f32 %v2824, %v2832
    %2835 = vrot.lane.b32.xlu0 %v2226, 56
    %v2836 = vpop.permute.xlu0 %2835
    %v2839 = vsel %vm214, %v2833, 0
    %2841 = vmatprep.subr.mxu0 0.0
    %2842 = vmatpush1.msra.mxu0 0.0
    %2843 = vmatprep.subr.mxu0 0.0
    %2844 = vmatpush1.msra.mxu0 0.0
    %2845 = vmatprep.subr.mxu0 0.0
    %2846 = vmatpush1.msra.mxu0 0.0
    %2847 = vmatprep.subr.mxu0 0.0
    %2848 = vmatpush1.msra.mxu0 0.0
    %2849 = vmatprep.subr.mxu0 0.0
    %2850 = vmatpush1.msra.mxu0 0.0
    %2851 = vmatprep.subr.mxu0 0.0
    %2852 = vmatpush1.msra.mxu0 0.0
    %2853 = vmatprep.subr.mxu0 0.0
    %2854 = vmatpush1.msra.mxu0 0.0
    %2855 = vmatprep.subr.mxu0 0.0
    %2856 = vmatpush1.msra.mxu0 0.0
    %2857 = vmatprep.subr.mxu0 0.0
    %2858 = vmatpush1.msra.mxu0 0.0
    %2859 = vmatprep.subr.mxu0 0.0
    %2860 = vmatpush1.msra.mxu0 0.0
    %2861 = vmatprep.subr.mxu0 0.0
    %2862 = vmatpush1.msra.mxu0 0.0
    %2863 = vmatprep.subr.mxu0 0.0
    %2864 = vmatpush1.msra.mxu0 0.0
    %2865 = vmatprep.subr.mxu0 0.0
    %2866 = vmatpush1.msra.mxu0 0.0
    %2867 = vmatprep.subr.mxu0 0.0
    %2868 = vmatpush1.msra.mxu0 0.0
    %2869 = vmatprep.subr.mxu0 0.0
    %2870 = vmatpush1.msra.mxu0 0.0
    %2871 = vmatprep.subr.mxu0 0.0
    %2872 = vmatpush1.msra.mxu0 %v2836
    %2873 = vmatprep.subr.mxu0 0.0
    %2874 = vmatpush2.msra.mxu0 0.0
    %2875 = vmatprep.subr.mxu0 0.0
    %2876 = vmatpush2.msra.mxu0 0.0
    %2877 = vmatprep.subr.mxu0 0.0
    %2878 = vmatpush2.msra.mxu0 0.0
    %2879 = vmatprep.subr.mxu0 0.0
    %2880 = vmatpush2.msra.mxu0 0.0
    %2881 = vmatprep.subr.mxu0 0.0
    %2882 = vmatpush2.msra.mxu0 0.0
    %2883 = vmatprep.subr.mxu0 0.0
    %2884 = vmatpush2.msra.mxu0 0.0
    %2885 = vmatprep.subr.mxu0 0.0
    %2886 = vmatpush2.msra.mxu0 0.0
    %2887 = vmatprep.subr.mxu0 0.0
    %2888 = vmatpush2.msra.mxu0 0.0
    %2889 = vmatprep.subr.mxu0 0.0
    %2890 = vmatpush2.msra.mxu0 0.0
    %2891 = vmatprep.subr.mxu0 0.0
    %2892 = vmatpush2.msra.mxu0 0.0
    %2893 = vmatprep.subr.mxu0 0.0
    %2894 = vmatpush2.msra.mxu0 0.0
    %2895 = vmatprep.subr.mxu0 0.0
    %2896 = vmatpush2.msra.mxu0 0.0
    %2897 = vmatprep.subr.mxu0 0.0
    %2898 = vmatpush2.msra.mxu0 0.0
    %2899 = vmatprep.subr.mxu0 0.0
    %2900 = vmatpush2.msra.mxu0 0.0
    %2901 = vmatprep.subr.mxu0 0.0
    %2902 = vmatpush2.msra.mxu0 0.0
    %2903 = vmatprep.subr.mxu0 0.0
    %2904 = vmatpush2.msra.mxu0 0.0
    %2905 = vmatprep.mubr.f32.mxu0 0.0
    %2906 = vmatmul.mubr.f32.gmra.mxu0 %v2839
    %v2907 = vpop.f32.mrf.mxu0
    %v2908 = vadd.f32 0.0, %v2907
    %v2909 = vpop.f32.mrf.mxu0
    %2910 = vdwg.mxu0
    %2911 = vrot.lane.b32.xlu0 %v2231, 56
    %v2912 = vpop.permute.xlu0 %2911
    %v2915 = vsel %vm214, %v2834, 0
    %2917 = vmatprep.subr.mxu0 0.0
    %2918 = vmatpush1.msra.mxu0 0.0
    %2919 = vmatprep.subr.mxu0 0.0
    %2920 = vmatpush1.msra.mxu0 0.0
    %2921 = vmatprep.subr.mxu0 0.0
    %2922 = vmatpush1.msra.mxu0 0.0
    %2923 = vmatprep.subr.mxu0 0.0
    %2924 = vmatpush1.msra.mxu0 0.0
    %2925 = vmatprep.subr.mxu0 0.0
    %2926 = vmatpush1.msra.mxu0 0.0
    %2927 = vmatprep.subr.mxu0 0.0
    %2928 = vmatpush1.msra.mxu0 0.0
    %2929 = vmatprep.subr.mxu0 0.0
    %2930 = vmatpush1.msra.mxu0 0.0
    %2931 = vmatprep.subr.mxu0 0.0
    %2932 = vmatpush1.msra.mxu0 0.0
    %2933 = vmatprep.subr.mxu0 0.0
    %2934 = vmatpush1.msra.mxu0 0.0
    %2935 = vmatprep.subr.mxu0 0.0
    %2936 = vmatpush1.msra.mxu0 0.0
    %2937 = vmatprep.subr.mxu0 0.0
    %2938 = vmatpush1.msra.mxu0 0.0
    %2939 = vmatprep.subr.mxu0 0.0
    %2940 = vmatpush1.msra.mxu0 0.0
    %2941 = vmatprep.subr.mxu0 0.0
    %2942 = vmatpush1.msra.mxu0 0.0
    %2943 = vmatprep.subr.mxu0 0.0
    %2944 = vmatpush1.msra.mxu0 0.0
    %2945 = vmatprep.subr.mxu0 0.0
    %2946 = vmatpush1.msra.mxu0 0.0
    %2947 = vmatprep.subr.mxu0 0.0
    %2948 = vmatpush1.msra.mxu0 %v2912
    %2949 = vmatprep.subr.mxu0 0.0
    %2950 = vmatpush2.msra.mxu0 0.0
    %2951 = vmatprep.subr.mxu0 0.0
    %2952 = vmatpush2.msra.mxu0 0.0
    %2953 = vmatprep.subr.mxu0 0.0
    %2954 = vmatpush2.msra.mxu0 0.0
    %2955 = vmatprep.subr.mxu0 0.0
    %2956 = vmatpush2.msra.mxu0 0.0
    %2957 = vmatprep.subr.mxu0 0.0
    %2958 = vmatpush2.msra.mxu0 0.0
    %2959 = vmatprep.subr.mxu0 0.0
    %2960 = vmatpush2.msra.mxu0 0.0
    %2961 = vmatprep.subr.mxu0 0.0
    %2962 = vmatpush2.msra.mxu0 0.0
    %2963 = vmatprep.subr.mxu0 0.0
    %2964 = vmatpush2.msra.mxu0 0.0
    %2965 = vmatprep.subr.mxu0 0.0
    %2966 = vmatpush2.msra.mxu0 0.0
    %2967 = vmatprep.subr.mxu0 0.0
    %2968 = vmatpush2.msra.mxu0 0.0
    %2969 = vmatprep.subr.mxu0 0.0
    %2970 = vmatpush2.msra.mxu0 0.0
    %2971 = vmatprep.subr.mxu0 0.0
    %2972 = vmatpush2.msra.mxu0 0.0
    %2973 = vmatprep.subr.mxu0 0.0
    %2974 = vmatpush2.msra.mxu0 0.0
    %2975 = vmatprep.subr.mxu0 0.0
    %2976 = vmatpush2.msra.mxu0 0.0
    %2977 = vmatprep.subr.mxu0 0.0
    %2978 = vmatpush2.msra.mxu0 0.0
    %2979 = vmatprep.subr.mxu0 0.0
    %2980 = vmatpush2.msra.mxu0 0.0
    %2981 = vmatprep.mubr.f32.mxu0 0.0
    %2982 = vmatmul.mubr.f32.gmra.mxu0 %v2915
    %v2983 = vpop.f32.mrf.mxu0
    %v2984 = vadd.f32 0.0, %v2983
    %v2985 = vpop.f32.mrf.mxu0
    %2986 = vdwg.mxu0
    %v2988 = vsel %vm214, %v2908, 0
    %v2991 = vsel %vm214, %v2984, 0
    %2993 = vmatprep.subr.mxu0 0.0
    %2994 = vmatpush1.msra.mxu0 0.0
    %2995 = vmatprep.subr.mxu0 0.0
    %2996 = vmatpush1.msra.mxu0 0.0
    %2997 = vmatprep.subr.mxu0 0.0
    %2998 = vmatpush1.msra.mxu0 0.0
    %2999 = vmatprep.subr.mxu0 0.0
    %3000 = vmatpush1.msra.mxu0 0.0
    %3001 = vmatprep.subr.mxu0 0.0
    %3002 = vmatpush1.msra.mxu0 0.0
    %3003 = vmatprep.subr.mxu0 0.0
    %3004 = vmatpush1.msra.mxu0 0.0
    %3005 = vmatprep.subr.mxu0 0.0
    %3006 = vmatpush1.msra.mxu0 0.0
    %3007 = vmatprep.subr.mxu0 0.0
    %3008 = vmatpush1.msra.mxu0 0.0
    %3009 = vmatprep.subr.mxu0 0.0
    %3010 = vmatpush1.msra.mxu0 0.0
    %3011 = vmatprep.subr.mxu0 0.0
    %3012 = vmatpush1.msra.mxu0 0.0
    %3013 = vmatprep.subr.mxu0 0.0
    %3014 = vmatpush1.msra.mxu0 0.0
    %3015 = vmatprep.subr.mxu0 0.0
    %3016 = vmatpush1.msra.mxu0 0.0
    %3017 = vmatprep.subr.mxu0 0.0
    %3018 = vmatpush1.msra.mxu0 0.0
    %3019 = vmatprep.subr.mxu0 0.0
    %3020 = vmatpush1.msra.mxu0 0.0
    %3021 = vmatprep.subr.mxu0 0.0
    %3022 = vmatpush1.msra.mxu0 0.0
    %3023 = vmatprep.subr.mxu0 0.0
    %3024 = vmatpush1.msra.mxu0 %v2236
    %3025 = vmatprep.subr.mxu0 0.0
    %3026 = vmatpush2.msra.mxu0 0.0
    %3027 = vmatprep.subr.mxu0 0.0
    %3028 = vmatpush2.msra.mxu0 0.0
    %3029 = vmatprep.subr.mxu0 0.0
    %3030 = vmatpush2.msra.mxu0 0.0
    %3031 = vmatprep.subr.mxu0 0.0
    %3032 = vmatpush2.msra.mxu0 0.0
    %3033 = vmatprep.subr.mxu0 0.0
    %3034 = vmatpush2.msra.mxu0 0.0
    %3035 = vmatprep.subr.mxu0 0.0
    %3036 = vmatpush2.msra.mxu0 0.0
    %3037 = vmatprep.subr.mxu0 0.0
    %3038 = vmatpush2.msra.mxu0 0.0
    %3039 = vmatprep.subr.mxu0 0.0
    %3040 = vmatpush2.msra.mxu0 0.0
    %3041 = vmatprep.subr.mxu0 0.0
    %3042 = vmatpush2.msra.mxu0 0.0
    %3043 = vmatprep.subr.mxu0 0.0
    %3044 = vmatpush2.msra.mxu0 0.0
    %3045 = vmatprep.subr.mxu0 0.0
    %3046 = vmatpush2.msra.mxu0 0.0
    %3047 = vmatprep.subr.mxu0 0.0
    %3048 = vmatpush2.msra.mxu0 0.0
    %3049 = vmatprep.subr.mxu0 0.0
    %3050 = vmatpush2.msra.mxu0 0.0
    %3051 = vmatprep.subr.mxu0 0.0
    %3052 = vmatpush2.msra.mxu0 0.0
    %3053 = vmatprep.subr.mxu0 0.0
    %3054 = vmatpush2.msra.mxu0 0.0
    %3055 = vmatprep.subr.mxu0 0.0
    %3056 = vmatpush2.msra.mxu0 0.0
    %3057 = vmatprep.mubr.f32.mxu0 0.0
    %3058 = vmatmul.mubr.f32.gmra.mxu0 %v2988
    %v3059 = vpop.f32.mrf.mxu0
    %v3060 = vadd.f32 0.0, %v3059
    %v3061 = vpop.f32.mrf.mxu0
    %3062 = vmatprep.mubr.f32.mxu0 0.0
    %3063 = vmatmul.mubr.f32.gmra.mxu0 %v2991
    %v3064 = vpop.f32.mrf.mxu0
    %v3065 = vadd.f32 0.0, %v3064
    %v3066 = vpop.f32.mrf.mxu0
    %3067 = vdwg.mxu0
    %v3068 = vadd.f32 %v2655, %v3060
    %v3069 = vadd.f32 %v2656, %v3065
    %3070 = vrot.lane.b32.xlu0 %v2226, 112
    %v3071 = vpop.permute.xlu0 %3070
    %3072 = vrot.lane.b32.xlu0 %v2226, 80
    %v3073 = vpop.permute.xlu0 %3072
    %v3074 = vsel %vm214, %v3071, 0
    %v3076 = vsel %vm214, %v3073, 0
    %3078 = vmatprep.subr.mxu0 0.0
    %3079 = vmatpush1.xpose.msra.mxu0 0.0
    %3080 = vmatprep.subr.mxu0 0.0
    %3081 = vmatpush1.xpose.msra.mxu0 0.0
    %3082 = vmatprep.subr.mxu0 0.0
    %3083 = vmatpush1.xpose.msra.mxu0 0.0
    %3084 = vmatprep.subr.mxu0 0.0
    %3085 = vmatpush1.xpose.msra.mxu0 0.0
    %3086 = vmatprep.subr.mxu0 0.0
    %3087 = vmatpush1.xpose.msra.mxu0 0.0
    %3088 = vmatprep.subr.mxu0 0.0
    %3089 = vmatpush1.xpose.msra.mxu0 0.0
    %3090 = vmatprep.subr.mxu0 0.0
    %3091 = vmatpush1.xpose.msra.mxu0 0.0
    %3092 = vmatprep.subr.mxu0 0.0
    %3093 = vmatpush1.xpose.msra.mxu0 0.0
    %3094 = vmatprep.subr.mxu0 0.0
    %3095 = vmatpush1.xpose.msra.mxu0 0.0
    %3096 = vmatprep.subr.mxu0 0.0
    %3097 = vmatpush1.xpose.msra.mxu0 0.0
    %3098 = vmatprep.subr.mxu0 0.0
    %3099 = vmatpush1.xpose.msra.mxu0 0.0
    %3100 = vmatprep.subr.mxu0 0.0
    %3101 = vmatpush1.xpose.msra.mxu0 0.0
    %3102 = vmatprep.subr.mxu0 0.0
    %3103 = vmatpush1.xpose.msra.mxu0 0.0
    %3104 = vmatprep.subr.mxu0 0.0
    %3105 = vmatpush1.xpose.msra.mxu0 0.0
    %3106 = vmatprep.subr.mxu0 0.0
    %3107 = vmatpush1.xpose.msra.mxu0 0.0
    %3108 = vmatprep.subr.mxu0 0.0
    %3109 = vmatpush1.xpose.msra.mxu0 %v3076
    %3110 = vmatprep.subr.mxu0 0.0
    %3111 = vmatpush2.xpose.msra.mxu0 0.0
    %3112 = vmatprep.subr.mxu0 0.0
    %3113 = vmatpush2.xpose.msra.mxu0 0.0
    %3114 = vmatprep.subr.mxu0 0.0
    %3115 = vmatpush2.xpose.msra.mxu0 0.0
    %3116 = vmatprep.subr.mxu0 0.0
    %3117 = vmatpush2.xpose.msra.mxu0 0.0
    %3118 = vmatprep.subr.mxu0 0.0
    %3119 = vmatpush2.xpose.msra.mxu0 0.0
    %3120 = vmatprep.subr.mxu0 0.0
    %3121 = vmatpush2.xpose.msra.mxu0 0.0
    %3122 = vmatprep.subr.mxu0 0.0
    %3123 = vmatpush2.xpose.msra.mxu0 0.0
    %3124 = vmatprep.subr.mxu0 0.0
    %3125 = vmatpush2.xpose.msra.mxu0 0.0
    %3126 = vmatprep.subr.mxu0 0.0
    %3127 = vmatpush2.xpose.msra.mxu0 0.0
    %3128 = vmatprep.subr.mxu0 0.0
    %3129 = vmatpush2.xpose.msra.mxu0 0.0
    %3130 = vmatprep.subr.mxu0 0.0
    %3131 = vmatpush2.xpose.msra.mxu0 0.0
    %3132 = vmatprep.subr.mxu0 0.0
    %3133 = vmatpush2.xpose.msra.mxu0 0.0
    %3134 = vmatprep.subr.mxu0 0.0
    %3135 = vmatpush2.xpose.msra.mxu0 0.0
    %3136 = vmatprep.subr.mxu0 0.0
    %3137 = vmatpush2.xpose.msra.mxu0 0.0
    %3138 = vmatprep.subr.mxu0 0.0
    %3139 = vmatpush2.xpose.msra.mxu0 0.0
    %3140 = vmatprep.subr.mxu0 0.0
    %3141 = vmatpush2.xpose.msra.mxu0 0.0
    %3142 = vmatprep.mubr.f32.mxu0 0.0
    %3143 = vmatmul.mubr.f32.gmra.mxu0 %v3074
    %v3144 = vpop.f32.mrf.mxu0
    %v3145 = vadd.f32 0.0, %v3144
    %v3146 = vpop.f32.mrf.mxu0
    %3147 = vdwg.mxu0
    %3148 = vrot.lane.b32.xlu0 %v2231, 112
    %v3149 = vpop.permute.xlu0 %3148
    %3150 = vrot.lane.b32.xlu0 %v2231, 80
    %v3151 = vpop.permute.xlu0 %3150
    %v3152 = vsel %vm214, %v3149, 0
    %v3154 = vsel %vm214, %v3151, 0
    %3156 = vmatprep.subr.mxu0 0.0
    %3157 = vmatpush1.xpose.msra.mxu0 0.0
    %3158 = vmatprep.subr.mxu0 0.0
    %3159 = vmatpush1.xpose.msra.mxu0 0.0
    %3160 = vmatprep.subr.mxu0 0.0
    %3161 = vmatpush1.xpose.msra.mxu0 0.0
    %3162 = vmatprep.subr.mxu0 0.0
    %3163 = vmatpush1.xpose.msra.mxu0 0.0
    %3164 = vmatprep.subr.mxu0 0.0
    %3165 = vmatpush1.xpose.msra.mxu0 0.0
    %3166 = vmatprep.subr.mxu0 0.0
    %3167 = vmatpush1.xpose.msra.mxu0 0.0
    %3168 = vmatprep.subr.mxu0 0.0
    %3169 = vmatpush1.xpose.msra.mxu0 0.0
    %3170 = vmatprep.subr.mxu0 0.0
    %3171 = vmatpush1.xpose.msra.mxu0 0.0
    %3172 = vmatprep.subr.mxu0 0.0
    %3173 = vmatpush1.xpose.msra.mxu0 0.0
    %3174 = vmatprep.subr.mxu0 0.0
    %3175 = vmatpush1.xpose.msra.mxu0 0.0
    %3176 = vmatprep.subr.mxu0 0.0
    %3177 = vmatpush1.xpose.msra.mxu0 0.0
    %3178 = vmatprep.subr.mxu0 0.0
    %3179 = vmatpush1.xpose.msra.mxu0 0.0
    %3180 = vmatprep.subr.mxu0 0.0
    %3181 = vmatpush1.xpose.msra.mxu0 0.0
    %3182 = vmatprep.subr.mxu0 0.0
    %3183 = vmatpush1.xpose.msra.mxu0 0.0
    %3184 = vmatprep.subr.mxu0 0.0
    %3185 = vmatpush1.xpose.msra.mxu0 0.0
    %3186 = vmatprep.subr.mxu0 0.0
    %3187 = vmatpush1.xpose.msra.mxu0 %v3154
    %3188 = vmatprep.subr.mxu0 0.0
    %3189 = vmatpush2.xpose.msra.mxu0 0.0
    %3190 = vmatprep.subr.mxu0 0.0
    %3191 = vmatpush2.xpose.msra.mxu0 0.0
    %3192 = vmatprep.subr.mxu0 0.0
    %3193 = vmatpush2.xpose.msra.mxu0 0.0
    %3194 = vmatprep.subr.mxu0 0.0
    %3195 = vmatpush2.xpose.msra.mxu0 0.0
    %3196 = vmatprep.subr.mxu0 0.0
    %3197 = vmatpush2.xpose.msra.mxu0 0.0
    %3198 = vmatprep.subr.mxu0 0.0
    %3199 = vmatpush2.xpose.msra.mxu0 0.0
    %3200 = vmatprep.subr.mxu0 0.0
    %3201 = vmatpush2.xpose.msra.mxu0 0.0
    %3202 = vmatprep.subr.mxu0 0.0
    %3203 = vmatpush2.xpose.msra.mxu0 0.0
    %3204 = vmatprep.subr.mxu0 0.0
    %3205 = vmatpush2.xpose.msra.mxu0 0.0
    %3206 = vmatprep.subr.mxu0 0.0
    %3207 = vmatpush2.xpose.msra.mxu0 0.0
    %3208 = vmatprep.subr.mxu0 0.0
    %3209 = vmatpush2.xpose.msra.mxu0 0.0
    %3210 = vmatprep.subr.mxu0 0.0
    %3211 = vmatpush2.xpose.msra.mxu0 0.0
    %3212 = vmatprep.subr.mxu0 0.0
    %3213 = vmatpush2.xpose.msra.mxu0 0.0
    %3214 = vmatprep.subr.mxu0 0.0
    %3215 = vmatpush2.xpose.msra.mxu0 0.0
    %3216 = vmatprep.subr.mxu0 0.0
    %3217 = vmatpush2.xpose.msra.mxu0 0.0
    %3218 = vmatprep.subr.mxu0 0.0
    %3219 = vmatpush2.xpose.msra.mxu0 0.0
    %3220 = vmatprep.mubr.f32.mxu0 0.0
    %3221 = vmatmul.mubr.f32.gmra.mxu0 %v3152
    %v3222 = vpop.f32.mrf.mxu0
    %v3223 = vadd.f32 0.0, %v3222
    %v3224 = vpop.f32.mrf.mxu0
    %3225 = vdwg.mxu0
    %v3226 = vsel %vm214, %v3145, -inf
    %3227 = vmax.xlane.f32.xlu0 %v3226
    %v3228 = vpop.xlane.xlu0 %3227
    %v3229 = vsel %vm214, %v3223, -inf
    %3230 = vmax.xlane.f32.xlu0 %v3229
    %v3231 = vpop.xlane.xlu0 %3230
    %v3232 = vsub.f32 %v3145, %v3228
    %v3233 = vsub.f32 %v3223, %v3231
    %v3234 = vmul.f32 %v3232, 1.442695
    %v3235 = vpow.pop %v3234
    %v3236 = vmul.f32 %v3233, 1.442695
    %v3237 = vpow.pop %v3236
    %v3238 = vsel %vm214, %v3235, 0.0
    %3239 = vadd.xlane.f32.xlu0 %v3238
    %v3240 = vpop.xlane.xlu0 %3239
    %v3241 = vsel %vm214, %v3237, 0.0
    %3242 = vadd.xlane.f32.xlu0 %v3241
    %v3243 = vpop.xlane.xlu0 %3242
    %v3244 = vrcp.pop %v3240
    %v3245 = vrcp.pop %v3243
    %v3246 = vmul.f32 %v3235, %v3244
    %v3247 = vmul.f32 %v3237, %v3245
    %3248 = vrot.lane.b32.xlu0 %v2226, 48
    %v3249 = vpop.permute.xlu0 %3248
    %v3252 = vsel %vm214, %v3246, 0
    %3254 = vmatprep.subr.mxu0 0.0
    %3255 = vmatpush1.msra.mxu0 0.0
    %3256 = vmatprep.subr.mxu0 0.0
    %3257 = vmatpush1.msra.mxu0 0.0
    %3258 = vmatprep.subr.mxu0 0.0
    %3259 = vmatpush1.msra.mxu0 0.0
    %3260 = vmatprep.subr.mxu0 0.0
    %3261 = vmatpush1.msra.mxu0 0.0
    %3262 = vmatprep.subr.mxu0 0.0
    %3263 = vmatpush1.msra.mxu0 0.0
    %3264 = vmatprep.subr.mxu0 0.0
    %3265 = vmatpush1.msra.mxu0 0.0
    %3266 = vmatprep.subr.mxu0 0.0
    %3267 = vmatpush1.msra.mxu0 0.0
    %3268 = vmatprep.subr.mxu0 0.0
    %3269 = vmatpush1.msra.mxu0 0.0
    %3270 = vmatprep.subr.mxu0 0.0
    %3271 = vmatpush1.msra.mxu0 0.0
    %3272 = vmatprep.subr.mxu0 0.0
    %3273 = vmatpush1.msra.mxu0 0.0
    %3274 = vmatprep.subr.mxu0 0.0
    %3275 = vmatpush1.msra.mxu0 0.0
    %3276 = vmatprep.subr.mxu0 0.0
    %3277 = vmatpush1.msra.mxu0 0.0
    %3278 = vmatprep.subr.mxu0 0.0
    %3279 = vmatpush1.msra.mxu0 0.0
    %3280 = vmatprep.subr.mxu0 0.0
    %3281 = vmatpush1.msra.mxu0 0.0
    %3282 = vmatprep.subr.mxu0 0.0
    %3283 = vmatpush1.msra.mxu0 0.0
    %3284 = vmatprep.subr.mxu0 0.0
    %3285 = vmatpush1.msra.mxu0 %v3249
    %3286 = vmatprep.subr.mxu0 0.0
    %3287 = vmatpush2.msra.mxu0 0.0
    %3288 = vmatprep.subr.mxu0 0.0
    %3289 = vmatpush2.msra.mxu0 0.0
    %3290 = vmatprep.subr.mxu0 0.0
    %3291 = vmatpush2.msra.mxu0 0.0
    %3292 = vmatprep.subr.mxu0 0.0
    %3293 = vmatpush2.msra.mxu0 0.0
    %3294 = vmatprep.subr.mxu0 0.0
    %3295 = vmatpush2.msra.mxu0 0.0
    %3296 = vmatprep.subr.mxu0 0.0
    %3297 = vmatpush2.msra.mxu0 0.0
    %3298 = vmatprep.subr.mxu0 0.0
    %3299 = vmatpush2.msra.mxu0 0.0
    %3300 = vmatprep.subr.mxu0 0.0
    %3301 = vmatpush2.msra.mxu0 0.0
    %3302 = vmatprep.subr.mxu0 0.0
    %3303 = vmatpush2.msra.mxu0 0.0
    %3304 = vmatprep.subr.mxu0 0.0
    %3305 = vmatpush2.msra.mxu0 0.0
    %3306 = vmatprep.subr.mxu0 0.0
    %3307 = vmatpush2.msra.mxu0 0.0
    %3308 = vmatprep.subr.mxu0 0.0
    %3309 = vmatpush2.msra.mxu0 0.0
    %3310 = vmatprep.subr.mxu0 0.0
    %3311 = vmatpush2.msra.mxu0 0.0
    %3312 = vmatprep.subr.mxu0 0.0
    %3313 = vmatpush2.msra.mxu0 0.0
    %3314 = vmatprep.subr.mxu0 0.0
    %3315 = vmatpush2.msra.mxu0 0.0
    %3316 = vmatprep.subr.mxu0 0.0
    %3317 = vmatpush2.msra.mxu0 0.0
    %3318 = vmatprep.mubr.f32.mxu0 0.0
    %3319 = vmatmul.mubr.f32.gmra.mxu0 %v3252
    %v3320 = vpop.f32.mrf.mxu0
    %v3321 = vadd.f32 0.0, %v3320
    %v3322 = vpop.f32.mrf.mxu0
    %3323 = vdwg.mxu0
    %3324 = vrot.lane.b32.xlu0 %v2231, 48
    %v3325 = vpop.permute.xlu0 %3324
    %v3328 = vsel %vm214, %v3247, 0
    %3330 = vmatprep.subr.mxu0 0.0
    %3331 = vmatpush1.msra.mxu0 0.0
    %3332 = vmatprep.subr.mxu0 0.0
    %3333 = vmatpush1.msra.mxu0 0.0
    %3334 = vmatprep.subr.mxu0 0.0
    %3335 = vmatpush1.msra.mxu0 0.0
    %3336 = vmatprep.subr.mxu0 0.0
    %3337 = vmatpush1.msra.mxu0 0.0
    %3338 = vmatprep.subr.mxu0 0.0
    %3339 = vmatpush1.msra.mxu0 0.0
    %3340 = vmatprep.subr.mxu0 0.0
    %3341 = vmatpush1.msra.mxu0 0.0
    %3342 = vmatprep.subr.mxu0 0.0
    %3343 = vmatpush1.msra.mxu0 0.0
    %3344 = vmatprep.subr.mxu0 0.0
    %3345 = vmatpush1.msra.mxu0 0.0
    %3346 = vmatprep.subr.mxu0 0.0
    %3347 = vmatpush1.msra.mxu0 0.0
    %3348 = vmatprep.subr.mxu0 0.0
    %3349 = vmatpush1.msra.mxu0 0.0
    %3350 = vmatprep.subr.mxu0 0.0
    %3351 = vmatpush1.msra.mxu0 0.0
    %3352 = vmatprep.subr.mxu0 0.0
    %3353 = vmatpush1.msra.mxu0 0.0
    %3354 = vmatprep.subr.mxu0 0.0
    %3355 = vmatpush1.msra.mxu0 0.0
    %3356 = vmatprep.subr.mxu0 0.0
    %3357 = vmatpush1.msra.mxu0 0.0
    %3358 = vmatprep.subr.mxu0 0.0
    %3359 = vmatpush1.msra.mxu0 0.0
    %3360 = vmatprep.subr.mxu0 0.0
    %3361 = vmatpush1.msra.mxu0 %v3325
    %3362 = vmatprep.subr.mxu0 0.0
    %3363 = vmatpush2.msra.mxu0 0.0
    %3364 = vmatprep.subr.mxu0 0.0
    %3365 = vmatpush2.msra.mxu0 0.0
    %3366 = vmatprep.subr.mxu0 0.0
    %3367 = vmatpush2.msra.mxu0 0.0
    %3368 = vmatprep.subr.mxu0 0.0
    %3369 = vmatpush2.msra.mxu0 0.0
    %3370 = vmatprep.subr.mxu0 0.0
    %3371 = vmatpush2.msra.mxu0 0.0
    %3372 = vmatprep.subr.mxu0 0.0
    %3373 = vmatpush2.msra.mxu0 0.0
    %3374 = vmatprep.subr.mxu0 0.0
    %3375 = vmatpush2.msra.mxu0 0.0
    %3376 = vmatprep.subr.mxu0 0.0
    %3377 = vmatpush2.msra.mxu0 0.0
    %3378 = vmatprep.subr.mxu0 0.0
    %3379 = vmatpush2.msra.mxu0 0.0
    %3380 = vmatprep.subr.mxu0 0.0
    %3381 = vmatpush2.msra.mxu0 0.0
    %3382 = vmatprep.subr.mxu0 0.0
    %3383 = vmatpush2.msra.mxu0 0.0
    %3384 = vmatprep.subr.mxu0 0.0
    %3385 = vmatpush2.msra.mxu0 0.0
    %3386 = vmatprep.subr.mxu0 0.0
    %3387 = vmatpush2.msra.mxu0 0.0
    %3388 = vmatprep.subr.mxu0 0.0
    %3389 = vmatpush2.msra.mxu0 0.0
    %3390 = vmatprep.subr.mxu0 0.0
    %3391 = vmatpush2.msra.mxu0 0.0
    %3392 = vmatprep.subr.mxu0 0.0
    %3393 = vmatpush2.msra.mxu0 0.0
    %3394 = vmatprep.mubr.f32.mxu0 0.0
    %3395 = vmatmul.mubr.f32.gmra.mxu0 %v3328
    %v3396 = vpop.f32.mrf.mxu0
    %v3397 = vadd.f32 0.0, %v3396
    %v3398 = vpop.f32.mrf.mxu0
    %3399 = vdwg.mxu0
    %v3401 = vsel %vm214, %v3321, 0
    %v3404 = vsel %vm214, %v3397, 0
    %3406 = vmatprep.subr.mxu0 0.0
    %3407 = vmatpush1.msra.mxu0 0.0
    %3408 = vmatprep.subr.mxu0 0.0
    %3409 = vmatpush1.msra.mxu0 0.0
    %3410 = vmatprep.subr.mxu0 0.0
    %3411 = vmatpush1.msra.mxu0 0.0
    %3412 = vmatprep.subr.mxu0 0.0
    %3413 = vmatpush1.msra.mxu0 0.0
    %3414 = vmatprep.subr.mxu0 0.0
    %3415 = vmatpush1.msra.mxu0 0.0
    %3416 = vmatprep.subr.mxu0 0.0
    %3417 = vmatpush1.msra.mxu0 0.0
    %3418 = vmatprep.subr.mxu0 0.0
    %3419 = vmatpush1.msra.mxu0 0.0
    %3420 = vmatprep.subr.mxu0 0.0
    %3421 = vmatpush1.msra.mxu0 0.0
    %3422 = vmatprep.subr.mxu0 0.0
    %3423 = vmatpush1.msra.mxu0 0.0
    %3424 = vmatprep.subr.mxu0 0.0
    %3425 = vmatpush1.msra.mxu0 0.0
    %3426 = vmatprep.subr.mxu0 0.0
    %3427 = vmatpush1.msra.mxu0 0.0
    %3428 = vmatprep.subr.mxu0 0.0
    %3429 = vmatpush1.msra.mxu0 0.0
    %3430 = vmatprep.subr.mxu0 0.0
    %3431 = vmatpush1.msra.mxu0 0.0
    %3432 = vmatprep.subr.mxu0 0.0
    %3433 = vmatpush1.msra.mxu0 0.0
    %3434 = vmatprep.subr.mxu0 0.0
    %3435 = vmatpush1.msra.mxu0 0.0
    %3436 = vmatprep.subr.mxu0 0.0
    %3437 = vmatpush1.msra.mxu0 %v2237
    %3438 = vmatprep.subr.mxu0 0.0
    %3439 = vmatpush2.msra.mxu0 0.0
    %3440 = vmatprep.subr.mxu0 0.0
    %3441 = vmatpush2.msra.mxu0 0.0
    %3442 = vmatprep.subr.mxu0 0.0
    %3443 = vmatpush2.msra.mxu0 0.0
    %3444 = vmatprep.subr.mxu0 0.0
    %3445 = vmatpush2.msra.mxu0 0.0
    %3446 = vmatprep.subr.mxu0 0.0
    %3447 = vmatpush2.msra.mxu0 0.0
    %3448 = vmatprep.subr.mxu0 0.0
    %3449 = vmatpush2.msra.mxu0 0.0
    %3450 = vmatprep.subr.mxu0 0.0
    %3451 = vmatpush2.msra.mxu0 0.0
    %3452 = vmatprep.subr.mxu0 0.0
    %3453 = vmatpush2.msra.mxu0 0.0
    %3454 = vmatprep.subr.mxu0 0.0
    %3455 = vmatpush2.msra.mxu0 0.0
    %3456 = vmatprep.subr.mxu0 0.0
    %3457 = vmatpush2.msra.mxu0 0.0
    %3458 = vmatprep.subr.mxu0 0.0
    %3459 = vmatpush2.msra.mxu0 0.0
    %3460 = vmatprep.subr.mxu0 0.0
    %3461 = vmatpush2.msra.mxu0 0.0
    %3462 = vmatprep.subr.mxu0 0.0
    %3463 = vmatpush2.msra.mxu0 0.0
    %3464 = vmatprep.subr.mxu0 0.0
    %3465 = vmatpush2.msra.mxu0 0.0
    %3466 = vmatprep.subr.mxu0 0.0
    %3467 = vmatpush2.msra.mxu0 0.0
    %3468 = vmatprep.subr.mxu0 0.0
    %3469 = vmatpush2.msra.mxu0 0.0
    %3470 = vmatprep.mubr.f32.mxu0 0.0
    %3471 = vmatmul.mubr.f32.gmra.mxu0 %v3401
    %v3472 = vpop.f32.mrf.mxu0
    %v3473 = vadd.f32 0.0, %v3472
    %v3474 = vpop.f32.mrf.mxu0
    %3475 = vmatprep.mubr.f32.mxu0 0.0
    %3476 = vmatmul.mubr.f32.gmra.mxu0 %v3404
    %v3477 = vpop.f32.mrf.mxu0
    %v3478 = vadd.f32 0.0, %v3477
    %v3479 = vpop.f32.mrf.mxu0
    %3480 = vdwg.mxu0
    %v3481 = vadd.f32 %v3068, %v3473
    %v3482 = vadd.f32 %v3069, %v3478
    %3483 = vrot.lane.b32.xlu0 %v2226, 104
    %v3484 = vpop.permute.xlu0 %3483
    %3485 = vrot.lane.b32.xlu0 %v2226, 72
    %v3486 = vpop.permute.xlu0 %3485
    %v3487 = vsel %vm214, %v3484, 0
    %v3489 = vsel %vm214, %v3486, 0
    %3491 = vmatprep.subr.mxu0 0.0
    %3492 = vmatpush1.xpose.msra.mxu0 0.0
    %3493 = vmatprep.subr.mxu0 0.0
    %3494 = vmatpush1.xpose.msra.mxu0 0.0
    %3495 = vmatprep.subr.mxu0 0.0
    %3496 = vmatpush1.xpose.msra.mxu0 0.0
    %3497 = vmatprep.subr.mxu0 0.0
    %3498 = vmatpush1.xpose.msra.mxu0 0.0
    %3499 = vmatprep.subr.mxu0 0.0
    %3500 = vmatpush1.xpose.msra.mxu0 0.0
    %3501 = vmatprep.subr.mxu0 0.0
    %3502 = vmatpush1.xpose.msra.mxu0 0.0
    %3503 = vmatprep.subr.mxu0 0.0
    %3504 = vmatpush1.xpose.msra.mxu0 0.0
    %3505 = vmatprep.subr.mxu0 0.0
    %3506 = vmatpush1.xpose.msra.mxu0 0.0
    %3507 = vmatprep.subr.mxu0 0.0
    %3508 = vmatpush1.xpose.msra.mxu0 0.0
    %3509 = vmatprep.subr.mxu0 0.0
    %3510 = vmatpush1.xpose.msra.mxu0 0.0
    %3511 = vmatprep.subr.mxu0 0.0
    %3512 = vmatpush1.xpose.msra.mxu0 0.0
    %3513 = vmatprep.subr.mxu0 0.0
    %3514 = vmatpush1.xpose.msra.mxu0 0.0
    %3515 = vmatprep.subr.mxu0 0.0
    %3516 = vmatpush1.xpose.msra.mxu0 0.0
    %3517 = vmatprep.subr.mxu0 0.0
    %3518 = vmatpush1.xpose.msra.mxu0 0.0
    %3519 = vmatprep.subr.mxu0 0.0
    %3520 = vmatpush1.xpose.msra.mxu0 0.0
    %3521 = vmatprep.subr.mxu0 0.0
    %3522 = vmatpush1.xpose.msra.mxu0 %v3489
    %3523 = vmatprep.subr.mxu0 0.0
    %3524 = vmatpush2.xpose.msra.mxu0 0.0
    %3525 = vmatprep.subr.mxu0 0.0
    %3526 = vmatpush2.xpose.msra.mxu0 0.0
    %3527 = vmatprep.subr.mxu0 0.0
    %3528 = vmatpush2.xpose.msra.mxu0 0.0
    %3529 = vmatprep.subr.mxu0 0.0
    %3530 = vmatpush2.xpose.msra.mxu0 0.0
    %3531 = vmatprep.subr.mxu0 0.0
    %3532 = vmatpush2.xpose.msra.mxu0 0.0
    %3533 = vmatprep.subr.mxu0 0.0
    %3534 = vmatpush2.xpose.msra.mxu0 0.0
    %3535 = vmatprep.subr.mxu0 0.0
    %3536 = vmatpush2.xpose.msra.mxu0 0.0
    %3537 = vmatprep.subr.mxu0 0.0
    %3538 = vmatpush2.xpose.msra.mxu0 0.0
    %3539 = vmatprep.subr.mxu0 0.0
    %3540 = vmatpush2.xpose.msra.mxu0 0.0
    %3541 = vmatprep.subr.mxu0 0.0
    %3542 = vmatpush2.xpose.msra.mxu0 0.0
    %3543 = vmatprep.subr.mxu0 0.0
    %3544 = vmatpush2.xpose.msra.mxu0 0.0
    %3545 = vmatprep.subr.mxu0 0.0
    %3546 = vmatpush2.xpose.msra.mxu0 0.0
    %3547 = vmatprep.subr.mxu0 0.0
    %3548 = vmatpush2.xpose.msra.mxu0 0.0
    %3549 = vmatprep.subr.mxu0 0.0
    %3550 = vmatpush2.xpose.msra.mxu0 0.0
    %3551 = vmatprep.subr.mxu0 0.0
    %3552 = vmatpush2.xpose.msra.mxu0 0.0
    %3553 = vmatprep.subr.mxu0 0.0
    %3554 = vmatpush2.xpose.msra.mxu0 0.0
    %3555 = vmatprep.mubr.f32.mxu0 0.0
    %3556 = vmatmul.mubr.f32.gmra.mxu0 %v3487
    %v3557 = vpop.f32.mrf.mxu0
    %v3558 = vadd.f32 0.0, %v3557
    %v3559 = vpop.f32.mrf.mxu0
    %3560 = vdwg.mxu0
    %3561 = vrot.lane.b32.xlu0 %v2231, 104
    %v3562 = vpop.permute.xlu0 %3561
    %3563 = vrot.lane.b32.xlu0 %v2231, 72
    %v3564 = vpop.permute.xlu0 %3563
    %v3565 = vsel %vm214, %v3562, 0
    %v3567 = vsel %vm214, %v3564, 0
    %3569 = vmatprep.subr.mxu0 0.0
    %3570 = vmatpush1.xpose.msra.mxu0 0.0
    %3571 = vmatprep.subr.mxu0 0.0
    %3572 = vmatpush1.xpose.msra.mxu0 0.0
    %3573 = vmatprep.subr.mxu0 0.0
    %3574 = vmatpush1.xpose.msra.mxu0 0.0
    %3575 = vmatprep.subr.mxu0 0.0
    %3576 = vmatpush1.xpose.msra.mxu0 0.0
    %3577 = vmatprep.subr.mxu0 0.0
    %3578 = vmatpush1.xpose.msra.mxu0 0.0
    %3579 = vmatprep.subr.mxu0 0.0
    %3580 = vmatpush1.xpose.msra.mxu0 0.0
    %3581 = vmatprep.subr.mxu0 0.0
    %3582 = vmatpush1.xpose.msra.mxu0 0.0
    %3583 = vmatprep.subr.mxu0 0.0
    %3584 = vmatpush1.xpose.msra.mxu0 0.0
    %3585 = vmatprep.subr.mxu0 0.0
    %3586 = vmatpush1.xpose.msra.mxu0 0.0
    %3587 = vmatprep.subr.mxu0 0.0
    %3588 = vmatpush1.xpose.msra.mxu0 0.0
    %3589 = vmatprep.subr.mxu0 0.0
    %3590 = vmatpush1.xpose.msra.mxu0 0.0
    %3591 = vmatprep.subr.mxu0 0.0
    %3592 = vmatpush1.xpose.msra.mxu0 0.0
    %3593 = vmatprep.subr.mxu0 0.0
    %3594 = vmatpush1.xpose.msra.mxu0 0.0
    %3595 = vmatprep.subr.mxu0 0.0
    %3596 = vmatpush1.xpose.msra.mxu0 0.0
    %3597 = vmatprep.subr.mxu0 0.0
    %3598 = vmatpush1.xpose.msra.mxu0 0.0
    %3599 = vmatprep.subr.mxu0 0.0
    %3600 = vmatpush1.xpose.msra.mxu0 %v3567
    %3601 = vmatprep.subr.mxu0 0.0
    %3602 = vmatpush2.xpose.msra.mxu0 0.0
    %3603 = vmatprep.subr.mxu0 0.0
    %3604 = vmatpush2.xpose.msra.mxu0 0.0
    %3605 = vmatprep.subr.mxu0 0.0
    %3606 = vmatpush2.xpose.msra.mxu0 0.0
    %3607 = vmatprep.subr.mxu0 0.0
    %3608 = vmatpush2.xpose.msra.mxu0 0.0
    %3609 = vmatprep.subr.mxu0 0.0
    %3610 = vmatpush2.xpose.msra.mxu0 0.0
    %3611 = vmatprep.subr.mxu0 0.0
    %3612 = vmatpush2.xpose.msra.mxu0 0.0
    %3613 = vmatprep.subr.mxu0 0.0
    %3614 = vmatpush2.xpose.msra.mxu0 0.0
    %3615 = vmatprep.subr.mxu0 0.0
    %3616 = vmatpush2.xpose.msra.mxu0 0.0
    %3617 = vmatprep.subr.mxu0 0.0
    %3618 = vmatpush2.xpose.msra.mxu0 0.0
    %3619 = vmatprep.subr.mxu0 0.0
    %3620 = vmatpush2.xpose.msra.mxu0 0.0
    %3621 = vmatprep.subr.mxu0 0.0
    %3622 = vmatpush2.xpose.msra.mxu0 0.0
    %3623 = vmatprep.subr.mxu0 0.0
    %3624 = vmatpush2.xpose.msra.mxu0 0.0
    %3625 = vmatprep.subr.mxu0 0.0
    %3626 = vmatpush2.xpose.msra.mxu0 0.0
    %3627 = vmatprep.subr.mxu0 0.0
    %3628 = vmatpush2.xpose.msra.mxu0 0.0
    %3629 = vmatprep.subr.mxu0 0.0
    %3630 = vmatpush2.xpose.msra.mxu0 0.0
    %3631 = vmatprep.subr.mxu0 0.0
    %3632 = vmatpush2.xpose.msra.mxu0 0.0
    %3633 = vmatprep.mubr.f32.mxu0 0.0
    %3634 = vmatmul.mubr.f32.gmra.mxu0 %v3565
    %v3635 = vpop.f32.mrf.mxu0
    %v3636 = vadd.f32 0.0, %v3635
    %v3637 = vpop.f32.mrf.mxu0
    %3638 = vdwg.mxu0
    %v3639 = vsel %vm214, %v3558, -inf
    %3640 = vmax.xlane.f32.xlu0 %v3639
    %v3641 = vpop.xlane.xlu0 %3640
    %v3642 = vsel %vm214, %v3636, -inf
    %3643 = vmax.xlane.f32.xlu0 %v3642
    %v3644 = vpop.xlane.xlu0 %3643
    %v3645 = vsub.f32 %v3558, %v3641
    %v3646 = vsub.f32 %v3636, %v3644
    %v3647 = vmul.f32 %v3645, 1.442695
    %v3648 = vpow.pop %v3647
    %v3649 = vmul.f32 %v3646, 1.442695
    %v3650 = vpow.pop %v3649
    %v3651 = vsel %vm214, %v3648, 0.0
    %3652 = vadd.xlane.f32.xlu0 %v3651
    %v3653 = vpop.xlane.xlu0 %3652
    %v3654 = vsel %vm214, %v3650, 0.0
    %3655 = vadd.xlane.f32.xlu0 %v3654
    %v3656 = vpop.xlane.xlu0 %3655
    %v3657 = vrcp.pop %v3653
    %v3658 = vrcp.pop %v3656
    %v3659 = vmul.f32 %v3648, %v3657
    %v3660 = vmul.f32 %v3650, %v3658
    %3661 = vrot.lane.b32.xlu0 %v2226, 40
    %v3662 = vpop.permute.xlu0 %3661
    %v3665 = vsel %vm214, %v3659, 0
    %3667 = vmatprep.subr.mxu0 0.0
    %3668 = vmatpush1.msra.mxu0 0.0
    %3669 = vmatprep.subr.mxu0 0.0
    %3670 = vmatpush1.msra.mxu0 0.0
    %3671 = vmatprep.subr.mxu0 0.0
    %3672 = vmatpush1.msra.mxu0 0.0
    %3673 = vmatprep.subr.mxu0 0.0
    %3674 = vmatpush1.msra.mxu0 0.0
    %3675 = vmatprep.subr.mxu0 0.0
    %3676 = vmatpush1.msra.mxu0 0.0
    %3677 = vmatprep.subr.mxu0 0.0
    %3678 = vmatpush1.msra.mxu0 0.0
    %3679 = vmatprep.subr.mxu0 0.0
    %3680 = vmatpush1.msra.mxu0 0.0
    %3681 = vmatprep.subr.mxu0 0.0
    %3682 = vmatpush1.msra.mxu0 0.0
    %3683 = vmatprep.subr.mxu0 0.0
    %3684 = vmatpush1.msra.mxu0 0.0
    %3685 = vmatprep.subr.mxu0 0.0
    %3686 = vmatpush1.msra.mxu0 0.0
    %3687 = vmatprep.subr.mxu0 0.0
    %3688 = vmatpush1.msra.mxu0 0.0
    %3689 = vmatprep.subr.mxu0 0.0
    %3690 = vmatpush1.msra.mxu0 0.0
    %3691 = vmatprep.subr.mxu0 0.0
    %3692 = vmatpush1.msra.mxu0 0.0
    %3693 = vmatprep.subr.mxu0 0.0
    %3694 = vmatpush1.msra.mxu0 0.0
    %3695 = vmatprep.subr.mxu0 0.0
    %3696 = vmatpush1.msra.mxu0 0.0
    %3697 = vmatprep.subr.mxu0 0.0
    %3698 = vmatpush1.msra.mxu0 %v3662
    %3699 = vmatprep.subr.mxu0 0.0
    %3700 = vmatpush2.msra.mxu0 0.0
    %3701 = vmatprep.subr.mxu0 0.0
    %3702 = vmatpush2.msra.mxu0 0.0
    %3703 = vmatprep.subr.mxu0 0.0
    %3704 = vmatpush2.msra.mxu0 0.0
    %3705 = vmatprep.subr.mxu0 0.0
    %3706 = vmatpush2.msra.mxu0 0.0
    %3707 = vmatprep.subr.mxu0 0.0
    %3708 = vmatpush2.msra.mxu0 0.0
    %3709 = vmatprep.subr.mxu0 0.0
    %3710 = vmatpush2.msra.mxu0 0.0
    %3711 = vmatprep.subr.mxu0 0.0
    %3712 = vmatpush2.msra.mxu0 0.0
    %3713 = vmatprep.subr.mxu0 0.0
    %3714 = vmatpush2.msra.mxu0 0.0
    %3715 = vmatprep.subr.mxu0 0.0
    %3716 = vmatpush2.msra.mxu0 0.0
    %3717 = vmatprep.subr.mxu0 0.0
    %3718 = vmatpush2.msra.mxu0 0.0
    %3719 = vmatprep.subr.mxu0 0.0
    %3720 = vmatpush2.msra.mxu0 0.0
    %3721 = vmatprep.subr.mxu0 0.0
    %3722 = vmatpush2.msra.mxu0 0.0
    %3723 = vmatprep.subr.mxu0 0.0
    %3724 = vmatpush2.msra.mxu0 0.0
    %3725 = vmatprep.subr.mxu0 0.0
    %3726 = vmatpush2.msra.mxu0 0.0
    %3727 = vmatprep.subr.mxu0 0.0
    %3728 = vmatpush2.msra.mxu0 0.0
    %3729 = vmatprep.subr.mxu0 0.0
    %3730 = vmatpush2.msra.mxu0 0.0
    %3731 = vmatprep.mubr.f32.mxu0 0.0
    %3732 = vmatmul.mubr.f32.gmra.mxu0 %v3665
    %v3733 = vpop.f32.mrf.mxu0
    %v3734 = vadd.f32 0.0, %v3733
    %v3735 = vpop.f32.mrf.mxu0
    %3736 = vdwg.mxu0
    %3737 = vrot.lane.b32.xlu0 %v2231, 40
    %v3738 = vpop.permute.xlu0 %3737
    %v3741 = vsel %vm214, %v3660, 0
    %3743 = vmatprep.subr.mxu0 0.0
    %3744 = vmatpush1.msra.mxu0 0.0
    %3745 = vmatprep.subr.mxu0 0.0
    %3746 = vmatpush1.msra.mxu0 0.0
    %3747 = vmatprep.subr.mxu0 0.0
    %3748 = vmatpush1.msra.mxu0 0.0
    %3749 = vmatprep.subr.mxu0 0.0
    %3750 = vmatpush1.msra.mxu0 0.0
    %3751 = vmatprep.subr.mxu0 0.0
    %3752 = vmatpush1.msra.mxu0 0.0
    %3753 = vmatprep.subr.mxu0 0.0
    %3754 = vmatpush1.msra.mxu0 0.0
    %3755 = vmatprep.subr.mxu0 0.0
    %3756 = vmatpush1.msra.mxu0 0.0
    %3757 = vmatprep.subr.mxu0 0.0
    %3758 = vmatpush1.msra.mxu0 0.0
    %3759 = vmatprep.subr.mxu0 0.0
    %3760 = vmatpush1.msra.mxu0 0.0
    %3761 = vmatprep.subr.mxu0 0.0
    %3762 = vmatpush1.msra.mxu0 0.0
    %3763 = vmatprep.subr.mxu0 0.0
    %3764 = vmatpush1.msra.mxu0 0.0
    %3765 = vmatprep.subr.mxu0 0.0
    %3766 = vmatpush1.msra.mxu0 0.0
    %3767 = vmatprep.subr.mxu0 0.0
    %3768 = vmatpush1.msra.mxu0 0.0
    %3769 = vmatprep.subr.mxu0 0.0
    %3770 = vmatpush1.msra.mxu0 0.0
    %3771 = vmatprep.subr.mxu0 0.0
    %3772 = vmatpush1.msra.mxu0 0.0
    %3773 = vmatprep.subr.mxu0 0.0
    %3774 = vmatpush1.msra.mxu0 %v3738
    %3775 = vmatprep.subr.mxu0 0.0
    %3776 = vmatpush2.msra.mxu0 0.0
    %3777 = vmatprep.subr.mxu0 0.0
    %3778 = vmatpush2.msra.mxu0 0.0
    %3779 = vmatprep.subr.mxu0 0.0
    %3780 = vmatpush2.msra.mxu0 0.0
    %3781 = vmatprep.subr.mxu0 0.0
    %3782 = vmatpush2.msra.mxu0 0.0
    %3783 = vmatprep.subr.mxu0 0.0
    %3784 = vmatpush2.msra.mxu0 0.0
    %3785 = vmatprep.subr.mxu0 0.0
    %3786 = vmatpush2.msra.mxu0 0.0
    %3787 = vmatprep.subr.mxu0 0.0
    %3788 = vmatpush2.msra.mxu0 0.0
    %3789 = vmatprep.subr.mxu0 0.0
    %3790 = vmatpush2.msra.mxu0 0.0
    %3791 = vmatprep.subr.mxu0 0.0
    %3792 = vmatpush2.msra.mxu0 0.0
    %3793 = vmatprep.subr.mxu0 0.0
    %3794 = vmatpush2.msra.mxu0 0.0
    %3795 = vmatprep.subr.mxu0 0.0
    %3796 = vmatpush2.msra.mxu0 0.0
    %3797 = vmatprep.subr.mxu0 0.0
    %3798 = vmatpush2.msra.mxu0 0.0
    %3799 = vmatprep.subr.mxu0 0.0
    %3800 = vmatpush2.msra.mxu0 0.0
    %3801 = vmatprep.subr.mxu0 0.0
    %3802 = vmatpush2.msra.mxu0 0.0
    %3803 = vmatprep.subr.mxu0 0.0
    %3804 = vmatpush2.msra.mxu0 0.0
    %3805 = vmatprep.subr.mxu0 0.0
    %3806 = vmatpush2.msra.mxu0 0.0
    %3807 = vmatprep.mubr.f32.mxu0 0.0
    %3808 = vmatmul.mubr.f32.gmra.mxu0 %v3741
    %v3809 = vpop.f32.mrf.mxu0
    %v3810 = vadd.f32 0.0, %v3809
    %v3811 = vpop.f32.mrf.mxu0
    %3812 = vdwg.mxu0
    %v3814 = vsel %vm214, %v3734, 0
    %v3817 = vsel %vm214, %v3810, 0
    %3819 = vmatprep.subr.mxu0 0.0
    %3820 = vmatpush1.msra.mxu0 0.0
    %3821 = vmatprep.subr.mxu0 0.0
    %3822 = vmatpush1.msra.mxu0 0.0
    %3823 = vmatprep.subr.mxu0 0.0
    %3824 = vmatpush1.msra.mxu0 0.0
    %3825 = vmatprep.subr.mxu0 0.0
    %3826 = vmatpush1.msra.mxu0 0.0
    %3827 = vmatprep.subr.mxu0 0.0
    %3828 = vmatpush1.msra.mxu0 0.0
    %3829 = vmatprep.subr.mxu0 0.0
    %3830 = vmatpush1.msra.mxu0 0.0
    %3831 = vmatprep.subr.mxu0 0.0
    %3832 = vmatpush1.msra.mxu0 0.0
    %3833 = vmatprep.subr.mxu0 0.0
    %3834 = vmatpush1.msra.mxu0 0.0
    %3835 = vmatprep.subr.mxu0 0.0
    %3836 = vmatpush1.msra.mxu0 0.0
    %3837 = vmatprep.subr.mxu0 0.0
    %3838 = vmatpush1.msra.mxu0 0.0
    %3839 = vmatprep.subr.mxu0 0.0
    %3840 = vmatpush1.msra.mxu0 0.0
    %3841 = vmatprep.subr.mxu0 0.0
    %3842 = vmatpush1.msra.mxu0 0.0
    %3843 = vmatprep.subr.mxu0 0.0
    %3844 = vmatpush1.msra.mxu0 0.0
    %3845 = vmatprep.subr.mxu0 0.0
    %3846 = vmatpush1.msra.mxu0 0.0
    %3847 = vmatprep.subr.mxu0 0.0
    %3848 = vmatpush1.msra.mxu0 0.0
    %3849 = vmatprep.subr.mxu0 0.0
    %3850 = vmatpush1.msra.mxu0 %v2238
    %3851 = vmatprep.subr.mxu0 0.0
    %3852 = vmatpush2.msra.mxu0 0.0
    %3853 = vmatprep.subr.mxu0 0.0
    %3854 = vmatpush2.msra.mxu0 0.0
    %3855 = vmatprep.subr.mxu0 0.0
    %3856 = vmatpush2.msra.mxu0 0.0
    %3857 = vmatprep.subr.mxu0 0.0
    %3858 = vmatpush2.msra.mxu0 0.0
    %3859 = vmatprep.subr.mxu0 0.0
    %3860 = vmatpush2.msra.mxu0 0.0
    %3861 = vmatprep.subr.mxu0 0.0
    %3862 = vmatpush2.msra.mxu0 0.0
    %3863 = vmatprep.subr.mxu0 0.0
    %3864 = vmatpush2.msra.mxu0 0.0
    %3865 = vmatprep.subr.mxu0 0.0
    %3866 = vmatpush2.msra.mxu0 0.0
    %3867 = vmatprep.subr.mxu0 0.0
    %3868 = vmatpush2.msra.mxu0 0.0
    %3869 = vmatprep.subr.mxu0 0.0
    %3870 = vmatpush2.msra.mxu0 0.0
    %3871 = vmatprep.subr.mxu0 0.0
    %3872 = vmatpush2.msra.mxu0 0.0
    %3873 = vmatprep.subr.mxu0 0.0
    %3874 = vmatpush2.msra.mxu0 0.0
    %3875 = vmatprep.subr.mxu0 0.0
    %3876 = vmatpush2.msra.mxu0 0.0
    %3877 = vmatprep.subr.mxu0 0.0
    %3878 = vmatpush2.msra.mxu0 0.0
    %3879 = vmatprep.subr.mxu0 0.0
    %3880 = vmatpush2.msra.mxu0 0.0
    %3881 = vmatprep.subr.mxu0 0.0
    %3882 = vmatpush2.msra.mxu0 0.0
    %3883 = vmatprep.mubr.f32.mxu0 0.0
    %3884 = vmatmul.mubr.f32.gmra.mxu0 %v3814
    %v3885 = vpop.f32.mrf.mxu0
    %v3886 = vadd.f32 0.0, %v3885
    %v3887 = vpop.f32.mrf.mxu0
    %3888 = vmatprep.mubr.f32.mxu0 0.0
    %3889 = vmatmul.mubr.f32.gmra.mxu0 %v3817
    %v3890 = vpop.f32.mrf.mxu0
    %v3891 = vadd.f32 0.0, %v3890
    %v3892 = vpop.f32.mrf.mxu0
    %3893 = vdwg.mxu0
    %v3894 = vadd.f32 %v3481, %v3886
    %v3895 = vadd.f32 %v3482, %v3891
    %v3896 = vld [vmem:[%s6 + $0x1] sm:$0x1]
    %v3897 = vld [vmem:[%s7 + $0x1] sm:$0x1]
    %v3898 = vsel %vm72, %v3894, 0.0
    %3899 = vadd.xlane.f32.xlu0 %v3898
    %v3900 = vpop.xlane.xlu0 %3899
    %v3901 = vsel %vm72, %v3895, 0.0
    %3902 = vadd.xlane.f32.xlu0 %v3901
    %v3903 = vpop.xlane.xlu0 %3902
    %v3904 = vmul.f32 %v3894, %v3894
    %v3905 = vmul.f32 %v3895, %v3895
    %v3906 = vsel %vm72, %v3904, 0.0
    %3907 = vadd.xlane.f32.xlu0 %v3906
    %v3908 = vpop.xlane.xlu0 %3907
    %v3909 = vsel %vm72, %v3905, 0.0
    %3910 = vadd.xlane.f32.xlu0 %v3909
    %v3911 = vpop.xlane.xlu0 %3910
    %v3912 = vmul.f32 %v3900, 0.03125
    %v3913 = vmul.f32 %v3903, 0.03125
    %v3914 = vmul.f32 %v3908, 0.03125
    %v3915 = vmul.f32 %v3911, 0.03125
    %v3916 = vmul.f32 %v3912, %v3912
    %v3917 = vmul.f32 %v3913, %v3913
    %v3918 = vsub.f32 %v3914, %v3916
    %v3919 = vsub.f32 %v3915, %v3917
    %v3920 = vadd.f32 %v3918, 1e-05
    %v3921 = vadd.f32 %v3919, 1e-05
    %v3922 = vrsqrt.pop %v3920
    %v3923 = vrsqrt.pop %v3921
    %v3924 = vsub.f32 %v3894, %v3912
    %v3925 = vsub.f32 %v3895, %v3913
    %v3926 = vmul.f32 %v3924, %v3922
    %v3927 = vmul.f32 %v3925, %v3923
    %v3928 = vlaneseq
    %v3929 = vshrl.u32 %v3928, 7
    %v3930 = vsub.s32 0, %v3929
    %v3931 = vrot.slane %v3896, %v3930
    %v3932 = vmul.f32 %v3926, %v3931
    %v3933 = vmul.f32 %v3927, %v3931
    %v3934 = vlaneseq
    %v3935 = vshrl.u32 %v3934, 7
    %v3936 = vsub.s32 0, %v3935
    %v3937 = vrot.slane %v3897, %v3936
    %v3938 = vadd.f32 %v3932, %v3937
    %v3939 = vadd.f32 %v3933, %v3937
    %s3940 = scalar_lea.vmem %s8, 32
    %v3941 = vld [vmem:[%s3940] sm:$0xff]
    %v3942 = vld [vmem:[%s3940 + $0x8] sm:$0xff]
    %v3943 = vld [vmem:[%s3940 + $0x10] sm:$0xff]
    %v3944 = vld [vmem:[%s3940 + $0x18] sm:$0xff]
    %v3945 = vld [vmem:[%s9 + $0x1] sm:$0x1]
    %v3946 = vlaneseq
    %v3947 = vshrl.u32 %v3946, 7
    %v3948 = vsub.s32 0, %v3947
    %v3949 = vrot.slane %v3945, %v3948
    %v3951 = vsel %vm72, %v3938, 0
    %v3954 = vsel %vm72, %v3939, 0
    %3956 = vmatprep.subr.mxu0 0.0
    %3957 = vmatpush1.msra.mxu0 0.0
    %3958 = vmatprep.subr.mxu0 0.0
    %3959 = vmatpush1.msra.mxu0 0.0
    %3960 = vmatprep.subr.mxu0 0.0
    %3961 = vmatpush1.msra.mxu0 0.0
    %3962 = vmatprep.subr.mxu0 0.0
    %3963 = vmatpush1.msra.mxu0 0.0
    %3964 = vmatprep.subr.mxu0 0.0
    %3965 = vmatpush1.msra.mxu0 0.0
    %3966 = vmatprep.subr.mxu0 0.0
    %3967 = vmatpush1.msra.mxu0 0.0
    %3968 = vmatprep.subr.mxu0 0.0
    %3969 = vmatpush1.msra.mxu0 0.0
    %3970 = vmatprep.subr.mxu0 0.0
    %3971 = vmatpush1.msra.mxu0 0.0
    %3972 = vmatprep.subr.mxu0 0.0
    %3973 = vmatpush1.msra.mxu0 0.0
    %3974 = vmatprep.subr.mxu0 0.0
    %3975 = vmatpush1.msra.mxu0 0.0
    %3976 = vmatprep.subr.mxu0 0.0
    %3977 = vmatpush1.msra.mxu0 0.0
    %3978 = vmatprep.subr.mxu0 0.0
    %3979 = vmatpush1.msra.mxu0 0.0
    %3980 = vmatprep.subr.mxu0 0.0
    %3981 = vmatpush1.msra.mxu0 %v3944
    %3982 = vmatprep.subr.mxu0 0.0
    %3983 = vmatpush1.msra.mxu0 %v3943
    %3984 = vmatprep.subr.mxu0 0.0
    %3985 = vmatpush1.msra.mxu0 %v3942
    %3986 = vmatprep.subr.mxu0 0.0
    %3987 = vmatpush1.msra.mxu0 %v3941
    %3988 = vmatprep.subr.mxu0 0.0
    %3989 = vmatpush2.msra.mxu0 0.0
    %3990 = vmatprep.subr.mxu0 0.0
    %3991 = vmatpush2.msra.mxu0 0.0
    %3992 = vmatprep.subr.mxu0 0.0
    %3993 = vmatpush2.msra.mxu0 0.0
    %3994 = vmatprep.subr.mxu0 0.0
    %3995 = vmatpush2.msra.mxu0 0.0
    %3996 = vmatprep.subr.mxu0 0.0
    %3997 = vmatpush2.msra.mxu0 0.0
    %3998 = vmatprep.subr.mxu0 0.0
    %3999 = vmatpush2.msra.mxu0 0.0
    %4000 = vmatprep.subr.mxu0 0.0
    %4001 = vmatpush2.msra.mxu0 0.0
    %4002 = vmatprep.subr.mxu0 0.0
    %4003 = vmatpush2.msra.mxu0 0.0
    %4004 = vmatprep.subr.mxu0 0.0
    %4005 = vmatpush2.msra.mxu0 0.0
    %4006 = vmatprep.subr.mxu0 0.0
    %4007 = vmatpush2.msra.mxu0 0.0
    %4008 = vmatprep.subr.mxu0 0.0
    %4009 = vmatpush2.msra.mxu0 0.0
    %4010 = vmatprep.subr.mxu0 0.0
    %4011 = vmatpush2.msra.mxu0 0.0
    %4012 = vmatprep.subr.mxu0 0.0
    %4013 = vmatpush2.msra.mxu0 0.0
    %4014 = vmatprep.subr.mxu0 0.0
    %4015 = vmatpush2.msra.mxu0 0.0
    %4016 = vmatprep.subr.mxu0 0.0
    %4017 = vmatpush2.msra.mxu0 0.0
    %4018 = vmatprep.subr.mxu0 0.0
    %4019 = vmatpush2.msra.mxu0 0.0
    %4020 = vmatprep.mubr.f32.mxu0 0.0
    %4021 = vmatmul.mubr.f32.gmra.mxu0 %v3951
    %v4022 = vpop.f32.mrf.mxu0
    %v4023 = vadd.f32 %v3949, %v4022
    %v4024 = vpop.f32.mrf.mxu0
    %4025 = vmatprep.mubr.f32.mxu0 0.0
    %4026 = vmatmul.mubr.f32.gmra.mxu0 %v3954
    %v4027 = vpop.f32.mrf.mxu0
    %v4028 = vadd.f32 %v3949, %v4027
    %v4029 = vpop.f32.mrf.mxu0
    %4030 = vdwg.mxu0
    %v4031 = vmul.f32 %v4023, 0.5
    %v4032 = vmul.f32 %v4028, 0.5
    %v4033 = vmul.f32 %v4023, %v1998
    %v4034 = vmul.f32 %v4028, %v1998
    %v4035 = verf.f32.pop %v4033
    %v4036 = verf.f32.pop %v4034
    %v4037 = vadd.f32 %v4035, 1.0
    %v4038 = vadd.f32 %v4036, 1.0
    %v4039 = vmul.f32 %v4031, %v4037
    %v4040 = vmul.f32 %v4032, %v4038
    %s4041 = scalar_lea.vmem %s10, 64
    %v4042 = vld [vmem:[%s4041] sm:$0xff]
    %v4043 = vld [vmem:[%s4041 + $0x8] sm:$0xff]
    %v4044 = vld [vmem:[%s4041 + $0x10] sm:$0xff]
    %v4045 = vld [vmem:[%s4041 + $0x18] sm:$0xff]
    %v4046 = vld [vmem:[%s4041 + $0x20] sm:$0xff]
    %v4047 = vld [vmem:[%s4041 + $0x28] sm:$0xff]
    %v4048 = vld [vmem:[%s4041 + $0x30] sm:$0xff]
    %v4049 = vld [vmem:[%s4041 + $0x38] sm:$0xff]
    %v4050 = vld [vmem:[%s11 + $0x1] sm:$0x1]
    %v4051 = vlaneseq
    %v4052 = vshrl.u32 %v4051, 7
    %v4053 = vsub.s32 0, %v4052
    %v4054 = vrot.slane %v4050, %v4053
    %v4056 = vsel %vm2020, %v4039, 0
    %v4059 = vsel %vm2020, %v4040, 0
    %4061 = vmatprep.subr.mxu0 0.0
    %4062 = vmatpush1.msra.mxu0 0.0
    %4063 = vmatprep.subr.mxu0 0.0
    %4064 = vmatpush1.msra.mxu0 0.0
    %4065 = vmatprep.subr.mxu0 0.0
    %4066 = vmatpush1.msra.mxu0 0.0
    %4067 = vmatprep.subr.mxu0 0.0
    %4068 = vmatpush1.msra.mxu0 0.0
    %4069 = vmatprep.subr.mxu0 0.0
    %4070 = vmatpush1.msra.mxu0 0.0
    %4071 = vmatprep.subr.mxu0 0.0
    %4072 = vmatpush1.msra.mxu0 0.0
    %4073 = vmatprep.subr.mxu0 0.0
    %4074 = vmatpush1.msra.mxu0 0.0
    %4075 = vmatprep.subr.mxu0 0.0
    %4076 = vmatpush1.msra.mxu0 0.0
    %4077 = vmatprep.subr.mxu0 0.0
    %4078 = vmatpush1.msra.mxu0 %v4049
    %4079 = vmatprep.subr.mxu0 0.0
    %4080 = vmatpush1.msra.mxu0 %v4048
    %4081 = vmatprep.subr.mxu0 0.0
    %4082 = vmatpush1.msra.mxu0 %v4047
    %4083 = vmatprep.subr.mxu0 0.0
    %4084 = vmatpush1.msra.mxu0 %v4046
    %4085 = vmatprep.subr.mxu0 0.0
    %4086 = vmatpush1.msra.mxu0 %v4045
    %4087 = vmatprep.subr.mxu0 0.0
    %4088 = vmatpush1.msra.mxu0 %v4044
    %4089 = vmatprep.subr.mxu0 0.0
    %4090 = vmatpush1.msra.mxu0 %v4043
    %4091 = vmatprep.subr.mxu0 0.0
    %4092 = vmatpush1.msra.mxu0 %v4042
    %4093 = vmatprep.subr.mxu0 0.0
    %4094 = vmatpush2.msra.mxu0 0.0
    %4095 = vmatprep.subr.mxu0 0.0
    %4096 = vmatpush2.msra.mxu0 0.0
    %4097 = vmatprep.subr.mxu0 0.0
    %4098 = vmatpush2.msra.mxu0 0.0
    %4099 = vmatprep.subr.mxu0 0.0
    %4100 = vmatpush2.msra.mxu0 0.0
    %4101 = vmatprep.subr.mxu0 0.0
    %4102 = vmatpush2.msra.mxu0 0.0
    %4103 = vmatprep.subr.mxu0 0.0
    %4104 = vmatpush2.msra.mxu0 0.0
    %4105 = vmatprep.subr.mxu0 0.0
    %4106 = vmatpush2.msra.mxu0 0.0
    %4107 = vmatprep.subr.mxu0 0.0
    %4108 = vmatpush2.msra.mxu0 0.0
    %4109 = vmatprep.subr.mxu0 0.0
    %4110 = vmatpush2.msra.mxu0 0.0
    %4111 = vmatprep.subr.mxu0 0.0
    %4112 = vmatpush2.msra.mxu0 0.0
    %4113 = vmatprep.subr.mxu0 0.0
    %4114 = vmatpush2.msra.mxu0 0.0
    %4115 = vmatprep.subr.mxu0 0.0
    %4116 = vmatpush2.msra.mxu0 0.0
    %4117 = vmatprep.subr.mxu0 0.0
    %4118 = vmatpush2.msra.mxu0 0.0
    %4119 = vmatprep.subr.mxu0 0.0
    %4120 = vmatpush2.msra.mxu0 0.0
    %4121 = vmatprep.subr.mxu0 0.0
    %4122 = vmatpush2.msra.mxu0 0.0
    %4123 = vmatprep.subr.mxu0 0.0
    %4124 = vmatpush2.msra.mxu0 0.0
    %4125 = vmatprep.mubr.f32.mxu0 0.0
    %4126 = vmatmul.mubr.f32.gmra.mxu0 %v4056
    %v4127 = vpop.f32.mrf.mxu0
    %v4128 = vadd.f32 %v4054, %v4127
    %v4129 = vpop.f32.mrf.mxu0
    %4130 = vmatprep.mubr.f32.mxu0 0.0
    %4131 = vmatmul.mubr.f32.gmra.mxu0 %v4059
    %v4132 = vpop.f32.mrf.mxu0
    %v4133 = vadd.f32 %v4054, %v4132
    %v4134 = vpop.f32.mrf.mxu0
    %4135 = vdwg.mxu0
    %v4136 = vadd.f32 %v4128, %v3894
    %v4137 = vadd.f32 %v4133, %v3895
    %4138 = vst.msk [vmem:[#allocation7] sm:$0xff] %vm72, %v4136
    %4139 = vst.msk [vmem:[#allocation7 + $0x8] sm:$0xff] %vm72, %v4137
    // Predicated region
    $region58: #{transformer_forward.1} parent=1 // pred_check
      _
    $region59: #{transformer_forward.1} parent=1 // pred_check_branch
      %4141 = sbr.rel (0) target = $region61
    $region60: #{transformer_forward.1} parent=1 // pred_region
      %s4143 = ssub.s32 256, 256
      %4144 = vsyncadd [#allocation4], %s4143
      %s4145 = sshll.u32 [#allocation7], 4
      %s4146 = int_to_ptr.vmem [resolvable:$true] %s4145
      %4151 = dma.vmem_to_hbm [thread:$0]  %s4146, 256, %s12, [#allocation4], 128, 128, 8
    $region61: #{transformer_forward.1} parent=1 // pred_fallthru
      _
    // Predicated region
    $region62: #{transformer_forward.1} parent=1 // pred_check
      _
    $region63: #{transformer_forward.1} parent=1 // pred_check_branch
      %4153 = sbr.rel (0) target = $region65
    $region64: #{transformer_forward.1} parent=1 // pred_region
      %4154 = dma.done [#allocation4], 256
    $region65: #{transformer_forward.1} parent=1 // pred_fallthru
      _
    %4155 = vsyncpa [#allocation3], 1
    %4156 = vsyncpa [#allocation6], 1
    %4157 = vsyncpa [#allocation4], 1

</llo_original>
